<compile_context>
chip_gen: v5e
topology: v5e:2x2
jax: 0.10.0
libtpu: 0.0.40
codegen_flags: <defaults>
</compile_context>

<pallas_src>
import math

import jax
import jax.numpy as jnp
from jax import lax
from jax.experimental import pallas as pl
from jax.experimental.pallas import tpu as pltpu

# ----------------------------- configuration --------------------------------
BATCH = 2
SEQ = 8
HIDDEN = 32          # stand-in for 768
NUM_HEADS = 4
HEAD_DIM = HIDDEN // NUM_HEADS
INTERMEDIATE = 64
NUM_LAYERS = 2
VOCAB = 100
TYPE_VOCAB = 2
MAX_POS = 16
NUM_FILTERS = 16     # stand-in for 128
KERNEL_SIZES = (2, 3, 4)
NUM_CLASSES = 3
CLS_PAD = 128        # lane-dense padded logits width
LN_EPS = 1e-12
TOKENS = BATCH * SEQ


# ------------------------------ block specs ----------------------------------
def _const_spec(shape):
    """Full-array block, same block for every grid step (stays VMEM-resident)."""
    nd = len(shape)
    return pl.BlockSpec(tuple(shape), lambda l, _nd=nd: (0,) * _nd)


def _layer_spec(shape):
    """Leading dim indexes the transformer layer; squeezed out of the kernel ref."""
    nd = len(shape)
    return pl.BlockSpec((None,) + tuple(shape[1:]),
                        lambda l, _nd=nd: (l,) + (0,) * (_nd - 1))


# ------------------------------- kernel --------------------------------------
def _layernorm(x, g, b):
    mu = jnp.mean(x, axis=-1, keepdims=True)
    var = jnp.mean(jnp.square(x - mu), axis=-1, keepdims=True)
    return (x - mu) * lax.rsqrt(var + LN_EPS) * g + b


def fused_forward_kernel(
        emb_ref, bias_ref, eg_ref, eb_ref,
        wq_ref, bq_ref, wk_ref, bk_ref, wv_ref, bv_ref, wo_ref, bo_ref,
        l1g_ref, l1b_ref, wf1_ref, bf1_ref, wf2_ref, bf2_ref, l2g_ref, l2b_ref,
        cw2_ref, cb2_ref, cw3_ref, cb3_ref, cw4_ref, cb4_ref,
        fw2_ref, fw3_ref, fw4_ref, fb_ref,
        out_ref, x_vmem):
    l = pl.program_id(0)
    scale = 1.0 / math.sqrt(HEAD_DIM)

    # ---- step 0: embedding LayerNorm initializes the residual stream --------
    @pl.when(l == 0)
    def _init():
        e = emb_ref[...].reshape(TOKENS, HIDDEN)
        x_vmem[...] = _layernorm(e, eg_ref[...], eb_ref[...])

    # ---- one transformer layer (batched over B*S tokens) --------------------
    x = x_vmem[...]                                            # [T, H]

    q = jnp.dot(x, wq_ref[...], preferred_element_type=jnp.float32) + bq_ref[...]
    k = jnp.dot(x, wk_ref[...], preferred_element_type=jnp.float32) + bk_ref[...]
    v = jnp.dot(x, wv_ref[...], preferred_element_type=jnp.float32) + bv_ref[...]
    q3 = q.reshape(BATCH, SEQ, HIDDEN)
    k3 = k.reshape(BATCH, SEQ, HIDDEN)
    v3 = v.reshape(BATCH, SEQ, HIDDEN)

    bias = bias_ref[...]                                       # [B, 1, S] (hoisted)
    wo = wo_ref[...]

    # Per-head attention; context is folded straight into the output
    # projection (no lane-axis concatenate).  Heads stay a small unrolled loop
    # to avoid 4-D transposes.  TODO(synk): at production sizes fold heads
    # into a single batched dot_general over B*NUM_HEADS.
    attn = jnp.zeros((TOKENS, HIDDEN), jnp.float32)
    for h in range(NUM_HEADS):
        lo = h * HEAD_DIM
        qh = q3[:, :, lo:lo + HEAD_DIM]                        # [B, S, d]
        kh = k3[:, :, lo:lo + HEAD_DIM]
        vh = v3[:, :, lo:lo + HEAD_DIM]
        s = jnp.einsum("bqd,bkd->bqk", qh, kh,
                       preferred_element_type=jnp.float32) * scale
        s = s + bias                                           # key-mask bias
        s = s - jnp.max(s, axis=-1, keepdims=True)
        p = jnp.exp(s)
        p = p / jnp.sum(p, axis=-1, keepdims=True)
        ctx = jnp.einsum("bqk,bkd->bqd", p, vh,
                         preferred_element_type=jnp.float32)
        ctx = ctx.reshape(TOKENS, HEAD_DIM)
        attn = attn + jnp.dot(ctx, wo[lo:lo + HEAD_DIM, :],
                              preferred_element_type=jnp.float32)
    attn = attn + bo_ref[...]

    x1 = _layernorm(x + attn, l1g_ref[...], l1b_ref[...])
    # TODO(synk): jax.nn.gelu defaults to the tanh approximation; use
    # approximate=False for exact-erf parity with HF BERT if required.
    hff = jax.nn.gelu(jnp.dot(x1, wf1_ref[...],
                              preferred_element_type=jnp.float32) + bf1_ref[...])
    ff = jnp.dot(hff, wf2_ref[...], preferred_element_type=jnp.float32) + bf2_ref[...]
    x_new = _layernorm(x1 + ff, l2g_ref[...], l2b_ref[...])
    x_vmem[...] = x_new

    # ---- last step: CNN head + classifier ------------------------------------
    @pl.when(l == pl.num_programs(0) - 1)
    def _head():
        # Block-diagonal (per-sequence) shift operators; shifted copies of the
        # full [T, H] tile are shared across all three conv branches.
        r = lax.broadcasted_iota(jnp.int32, (TOKENS, TOKENS), 0)
        c = lax.broadcasted_iota(jnp.int32, (TOKENS, TOKENS), 1)

        def shift_mat(j):
            keep = jnp.logical_and(c == r + j, (r % SEQ) < (SEQ - j))
            return jnp.where(keep, 1.0, 0.0).astype(jnp.float32)

        xs = [x_new]
        for j in range(1, max(KERNEL_SIZES)):
            xs.append(jnp.dot(shift_mat(j), x_new,
                              preferred_element_type=jnp.float32))

        rowpos = lax.broadcasted_iota(jnp.int32, (TOKENS, NUM_FILTERS), 0) % SEQ

        def conv_branch(w_ref_, b_ref_, ksz):
            acc = jnp.dot(xs[0], w_ref_[0], preferred_element_type=jnp.float32)
            for j in range(1, ksz):
                acc = acc + jnp.dot(xs[j], w_ref_[j],
                                    preferred_element_type=jnp.float32)
            acc = jnp.maximum(acc + b_ref_[...], 0.0)          # ReLU (>= 0)
            acc = jnp.where(rowpos <= SEQ - ksz, acc, 0.0)     # mask invalid tail
            return jnp.max(acc.reshape(BATCH, SEQ, NUM_FILTERS), axis=1)  # [B, F]

        p2 = conv_branch(cw2_ref, cb2_ref, KERNEL_SIZES[0])
        p3 = conv_branch(cw3_ref, cb3_ref, KERNEL_SIZES[1])
        p4 = conv_branch(cw4_ref, cb4_ref, KERNEL_SIZES[2])

        # nn.Dropout is identity in eval mode.  FC applied as a sum of the
        # per-branch splits (== concat @ W), lane-padded to 128 -> one dense
        # full-block store.
        logits = (jnp.dot(p2, fw2_ref[...], preferred_element_type=jnp.float32)
                  + jnp.dot(p3, fw3_ref[...], preferred_element_type=jnp.float32)
                  + jnp.dot(p4, fw4_ref[...], preferred_element_type=jnp.float32)
                  + fb_ref[...])
        out_ref[...] = logits


# --------------------------- params & forward --------------------------------
def init_params(key):
    keys = iter(jax.random.split(key, 64))

    def w(shape, scale=0.02):
        return (scale * jax.random.normal(next(keys), shape)).astype(jnp.float32)

    zeros = lambda s: jnp.zeros(s, jnp.float32)
    ones = lambda s: jnp.ones(s, jnp.float32)
    L = NUM_LAYERS

    # TODO(synk): pretrained BERT weights replaced by deterministic synthetic init.
    params = {
        "word_emb": w((VOCAB, HIDDEN)),
        "pos_emb": w((MAX_POS, HIDDEN)),
        "type_emb": w((TYPE_VOCAB, HIDDEN)),
        "emb_ln_g": ones((1, HIDDEN)),
        "emb_ln_b": zeros((1, HIDDEN)),
        # per-layer weights stacked along a leading layer dim
        "wq": w((L, HIDDEN, HIDDEN)), "bq": zeros((L, 1, HIDDEN)),
        "wk": w((L, HIDDEN, HIDDEN)), "bk": zeros((L, 1, HIDDEN)),
        "wv": w((L, HIDDEN, HIDDEN)), "bv": zeros((L, 1, HIDDEN)),
        "wo": w((L, HIDDEN, HIDDEN)), "bo": zeros((L, 1, HIDDEN)),
        "ln1_g": ones((L, 1, HIDDEN)), "ln1_b": zeros((L, 1, HIDDEN)),
        "w_ff1": w((L, HIDDEN, INTERMEDIATE)), "b_ff1": zeros((L, 1, INTERMEDIATE)),
        "w_ff2": w((L, INTERMEDIATE, HIDDEN)), "b_ff2": zeros((L, 1, HIDDEN)),
        "ln2_g": ones((L, 1, HIDDEN)), "ln2_b": zeros((L, 1, HIDDEN)),
    }
    for k in KERNEL_SIZES:
        params[f"conv_w_{k}"] = w((k, HIDDEN, NUM_FILTERS))
        params[f"conv_b_{k}"] = w((1, NUM_FILTERS))

    # FC head: lane-pad NUM_CLASSES -> CLS_PAD and split per conv branch so the
    # kernel never concatenates pooled features or emits narrow masked stores.
    fc_full = w((NUM_FILTERS * len(KERNEL_SIZES), NUM_CLASSES))
    fc_b = zeros((1, NUM_CLASSES))
    pad = CLS_PAD - NUM_CLASSES
    fc_full_p = jnp.pad(fc_full, ((0, 0), (0, pad)))
    params["fc_w2"] = fc_full_p[0 * NUM_FILTERS:1 * NUM_FILTERS]
    params["fc_w3"] = fc_full_p[1 * NUM_FILTERS:2 * NUM_FILTERS]
    params["fc_w4"] = fc_full_p[2 * NUM_FILTERS:3 * NUM_FILTERS]
    params["fc_b"] = jnp.pad(fc_b, ((0, 0), (0, pad)))
    return params


def bert_cnn_forward(params, input_ids, attention_mask, token_type_ids):
    # Embedding gathers are glue in plain JAX; everything downstream is one
    # fused Pallas kernel.
    pos_ids = jnp.arange(SEQ)
    emb = (params["word_emb"][input_ids]
           + params["pos_emb"][pos_ids][None, :, :]
           + params["type_emb"][token_type_ids]).astype(jnp.float32)
    # key-mask bias computed once ([B, 1, S]) and reused by every layer/head
    attn_bias = (1.0 - attention_mask.astype(jnp.float32))[:, None, :] * -10000.0

    const_args = (emb, attn_bias, params["emb_ln_g"], params["emb_ln_b"])
    layer_args = (params["wq"], params["bq"], params["wk"], params["bk"],
                  params["wv"], params["bv"], params["wo"], params["bo"],
                  params["ln1_g"], params["ln1_b"],
                  params["w_ff1"], params["b_ff1"],
                  params["w_ff2"], params["b_ff2"],
                  params["ln2_g"], params["ln2_b"])
    head_args = (params["conv_w_2"], params["conv_b_2"],
                 params["conv_w_3"], params["conv_b_3"],
                 params["conv_w_4"], params["conv_b_4"],
                 params["fc_w2"], params["fc_w3"], params["fc_w4"], params["fc_b"])

    in_specs = ([_const_spec(a.shape) for a in const_args]
                + [_layer_spec(a.shape) for a in layer_args]
                + [_const_spec(a.shape) for a in head_args])

    logits_padded = pl.pallas_call(
        fused_forward_kernel,
        out_shape=jax.ShapeDtypeStruct((BATCH, CLS_PAD), jnp.float32),
        grid=(NUM_LAYERS,),
        in_specs=in_specs,
        out_specs=pl.BlockSpec((BATCH, CLS_PAD), lambda l: (0, 0)),
        scratch_shapes=[pltpu.VMEM((TOKENS, HIDDEN), jnp.float32)],
        compiler_params=pltpu.CompilerParams(
            dimension_semantics=("arbitrary",)),
    )(*const_args, *layer_args, *head_args)

    return logits_padded[:, :NUM_CLASSES]


# --------------------------------- main ---------------------------------------
if __name__ == "__main__":
    root = jax.random.PRNGKey(0)
    pkey, dkey = jax.random.split(root)
    params = init_params(pkey)

    k_ids, _ = jax.random.split(dkey)
    input_ids = jax.random.randint(k_ids, (BATCH, SEQ), 0, VOCAB, dtype=jnp.int32)
    token_type_ids = jnp.zeros((BATCH, SEQ), jnp.int32).at[:, SEQ // 2:].set(1)
    attention_mask = jnp.ones((BATCH, SEQ), jnp.int32).at[1, SEQ - 2:].set(0)

    logits = bert_cnn_forward(params, input_ids, attention_mask, token_type_ids)
    logits = jax.block_until_ready(logits)
    assert logits.shape == (BATCH, NUM_CLASSES)
    assert bool(jnp.all(jnp.isfinite(logits)))
    print("KERNEL_OK")
</pallas_src>

<mosaic_0001>
module attributes {stable_mosaic.version = 11 : i64} {
  func.func @fused_forward_kernel(%arg0: i32, %arg1: memref<2x8x32xf32, #tpu.memory_space<vmem>>, %arg2: memref<2x1x8xf32, #tpu.memory_space<vmem>>, %arg3: memref<1x32xf32, #tpu.memory_space<vmem>>, %arg4: memref<1x32xf32, #tpu.memory_space<vmem>>, %arg5: memref<1x32x32xf32, #tpu.memory_space<vmem>>, %arg6: memref<1x1x32xf32, #tpu.memory_space<vmem>>, %arg7: memref<1x32x32xf32, #tpu.memory_space<vmem>>, %arg8: memref<1x1x32xf32, #tpu.memory_space<vmem>>, %arg9: memref<1x32x32xf32, #tpu.memory_space<vmem>>, %arg10: memref<1x1x32xf32, #tpu.memory_space<vmem>>, %arg11: memref<1x32x32xf32, #tpu.memory_space<vmem>>, %arg12: memref<1x1x32xf32, #tpu.memory_space<vmem>>, %arg13: memref<1x1x32xf32, #tpu.memory_space<vmem>>, %arg14: memref<1x1x32xf32, #tpu.memory_space<vmem>>, %arg15: memref<1x32x64xf32, #tpu.memory_space<vmem>>, %arg16: memref<1x1x64xf32, #tpu.memory_space<vmem>>, %arg17: memref<1x64x32xf32, #tpu.memory_space<vmem>>, %arg18: memref<1x1x32xf32, #tpu.memory_space<vmem>>, %arg19: memref<1x1x32xf32, #tpu.memory_space<vmem>>, %arg20: memref<1x1x32xf32, #tpu.memory_space<vmem>>, %arg21: memref<2x32x16xf32, #tpu.memory_space<vmem>>, %arg22: memref<1x16xf32, #tpu.memory_space<vmem>>, %arg23: memref<3x32x16xf32, #tpu.memory_space<vmem>>, %arg24: memref<1x16xf32, #tpu.memory_space<vmem>>, %arg25: memref<4x32x16xf32, #tpu.memory_space<vmem>>, %arg26: memref<1x16xf32, #tpu.memory_space<vmem>>, %arg27: memref<16x128xf32, #tpu.memory_space<vmem>>, %arg28: memref<16x128xf32, #tpu.memory_space<vmem>>, %arg29: memref<16x128xf32, #tpu.memory_space<vmem>>, %arg30: memref<1x128xf32, #tpu.memory_space<vmem>>, %arg31: memref<2x128xf32, #tpu.memory_space<vmem>>, %arg32: memref<16x32xf32, #tpu.memory_space<vmem>>) attributes {dimension_semantics = [#tpu.dimension_semantics<arbitrary>], iteration_bounds = array<i64: 2>, scalar_prefetch = 0 : i64, scratch_operands = 1 : i64, tpu.core_type = #tpu.core_type<tc>, window_params = [{pipeline_mode = #tpu.pipeline_mode<synchronous>, transform_indices = @transform_0, window_bounds = array<i64: 2, 8, 32>}, {pipeline_mode = #tpu.pipeline_mode<synchronous>, transform_indices = @transform_1, window_bounds = array<i64: 2, 1, 8>}, {pipeline_mode = #tpu.pipeline_mode<synchronous>, transform_indices = @transform_2, window_bounds = array<i64: 1, 32>}, {pipeline_mode = #tpu.pipeline_mode<synchronous>, transform_indices = @transform_3, window_bounds = array<i64: 1, 32>}, {transform_indices = @transform_4, window_bounds = array<i64: 1, 32, 32>}, {transform_indices = @transform_5, window_bounds = array<i64: 1, 1, 32>}, {transform_indices = @transform_6, window_bounds = array<i64: 1, 32, 32>}, {transform_indices = @transform_7, window_bounds = array<i64: 1, 1, 32>}, {transform_indices = @transform_8, window_bounds = array<i64: 1, 32, 32>}, {transform_indices = @transform_9, window_bounds = array<i64: 1, 1, 32>}, {transform_indices = @transform_10, window_bounds = array<i64: 1, 32, 32>}, {transform_indices = @transform_11, window_bounds = array<i64: 1, 1, 32>}, {transform_indices = @transform_12, window_bounds = array<i64: 1, 1, 32>}, {transform_indices = @transform_13, window_bounds = array<i64: 1, 1, 32>}, {transform_indices = @transform_14, window_bounds = array<i64: 1, 32, 64>}, {transform_indices = @transform_15, window_bounds = array<i64: 1, 1, 64>}, {transform_indices = @transform_16, window_bounds = array<i64: 1, 64, 32>}, {transform_indices = @transform_17, window_bounds = array<i64: 1, 1, 32>}, {transform_indices = @transform_18, window_bounds = array<i64: 1, 1, 32>}, {transform_indices = @transform_19, window_bounds = array<i64: 1, 1, 32>}, {pipeline_mode = #tpu.pipeline_mode<synchronous>, transform_indices = @transform_20, window_bounds = array<i64: 2, 32, 16>}, {pipeline_mode = #tpu.pipeline_mode<synchronous>, transform_indices = @transform_21, window_bounds = array<i64: 1, 16>}, {pipeline_mode = #tpu.pipeline_mode<synchronous>, transform_indices = @transform_22, window_bounds = array<i64: 3, 32, 16>}, {pipeline_mode = #tpu.pipeline_mode<synchronous>, transform_indices = @transform_23, window_bounds = array<i64: 1, 16>}, {pipeline_mode = #tpu.pipeline_mode<synchronous>, transform_indices = @transform_24, window_bounds = array<i64: 4, 32, 16>}, {pipeline_mode = #tpu.pipeline_mode<synchronous>, transform_indices = @transform_25, window_bounds = array<i64: 1, 16>}, {pipeline_mode = #tpu.pipeline_mode<synchronous>, transform_indices = @transform_26, window_bounds = array<i64: 16, 128>}, {pipeline_mode = #tpu.pipeline_mode<synchronous>, transform_indices = @transform_27, window_bounds = array<i64: 16, 128>}, {pipeline_mode = #tpu.pipeline_mode<synchronous>, transform_indices = @transform_28, window_bounds = array<i64: 16, 128>}, {pipeline_mode = #tpu.pipeline_mode<synchronous>, transform_indices = @transform_29, window_bounds = array<i64: 1, 128>}, {pipeline_mode = #tpu.pipeline_mode<synchronous>, transform_indices = @transform_30, window_bounds = array<i64: 2, 128>}]} {
    %c0_i32 = arith.constant 0 : i32
    %0 = arith.cmpi eq, %arg0, %c0_i32 : i32
    %1 = arith.extui %0 : i1 to i32
    %c0_i32_0 = arith.constant 0 : i32
    %2 = arith.cmpi ne, %1, %c0_i32_0 : i32
    scf.if %2 {
      %c0_99 = arith.constant 0 : index
      %c0_100 = arith.constant 0 : index
      %c0_101 = arith.constant 0 : index
      %209 = vector.load %arg1[%c0_99, %c0_100, %c0_101] : memref<2x8x32xf32, #tpu.memory_space<vmem>>, vector<2x8x32xf32>
      %210 = vector.shape_cast %209 : vector<2x8x32xf32> to vector<16x32xf32>
      %c0_102 = arith.constant 0 : index
      %c0_103 = arith.constant 0 : index
      %211 = vector.load %arg3[%c0_102, %c0_103] : memref<1x32xf32, #tpu.memory_space<vmem>>, vector<1x32xf32>
      %c0_104 = arith.constant 0 : index
      %c0_105 = arith.constant 0 : index
      %212 = vector.load %arg4[%c0_104, %c0_105] : memref<1x32xf32, #tpu.memory_space<vmem>>, vector<1x32xf32>
      %cst_106 = arith.constant dense<0.000000e+00> : vector<16xf32>
      %213 = vector.multi_reduction <add>, %210, %cst_106 [1] : vector<16x32xf32> to vector<16xf32>
      %214 = vector.shape_cast %213 : vector<16xf32> to vector<16x1xf32>
      %cst_107 = arith.constant 3.200000e+01 : f32
      %215 = vector.broadcast %cst_107 : f32 to vector<16x1xf32>
      %216 = arith.divf %214, %215 : vector<16x1xf32>
      %217 = vector.broadcast %216 : vector<16x1xf32> to vector<16x32xf32>
      %218 = arith.subf %210, %217 : vector<16x32xf32>
      %219 = arith.mulf %218, %218 : vector<16x32xf32>
      %cst_108 = arith.constant dense<0.000000e+00> : vector<16xf32>
      %220 = vector.multi_reduction <add>, %219, %cst_108 [1] : vector<16x32xf32> to vector<16xf32>
      %221 = vector.shape_cast %220 : vector<16xf32> to vector<16x1xf32>
      %cst_109 = arith.constant 3.200000e+01 : f32
      %222 = vector.broadcast %cst_109 : f32 to vector<16x1xf32>
      %223 = arith.divf %221, %222 : vector<16x1xf32>
      %224 = vector.broadcast %216 : vector<16x1xf32> to vector<16x32xf32>
      %225 = arith.subf %210, %224 : vector<16x32xf32>
      %cst_110 = arith.constant 9.99999996E-13 : f32
      %226 = vector.broadcast %cst_110 : f32 to vector<16x1xf32>
      %227 = arith.addf %223, %226 : vector<16x1xf32>
      %228 = math.rsqrt %227 : vector<16x1xf32>
      %229 = vector.broadcast %228 : vector<16x1xf32> to vector<16x32xf32>
      %230 = arith.mulf %225, %229 : vector<16x32xf32>
      %231 = vector.broadcast %211 : vector<1x32xf32> to vector<16x32xf32>
      %232 = arith.mulf %230, %231 : vector<16x32xf32>
      %233 = vector.broadcast %212 : vector<1x32xf32> to vector<16x32xf32>
      %234 = arith.addf %232, %233 : vector<16x32xf32>
      %c0_111 = arith.constant 0 : index
      %c0_112 = arith.constant 0 : index
      %235 = vector.load %arg32[%c0_111, %c0_112] : memref<16x32xf32, #tpu.memory_space<vmem>>, vector<16x32xf32>
      tpu.vector_store %arg32[%c0_111, %c0_112], %234 {strides = array<i32>} : memref<16x32xf32, #tpu.memory_space<vmem>>, vector<16x32xf32>,
    } else {
    }
    %c0 = arith.constant 0 : index
    %c0_1 = arith.constant 0 : index
    %3 = vector.load %arg32[%c0, %c0_1] : memref<16x32xf32, #tpu.memory_space<vmem>>, vector<16x32xf32>
    %c0_2 = arith.constant 0 : index
    %c0_3 = arith.constant 0 : index
    %c0_4 = arith.constant 0 : index
    %4 = vector.load %arg5[%c0_2, %c0_3, %c0_4] : memref<1x32x32xf32, #tpu.memory_space<vmem>>, vector<1x32x32xf32>
    %5 = vector.shape_cast %4 : vector<1x32x32xf32> to vector<32x32xf32>
    %cst = arith.constant dense<0.000000e+00> : vector<16x32xf32>
    %6 = tpu.matmul %3, %5, %cst {dimension_numbers = #tpu.dot_dimension_numbers<[1], [0], [0], [1], [0, 0, 1, 1], [], []>} : vector<16x32xf32>, vector<32x32xf32>, vector<16x32xf32> -> vector<16x32xf32>
    %c0_5 = arith.constant 0 : index
    %c0_6 = arith.constant 0 : index
    %c0_7 = arith.constant 0 : index
    %7 = vector.load %arg6[%c0_5, %c0_6, %c0_7] : memref<1x1x32xf32, #tpu.memory_space<vmem>>, vector<1x1x32xf32>
    %8 = vector.shape_cast %7 : vector<1x1x32xf32> to vector<1x32xf32>
    %9 = vector.broadcast %8 : vector<1x32xf32> to vector<16x32xf32>
    %10 = arith.addf %6, %9 : vector<16x32xf32>
    %c0_8 = arith.constant 0 : index
    %c0_9 = arith.constant 0 : index
    %c0_10 = arith.constant 0 : index
    %11 = vector.load %arg7[%c0_8, %c0_9, %c0_10] : memref<1x32x32xf32, #tpu.memory_space<vmem>>, vector<1x32x32xf32>
    %12 = vector.shape_cast %11 : vector<1x32x32xf32> to vector<32x32xf32>
    %cst_11 = arith.constant dense<0.000000e+00> : vector<16x32xf32>
    %13 = tpu.matmul %3, %12, %cst_11 {dimension_numbers = #tpu.dot_dimension_numbers<[1], [0], [0], [1], [0, 0, 1, 1], [], []>} : vector<16x32xf32>, vector<32x32xf32>, vector<16x32xf32> -> vector<16x32xf32>
    %c0_12 = arith.constant 0 : index
    %c0_13 = arith.constant 0 : index
    %c0_14 = arith.constant 0 : index
    %14 = vector.load %arg8[%c0_12, %c0_13, %c0_14] : memref<1x1x32xf32, #tpu.memory_space<vmem>>, vector<1x1x32xf32>
    %15 = vector.shape_cast %14 : vector<1x1x32xf32> to vector<1x32xf32>
    %16 = vector.broadcast %15 : vector<1x32xf32> to vector<16x32xf32>
    %17 = arith.addf %13, %16 : vector<16x32xf32>
    %c0_15 = arith.constant 0 : index
    %c0_16 = arith.constant 0 : index
    %c0_17 = arith.constant 0 : index
    %18 = vector.load %arg9[%c0_15, %c0_16, %c0_17] : memref<1x32x32xf32, #tpu.memory_space<vmem>>, vector<1x32x32xf32>
    %19 = vector.shape_cast %18 : vector<1x32x32xf32> to vector<32x32xf32>
    %cst_18 = arith.constant dense<0.000000e+00> : vector<16x32xf32>
    %20 = tpu.matmul %3, %19, %cst_18 {dimension_numbers = #tpu.dot_dimension_numbers<[1], [0], [0], [1], [0, 0, 1, 1], [], []>} : vector<16x32xf32>, vector<32x32xf32>, vector<16x32xf32> -> vector<16x32xf32>
    %c0_19 = arith.constant 0 : index
    %c0_20 = arith.constant 0 : index
    %c0_21 = arith.constant 0 : index
    %21 = vector.load %arg10[%c0_19, %c0_20, %c0_21] : memref<1x1x32xf32, #tpu.memory_space<vmem>>, vector<1x1x32xf32>
    %22 = vector.shape_cast %21 : vector<1x1x32xf32> to vector<1x32xf32>
    %23 = vector.broadcast %22 : vector<1x32xf32> to vector<16x32xf32>
    %24 = arith.addf %20, %23 : vector<16x32xf32>
    %25 = vector.shape_cast %10 : vector<16x32xf32> to vector<2x8x32xf32>
    %26 = vector.shape_cast %17 : vector<16x32xf32> to vector<2x8x32xf32>
    %27 = vector.shape_cast %24 : vector<16x32xf32> to vector<2x8x32xf32>
    %c0_22 = arith.constant 0 : index
    %c0_23 = arith.constant 0 : index
    %c0_24 = arith.constant 0 : index
    %28 = vector.load %arg2[%c0_22, %c0_23, %c0_24] : memref<2x1x8xf32, #tpu.memory_space<vmem>>, vector<2x1x8xf32>
    %c0_25 = arith.constant 0 : index
    %c0_26 = arith.constant 0 : index
    %c0_27 = arith.constant 0 : index
    %29 = vector.load %arg11[%c0_25, %c0_26, %c0_27] : memref<1x32x32xf32, #tpu.memory_space<vmem>>, vector<1x32x32xf32>
    %30 = vector.shape_cast %29 : vector<1x32x32xf32> to vector<32x32xf32>
    %cst_28 = arith.constant 0.000000e+00 : f32
    %31 = vector.broadcast %cst_28 : f32 to vector<16x32xf32>
    %32 = vector.extract_strided_slice %25 {offsets = [0, 0, 0], sizes = [2, 8, 8], strides = [1, 1, 1]} : vector<2x8x32xf32> to vector<2x8x8xf32>
    %33 = vector.extract_strided_slice %26 {offsets = [0, 0, 0], sizes = [2, 8, 8], strides = [1, 1, 1]} : vector<2x8x32xf32> to vector<2x8x8xf32>
    %34 = vector.extract_strided_slice %27 {offsets = [0, 0, 0], sizes = [2, 8, 8], strides = [1, 1, 1]} : vector<2x8x32xf32> to vector<2x8x8xf32>
    "tpu.trace_start"() <{level = 10 : i32, message = "bqd,bkd->bqk"}> : () -> ()
    %cst_29 = arith.constant dense<0.000000e+00> : vector<2x8x8xf32>
    %35 = tpu.matmul %32, %33, %cst_29 {dimension_numbers = #tpu.dot_dimension_numbers<[2], [2], [1], [1], [0, 0, 0, 1, 1, 1], [0], [0]>} : vector<2x8x8xf32>, vector<2x8x8xf32>, vector<2x8x8xf32> -> vector<2x8x8xf32>
    "tpu.trace_stop"() : () -> ()
    %cst_30 = arith.constant 0.353553385 : f32
    %36 = vector.broadcast %cst_30 : f32 to vector<2x8x8xf32>
    %37 = arith.mulf %35, %36 : vector<2x8x8xf32>
    %38 = vector.broadcast %28 : vector<2x1x8xf32> to vector<2x8x8xf32>
    %39 = arith.addf %37, %38 : vector<2x8x8xf32>
    %cst_31 = arith.constant dense<0xFF800000> : vector<2x8xf32>
    %40 = vector.multi_reduction <maximumf>, %39, %cst_31 [2] : vector<2x8x8xf32> to vector<2x8xf32>
    %41 = vector.shape_cast %40 : vector<2x8xf32> to vector<2x8x1xf32>
    %42 = vector.broadcast %41 : vector<2x8x1xf32> to vector<2x8x8xf32>
    %43 = arith.subf %39, %42 : vector<2x8x8xf32>
    %44 = math.exp %43 : vector<2x8x8xf32>
    %cst_32 = arith.constant dense<0.000000e+00> : vector<2x8xf32>
    %45 = vector.multi_reduction <add>, %44, %cst_32 [2] : vector<2x8x8xf32> to vector<2x8xf32>
    %46 = vector.shape_cast %45 : vector<2x8xf32> to vector<2x8x1xf32>
    %47 = vector.broadcast %46 : vector<2x8x1xf32> to vector<2x8x8xf32>
    %48 = arith.divf %44, %47 : vector<2x8x8xf32>
    "tpu.trace_start"() <{level = 10 : i32, message = "bqk,bkd->bqd"}> : () -> ()
    %cst_33 = arith.constant dense<0.000000e+00> : vector<2x8x8xf32>
    %49 = tpu.matmul %48, %34, %cst_33 {dimension_numbers = #tpu.dot_dimension_numbers<[2], [1], [1], [2], [0, 0, 0, 1, 1, 2], [0], [0]>} : vector<2x8x8xf32>, vector<2x8x8xf32>, vector<2x8x8xf32> -> vector<2x8x8xf32>
    "tpu.trace_stop"() : () -> ()
    %50 = vector.shape_cast %49 : vector<2x8x8xf32> to vector<16x8xf32>
    %51 = vector.extract_strided_slice %30 {offsets = [0, 0], sizes = [8, 32], strides = [1, 1]} : vector<32x32xf32> to vector<8x32xf32>
    %cst_34 = arith.constant dense<0.000000e+00> : vector<16x32xf32>
    %52 = tpu.matmul %50, %51, %cst_34 {dimension_numbers = #tpu.dot_dimension_numbers<[1], [0], [0], [1], [0, 0, 1, 1], [], []>} : vector<16x8xf32>, vector<8x32xf32>, vector<16x32xf32> -> vector<16x32xf32>
    %53 = arith.addf %31, %52 : vector<16x32xf32>
    %54 = vector.extract_strided_slice %25 {offsets = [0, 0, 8], sizes = [2, 8, 8], strides = [1, 1, 1]} : vector<2x8x32xf32> to vector<2x8x8xf32>
    %55 = vector.extract_strided_slice %26 {offsets = [0, 0, 8], sizes = [2, 8, 8], strides = [1, 1, 1]} : vector<2x8x32xf32> to vector<2x8x8xf32>
    %56 = vector.extract_strided_slice %27 {offsets = [0, 0, 8], sizes = [2, 8, 8], strides = [1, 1, 1]} : vector<2x8x32xf32> to vector<2x8x8xf32>
    "tpu.trace_start"() <{level = 10 : i32, message = "bqd,bkd->bqk"}> : () -> ()
    %cst_35 = arith.constant dense<0.000000e+00> : vector<2x8x8xf32>
    %57 = tpu.matmul %54, %55, %cst_35 {dimension_numbers = #tpu.dot_dimension_numbers<[2], [2], [1], [1], [0, 0, 0, 1, 1, 1], [0], [0]>} : vector<2x8x8xf32>, vector<2x8x8xf32>, vector<2x8x8xf32> -> vector<2x8x8xf32>
    "tpu.trace_stop"() : () -> ()
    %cst_36 = arith.constant 0.353553385 : f32
    %58 = vector.broadcast %cst_36 : f32 to vector<2x8x8xf32>
    %59 = arith.mulf %57, %58 : vector<2x8x8xf32>
    %60 = vector.broadcast %28 : vector<2x1x8xf32> to vector<2x8x8xf32>
    %61 = arith.addf %59, %60 : vector<2x8x8xf32>
    %cst_37 = arith.constant dense<0xFF800000> : vector<2x8xf32>
    %62 = vector.multi_reduction <maximumf>, %61, %cst_37 [2] : vector<2x8x8xf32> to vector<2x8xf32>
    %63 = vector.shape_cast %62 : vector<2x8xf32> to vector<2x8x1xf32>
    %64 = vector.broadcast %63 : vector<2x8x1xf32> to vector<2x8x8xf32>
    %65 = arith.subf %61, %64 : vector<2x8x8xf32>
    %66 = math.exp %65 : vector<2x8x8xf32>
    %cst_38 = arith.constant dense<0.000000e+00> : vector<2x8xf32>
    %67 = vector.multi_reduction <add>, %66, %cst_38 [2] : vector<2x8x8xf32> to vector<2x8xf32>
    %68 = vector.shape_cast %67 : vector<2x8xf32> to vector<2x8x1xf32>
    %69 = vector.broadcast %68 : vector<2x8x1xf32> to vector<2x8x8xf32>
    %70 = arith.divf %66, %69 : vector<2x8x8xf32>
    "tpu.trace_start"() <{level = 10 : i32, message = "bqk,bkd->bqd"}> : () -> ()
    %cst_39 = arith.constant dense<0.000000e+00> : vector<2x8x8xf32>
    %71 = tpu.matmul %70, %56, %cst_39 {dimension_numbers = #tpu.dot_dimension_numbers<[2], [1], [1], [2], [0, 0, 0, 1, 1, 2], [0], [0]>} : vector<2x8x8xf32>, vector<2x8x8xf32>, vector<2x8x8xf32> -> vector<2x8x8xf32>
    "tpu.trace_stop"() : () -> ()
    %72 = vector.shape_cast %71 : vector<2x8x8xf32> to vector<16x8xf32>
    %73 = vector.extract_strided_slice %30 {offsets = [8, 0], sizes = [8, 32], strides = [1, 1]} : vector<32x32xf32> to vector<8x32xf32>
    %cst_40 = arith.constant dense<0.000000e+00> : vector<16x32xf32>
    %74 = tpu.matmul %72, %73, %cst_40 {dimension_numbers = #tpu.dot_dimension_numbers<[1], [0], [0], [1], [0, 0, 1, 1], [], []>} : vector<16x8xf32>, vector<8x32xf32>, vector<16x32xf32> -> vector<16x32xf32>
    %75 = arith.addf %53, %74 : vector<16x32xf32>
    %76 = vector.extract_strided_slice %25 {offsets = [0, 0, 16], sizes = [2, 8, 8], strides = [1, 1, 1]} : vector<2x8x32xf32> to vector<2x8x8xf32>
    %77 = vector.extract_strided_slice %26 {offsets = [0, 0, 16], sizes = [2, 8, 8], strides = [1, 1, 1]} : vector<2x8x32xf32> to vector<2x8x8xf32>
    %78 = vector.extract_strided_slice %27 {offsets = [0, 0, 16], sizes = [2, 8, 8], strides = [1, 1, 1]} : vector<2x8x32xf32> to vector<2x8x8xf32>
    "tpu.trace_start"() <{level = 10 : i32, message = "bqd,bkd->bqk"}> : () -> ()
    %cst_41 = arith.constant dense<0.000000e+00> : vector<2x8x8xf32>
    %79 = tpu.matmul %76, %77, %cst_41 {dimension_numbers = #tpu.dot_dimension_numbers<[2], [2], [1], [1], [0, 0, 0, 1, 1, 1], [0], [0]>} : vector<2x8x8xf32>, vector<2x8x8xf32>, vector<2x8x8xf32> -> vector<2x8x8xf32>
    "tpu.trace_stop"() : () -> ()
    %cst_42 = arith.constant 0.353553385 : f32
    %80 = vector.broadcast %cst_42 : f32 to vector<2x8x8xf32>
    %81 = arith.mulf %79, %80 : vector<2x8x8xf32>
    %82 = vector.broadcast %28 : vector<2x1x8xf32> to vector<2x8x8xf32>
    %83 = arith.addf %81, %82 : vector<2x8x8xf32>
    %cst_43 = arith.constant dense<0xFF800000> : vector<2x8xf32>
    %84 = vector.multi_reduction <maximumf>, %83, %cst_43 [2] : vector<2x8x8xf32> to vector<2x8xf32>
    %85 = vector.shape_cast %84 : vector<2x8xf32> to vector<2x8x1xf32>
    %86 = vector.broadcast %85 : vector<2x8x1xf32> to vector<2x8x8xf32>
    %87 = arith.subf %83, %86 : vector<2x8x8xf32>
    %88 = math.exp %87 : vector<2x8x8xf32>
    %cst_44 = arith.constant dense<0.000000e+00> : vector<2x8xf32>
    %89 = vector.multi_reduction <add>, %88, %cst_44 [2] : vector<2x8x8xf32> to vector<2x8xf32>
    %90 = vector.shape_cast %89 : vector<2x8xf32> to vector<2x8x1xf32>
    %91 = vector.broadcast %90 : vector<2x8x1xf32> to vector<2x8x8xf32>
    %92 = arith.divf %88, %91 : vector<2x8x8xf32>
    "tpu.trace_start"() <{level = 10 : i32, message = "bqk,bkd->bqd"}> : () -> ()
    %cst_45 = arith.constant dense<0.000000e+00> : vector<2x8x8xf32>
    %93 = tpu.matmul %92, %78, %cst_45 {dimension_numbers = #tpu.dot_dimension_numbers<[2], [1], [1], [2], [0, 0, 0, 1, 1, 2], [0], [0]>} : vector<2x8x8xf32>, vector<2x8x8xf32>, vector<2x8x8xf32> -> vector<2x8x8xf32>
    "tpu.trace_stop"() : () -> ()
    %94 = vector.shape_cast %93 : vector<2x8x8xf32> to vector<16x8xf32>
    %95 = vector.extract_strided_slice %30 {offsets = [16, 0], sizes = [8, 32], strides = [1, 1]} : vector<32x32xf32> to vector<8x32xf32>
    %cst_46 = arith.constant dense<0.000000e+00> : vector<16x32xf32>
    %96 = tpu.matmul %94, %95, %cst_46 {dimension_numbers = #tpu.dot_dimension_numbers<[1], [0], [0], [1], [0, 0, 1, 1], [], []>} : vector<16x8xf32>, vector<8x32xf32>, vector<16x32xf32> -> vector<16x32xf32>
    %97 = arith.addf %75, %96 : vector<16x32xf32>
    %98 = vector.extract_strided_slice %25 {offsets = [0, 0, 24], sizes = [2, 8, 8], strides = [1, 1, 1]} : vector<2x8x32xf32> to vector<2x8x8xf32>
    %99 = vector.extract_strided_slice %26 {offsets = [0, 0, 24], sizes = [2, 8, 8], strides = [1, 1, 1]} : vector<2x8x32xf32> to vector<2x8x8xf32>
    %100 = vector.extract_strided_slice %27 {offsets = [0, 0, 24], sizes = [2, 8, 8], strides = [1, 1, 1]} : vector<2x8x32xf32> to vector<2x8x8xf32>
    "tpu.trace_start"() <{level = 10 : i32, message = "bqd,bkd->bqk"}> : () -> ()
    %cst_47 = arith.constant dense<0.000000e+00> : vector<2x8x8xf32>
    %101 = tpu.matmul %98, %99, %cst_47 {dimension_numbers = #tpu.dot_dimension_numbers<[2], [2], [1], [1], [0, 0, 0, 1, 1, 1], [0], [0]>} : vector<2x8x8xf32>, vector<2x8x8xf32>, vector<2x8x8xf32> -> vector<2x8x8xf32>
    "tpu.trace_stop"() : () -> ()
    %cst_48 = arith.constant 0.353553385 : f32
    %102 = vector.broadcast %cst_48 : f32 to vector<2x8x8xf32>
    %103 = arith.mulf %101, %102 : vector<2x8x8xf32>
    %104 = vector.broadcast %28 : vector<2x1x8xf32> to vector<2x8x8xf32>
    %105 = arith.addf %103, %104 : vector<2x8x8xf32>
    %cst_49 = arith.constant dense<0xFF800000> : vector<2x8xf32>
    %106 = vector.multi_reduction <maximumf>, %105, %cst_49 [2] : vector<2x8x8xf32> to vector<2x8xf32>
    %107 = vector.shape_cast %106 : vector<2x8xf32> to vector<2x8x1xf32>
    %108 = vector.broadcast %107 : vector<2x8x1xf32> to vector<2x8x8xf32>
    %109 = arith.subf %105, %108 : vector<2x8x8xf32>
    %110 = math.exp %109 : vector<2x8x8xf32>
    %cst_50 = arith.constant dense<0.000000e+00> : vector<2x8xf32>
    %111 = vector.multi_reduction <add>, %110, %cst_50 [2] : vector<2x8x8xf32> to vector<2x8xf32>
    %112 = vector.shape_cast %111 : vector<2x8xf32> to vector<2x8x1xf32>
    %113 = vector.broadcast %112 : vector<2x8x1xf32> to vector<2x8x8xf32>
    %114 = arith.divf %110, %113 : vector<2x8x8xf32>
    "tpu.trace_start"() <{level = 10 : i32, message = "bqk,bkd->bqd"}> : () -> ()
    %cst_51 = arith.constant dense<0.000000e+00> : vector<2x8x8xf32>
    %115 = tpu.matmul %114, %100, %cst_51 {dimension_numbers = #tpu.dot_dimension_numbers<[2], [1], [1], [2], [0, 0, 0, 1, 1, 2], [0], [0]>} : vector<2x8x8xf32>, vector<2x8x8xf32>, vector<2x8x8xf32> -> vector<2x8x8xf32>
    "tpu.trace_stop"() : () -> ()
    %116 = vector.shape_cast %115 : vector<2x8x8xf32> to vector<16x8xf32>
    %117 = vector.extract_strided_slice %30 {offsets = [24, 0], sizes = [8, 32], strides = [1, 1]} : vector<32x32xf32> to vector<8x32xf32>
    %cst_52 = arith.constant dense<0.000000e+00> : vector<16x32xf32>
    %118 = tpu.matmul %116, %117, %cst_52 {dimension_numbers = #tpu.dot_dimension_numbers<[1], [0], [0], [1], [0, 0, 1, 1], [], []>} : vector<16x8xf32>, vector<8x32xf32>, vector<16x32xf32> -> vector<16x32xf32>
    %119 = arith.addf %97, %118 : vector<16x32xf32>
    %c0_53 = arith.constant 0 : index
    %c0_54 = arith.constant 0 : index
    %c0_55 = arith.constant 0 : index
    %120 = vector.load %arg12[%c0_53, %c0_54, %c0_55] : memref<1x1x32xf32, #tpu.memory_space<vmem>>, vector<1x1x32xf32>
    %121 = vector.shape_cast %120 : vector<1x1x32xf32> to vector<1x32xf32>
    %122 = vector.broadcast %121 : vector<1x32xf32> to vector<16x32xf32>
    %123 = arith.addf %119, %122 : vector<16x32xf32>
    %124 = arith.addf %3, %123 : vector<16x32xf32>
    %c0_56 = arith.constant 0 : index
    %c0_57 = arith.constant 0 : index
    %c0_58 = arith.constant 0 : index
    %125 = vector.load %arg13[%c0_56, %c0_57, %c0_58] : memref<1x1x32xf32, #tpu.memory_space<vmem>>, vector<1x1x32xf32>
    %126 = vector.shape_cast %125 : vector<1x1x32xf32> to vector<1x32xf32>
    %c0_59 = arith.constant 0 : index
    %c0_60 = arith.constant 0 : index
    %c0_61 = arith.constant 0 : index
    %127 = vector.load %arg14[%c0_59, %c0_60, %c0_61] : memref<1x1x32xf32, #tpu.memory_space<vmem>>, vector<1x1x32xf32>
    %128 = vector.shape_cast %127 : vector<1x1x32xf32> to vector<1x32xf32>
    %cst_62 = arith.constant dense<0.000000e+00> : vector<16xf32>
    %129 = vector.multi_reduction <add>, %124, %cst_62 [1] : vector<16x32xf32> to vector<16xf32>
    %130 = vector.shape_cast %129 : vector<16xf32> to vector<16x1xf32>
    %cst_63 = arith.constant 3.200000e+01 : f32
    %131 = vector.broadcast %cst_63 : f32 to vector<16x1xf32>
    %132 = arith.divf %130, %131 : vector<16x1xf32>
    %133 = vector.broadcast %132 : vector<16x1xf32> to vector<16x32xf32>
    %134 = arith.subf %124, %133 : vector<16x32xf32>
    %135 = arith.mulf %134, %134 : vector<16x32xf32>
    %cst_64 = arith.constant dense<0.000000e+00> : vector<16xf32>
    %136 = vector.multi_reduction <add>, %135, %cst_64 [1] : vector<16x32xf32> to vector<16xf32>
    %137 = vector.shape_cast %136 : vector<16xf32> to vector<16x1xf32>
    %cst_65 = arith.constant 3.200000e+01 : f32
    %138 = vector.broadcast %cst_65 : f32 to vector<16x1xf32>
    %139 = arith.divf %137, %138 : vector<16x1xf32>
    %140 = vector.broadcast %132 : vector<16x1xf32> to vector<16x32xf32>
    %141 = arith.subf %124, %140 : vector<16x32xf32>
    %cst_66 = arith.constant 9.99999996E-13 : f32
    %142 = vector.broadcast %cst_66 : f32 to vector<16x1xf32>
    %143 = arith.addf %139, %142 : vector<16x1xf32>
    %144 = math.rsqrt %143 : vector<16x1xf32>
    %145 = vector.broadcast %144 : vector<16x1xf32> to vector<16x32xf32>
    %146 = arith.mulf %141, %145 : vector<16x32xf32>
    %147 = vector.broadcast %126 : vector<1x32xf32> to vector<16x32xf32>
    %148 = arith.mulf %146, %147 : vector<16x32xf32>
    %149 = vector.broadcast %128 : vector<1x32xf32> to vector<16x32xf32>
    %150 = arith.addf %148, %149 : vector<16x32xf32>
    %c0_67 = arith.constant 0 : index
    %c0_68 = arith.constant 0 : index
    %c0_69 = arith.constant 0 : index
    %151 = vector.load %arg15[%c0_67, %c0_68, %c0_69] : memref<1x32x64xf32, #tpu.memory_space<vmem>>, vector<1x32x64xf32>
    %152 = vector.shape_cast %151 : vector<1x32x64xf32> to vector<32x64xf32>
    %cst_70 = arith.constant dense<0.000000e+00> : vector<16x64xf32>
    %153 = tpu.matmul %150, %152, %cst_70 {dimension_numbers = #tpu.dot_dimension_numbers<[1], [0], [0], [1], [0, 0, 1, 1], [], []>} : vector<16x32xf32>, vector<32x64xf32>, vector<16x64xf32> -> vector<16x64xf32>
    %c0_71 = arith.constant 0 : index
    %c0_72 = arith.constant 0 : index
    %c0_73 = arith.constant 0 : index
    %154 = vector.load %arg16[%c0_71, %c0_72, %c0_73] : memref<1x1x64xf32, #tpu.memory_space<vmem>>, vector<1x1x64xf32>
    %155 = vector.shape_cast %154 : vector<1x1x64xf32> to vector<1x64xf32>
    %156 = vector.broadcast %155 : vector<1x64xf32> to vector<16x64xf32>
    %157 = arith.addf %153, %156 : vector<16x64xf32>
    %158 = arith.mulf %157, %157 : vector<16x64xf32>
    %159 = arith.mulf %157, %158 : vector<16x64xf32>
    %cst_74 = arith.constant 4.471500e-02 : f32
    %160 = vector.broadcast %cst_74 : f32 to vector<16x64xf32>
    %161 = arith.mulf %160, %159 : vector<16x64xf32>
    %162 = arith.addf %157, %161 : vector<16x64xf32>
    %cst_75 = arith.constant 0.797884583 : f32
    %163 = vector.broadcast %cst_75 : f32 to vector<16x64xf32>
    %164 = arith.mulf %163, %162 : vector<16x64xf32>
    %165 = math.tanh %164 : vector<16x64xf32>
    %cst_76 = arith.constant 1.000000e+00 : f32
    %166 = vector.broadcast %cst_76 : f32 to vector<16x64xf32>
    %167 = arith.addf %166, %165 : vector<16x64xf32>
    %cst_77 = arith.constant 5.000000e-01 : f32
    %168 = vector.broadcast %cst_77 : f32 to vector<16x64xf32>
    %169 = arith.mulf %168, %167 : vector<16x64xf32>
    %170 = arith.mulf %157, %169 : vector<16x64xf32>
    %c0_78 = arith.constant 0 : index
    %c0_79 = arith.constant 0 : index
    %c0_80 = arith.constant 0 : index
    %171 = vector.load %arg17[%c0_78, %c0_79, %c0_80] : memref<1x64x32xf32, #tpu.memory_space<vmem>>, vector<1x64x32xf32>
    %172 = vector.shape_cast %171 : vector<1x64x32xf32> to vector<64x32xf32>
    %cst_81 = arith.constant dense<0.000000e+00> : vector<16x32xf32>
    %173 = tpu.matmul %170, %172, %cst_81 {dimension_numbers = #tpu.dot_dimension_numbers<[1], [0], [0], [1], [0, 0, 1, 1], [], []>} : vector<16x64xf32>, vector<64x32xf32>, vector<16x32xf32> -> vector<16x32xf32>
    %c0_82 = arith.constant 0 : index
    %c0_83 = arith.constant 0 : index
    %c0_84 = arith.constant 0 : index
    %174 = vector.load %arg18[%c0_82, %c0_83, %c0_84] : memref<1x1x32xf32, #tpu.memory_space<vmem>>, vector<1x1x32xf32>
    %175 = vector.shape_cast %174 : vector<1x1x32xf32> to vector<1x32xf32>
    %176 = vector.broadcast %175 : vector<1x32xf32> to vector<16x32xf32>
    %177 = arith.addf %173, %176 : vector<16x32xf32>
    %178 = arith.addf %150, %177 : vector<16x32xf32>
    %c0_85 = arith.constant 0 : index
    %c0_86 = arith.constant 0 : index
    %c0_87 = arith.constant 0 : index
    %179 = vector.load %arg19[%c0_85, %c0_86, %c0_87] : memref<1x1x32xf32, #tpu.memory_space<vmem>>, vector<1x1x32xf32>
    %180 = vector.shape_cast %179 : vector<1x1x32xf32> to vector<1x32xf32>
    %c0_88 = arith.constant 0 : index
    %c0_89 = arith.constant 0 : index
    %c0_90 = arith.constant 0 : index
    %181 = vector.load %arg20[%c0_88, %c0_89, %c0_90] : memref<1x1x32xf32, #tpu.memory_space<vmem>>, vector<1x1x32xf32>
    %182 = vector.shape_cast %181 : vector<1x1x32xf32> to vector<1x32xf32>
    %cst_91 = arith.constant dense<0.000000e+00> : vector<16xf32>
    %183 = vector.multi_reduction <add>, %178, %cst_91 [1] : vector<16x32xf32> to vector<16xf32>
    %184 = vector.shape_cast %183 : vector<16xf32> to vector<16x1xf32>
    %cst_92 = arith.constant 3.200000e+01 : f32
    %185 = vector.broadcast %cst_92 : f32 to vector<16x1xf32>
    %186 = arith.divf %184, %185 : vector<16x1xf32>
    %187 = vector.broadcast %186 : vector<16x1xf32> to vector<16x32xf32>
    %188 = arith.subf %178, %187 : vector<16x32xf32>
    %189 = arith.mulf %188, %188 : vector<16x32xf32>
    %cst_93 = arith.constant dense<0.000000e+00> : vector<16xf32>
    %190 = vector.multi_reduction <add>, %189, %cst_93 [1] : vector<16x32xf32> to vector<16xf32>
    %191 = vector.shape_cast %190 : vector<16xf32> to vector<16x1xf32>
    %cst_94 = arith.constant 3.200000e+01 : f32
    %192 = vector.broadcast %cst_94 : f32 to vector<16x1xf32>
    %193 = arith.divf %191, %192 : vector<16x1xf32>
    %194 = vector.broadcast %186 : vector<16x1xf32> to vector<16x32xf32>
    %195 = arith.subf %178, %194 : vector<16x32xf32>
    %cst_95 = arith.constant 9.99999996E-13 : f32
    %196 = vector.broadcast %cst_95 : f32 to vector<16x1xf32>
    %197 = arith.addf %193, %196 : vector<16x1xf32>
    %198 = math.rsqrt %197 : vector<16x1xf32>
    %199 = vector.broadcast %198 : vector<16x1xf32> to vector<16x32xf32>
    %200 = arith.mulf %195, %199 : vector<16x32xf32>
    %201 = vector.broadcast %180 : vector<1x32xf32> to vector<16x32xf32>
    %202 = arith.mulf %200, %201 : vector<16x32xf32>
    %203 = vector.broadcast %182 : vector<1x32xf32> to vector<16x32xf32>
    %204 = arith.addf %202, %203 : vector<16x32xf32>
    %c0_96 = arith.constant 0 : index
    %c0_97 = arith.constant 0 : index
    %205 = vector.load %arg32[%c0_96, %c0_97] : memref<16x32xf32, #tpu.memory_space<vmem>>, vector<16x32xf32>
    tpu.vector_store %arg32[%c0_96, %c0_97], %204 {strides = array<i32>} : memref<16x32xf32, #tpu.memory_space<vmem>>, vector<16x32xf32>,
    %c1_i32 = arith.constant 1 : i32
    %206 = arith.cmpi eq, %arg0, %c1_i32 : i32
    %207 = arith.extui %206 : i1 to i32
    %c0_i32_98 = arith.constant 0 : i32
    %208 = arith.cmpi ne, %207, %c0_i32_98 : i32
    scf.if %208 {
      %209 = tpu.iota {dimensions = array<i32: 0>} : vector<16x16xi32>
      %210 = tpu.iota {dimensions = array<i32: 1>} : vector<16x16xi32>
      %c1_i32_99 = arith.constant 1 : i32
      %211 = vector.broadcast %c1_i32_99 : i32 to vector<16x16xi32>
      %212 = arith.addi %209, %211 : vector<16x16xi32>
      %213 = arith.cmpi eq, %210, %212 : vector<16x16xi32>
      %c8_i32 = arith.constant 8 : i32
      %c0_i32_100 = arith.constant 0 : i32
      %214 = arith.cmpi eq, %c8_i32, %c0_i32_100 : i32
      %c1_i32_101 = arith.constant 1 : i32
      %215 = arith.select %214, %c1_i32_101, %c8_i32 : i32
      %216 = vector.broadcast %215 : i32 to vector<16x16xi32>
      %217 = arith.remsi %209, %216 : vector<16x16xi32>
      %c0_i32_102 = arith.constant 0 : i32
      %218 = vector.broadcast %c0_i32_102 : i32 to vector<16x16xi32>
      %219 = arith.cmpi ne, %217, %218 : vector<16x16xi32>
      %c0_i32_103 = arith.constant 0 : i32
      %220 = vector.broadcast %c0_i32_103 : i32 to vector<16x16xi32>
      %221 = arith.cmpi slt, %217, %220 : vector<16x16xi32>
      %c0_i32_104 = arith.constant 0 : i32
      %222 = arith.cmpi slt, %215, %c0_i32_104 : i32
      %223 = vector.broadcast %222 : i1 to vector<16x16xi1>
      %224 = vector.broadcast %223 : vector<16x16xi1> to vector<16x16xi1>
      %225 = arith.xori %221, %224 : vector<16x16xi1>
      %226 = arith.andi %225, %219 : vector<16x16xi1>
      %227 = vector.broadcast %215 : i32 to vector<16x16xi32>
      %228 = arith.addi %217, %227 : vector<16x16xi32>
      %229 = arith.select %226, %228, %217 : vector<16x16xi1>, vector<16x16xi32>
      %c7_i32 = arith.constant 7 : i32
      %230 = vector.broadcast %c7_i32 : i32 to vector<16x16xi32>
      %231 = arith.cmpi slt, %229, %230 : vector<16x16xi32>
      %232 = arith.andi %213, %231 : vector<16x16xi1>
      %cst_105 = arith.constant 1.000000e+00 : f32
      %cst_106 = arith.constant 0.000000e+00 : f32
      %233 = vector.broadcast %cst_105 : f32 to vector<16x16xf32>
      %234 = vector.broadcast %cst_106 : f32 to vector<16x16xf32>
      %235 = arith.select %232, %233, %234 : vector<16x16xi1>, vector<16x16xf32>
      %cst_107 = arith.constant dense<0.000000e+00> : vector<16x32xf32>
      %236 = tpu.matmul %235, %204, %cst_107 {dimension_numbers = #tpu.dot_dimension_numbers<[1], [0], [0], [1], [0, 0, 1, 1], [], []>} : vector<16x16xf32>, vector<16x32xf32>, vector<16x32xf32> -> vector<16x32xf32>
      %c2_i32 = arith.constant 2 : i32
      %237 = vector.broadcast %c2_i32 : i32 to vector<16x16xi32>
      %238 = arith.addi %209, %237 : vector<16x16xi32>
      %239 = arith.cmpi eq, %210, %238 : vector<16x16xi32>
      %c8_i32_108 = arith.constant 8 : i32
      %c0_i32_109 = arith.constant 0 : i32
      %240 = arith.cmpi eq, %c8_i32_108, %c0_i32_109 : i32
      %c1_i32_110 = arith.constant 1 : i32
      %241 = arith.select %240, %c1_i32_110, %c8_i32_108 : i32
      %242 = vector.broadcast %241 : i32 to vector<16x16xi32>
      %243 = arith.remsi %209, %242 : vector<16x16xi32>
      %c0_i32_111 = arith.constant 0 : i32
      %244 = vector.broadcast %c0_i32_111 : i32 to vector<16x16xi32>
      %245 = arith.cmpi ne, %243, %244 : vector<16x16xi32>
      %c0_i32_112 = arith.constant 0 : i32
      %246 = vector.broadcast %c0_i32_112 : i32 to vector<16x16xi32>
      %247 = arith.cmpi slt, %243, %246 : vector<16x16xi32>
      %c0_i32_113 = arith.constant 0 : i32
      %248 = arith.cmpi slt, %241, %c0_i32_113 : i32
      %249 = vector.broadcast %248 : i1 to vector<16x16xi1>
      %250 = vector.broadcast %249 : vector<16x16xi1> to vector<16x16xi1>
      %251 = arith.xori %247, %250 : vector<16x16xi1>
      %252 = arith.andi %251, %245 : vector<16x16xi1>
      %253 = vector.broadcast %241 : i32 to vector<16x16xi32>
      %254 = arith.addi %243, %253 : vector<16x16xi32>
      %255 = arith.select %252, %254, %243 : vector<16x16xi1>, vector<16x16xi32>
      %c6_i32 = arith.constant 6 : i32
      %256 = vector.broadcast %c6_i32 : i32 to vector<16x16xi32>
      %257 = arith.cmpi slt, %255, %256 : vector<16x16xi32>
      %258 = arith.andi %239, %257 : vector<16x16xi1>
      %cst_114 = arith.constant 1.000000e+00 : f32
      %cst_115 = arith.constant 0.000000e+00 : f32
      %259 = vector.broadcast %cst_114 : f32 to vector<16x16xf32>
      %260 = vector.broadcast %cst_115 : f32 to vector<16x16xf32>
      %261 = arith.select %258, %259, %260 : vector<16x16xi1>, vector<16x16xf32>
      %cst_116 = arith.constant dense<0.000000e+00> : vector<16x32xf32>
      %262 = tpu.matmul %261, %204, %cst_116 {dimension_numbers = #tpu.dot_dimension_numbers<[1], [0], [0], [1], [0, 0, 1, 1], [], []>} : vector<16x16xf32>, vector<16x32xf32>, vector<16x32xf32> -> vector<16x32xf32>
      %c3_i32 = arith.constant 3 : i32
      %263 = vector.broadcast %c3_i32 : i32 to vector<16x16xi32>
      %264 = arith.addi %209, %263 : vector<16x16xi32>
      %265 = arith.cmpi eq, %210, %264 : vector<16x16xi32>
      %c8_i32_117 = arith.constant 8 : i32
      %c0_i32_118 = arith.constant 0 : i32
      %266 = arith.cmpi eq, %c8_i32_117, %c0_i32_118 : i32
      %c1_i32_119 = arith.constant 1 : i32
      %267 = arith.select %266, %c1_i32_119, %c8_i32_117 : i32
      %268 = vector.broadcast %267 : i32 to vector<16x16xi32>
      %269 = arith.remsi %209, %268 : vector<16x16xi32>
      %c0_i32_120 = arith.constant 0 : i32
      %270 = vector.broadcast %c0_i32_120 : i32 to vector<16x16xi32>
      %271 = arith.cmpi ne, %269, %270 : vector<16x16xi32>
      %c0_i32_121 = arith.constant 0 : i32
      %272 = vector.broadcast %c0_i32_121 : i32 to vector<16x16xi32>
      %273 = arith.cmpi slt, %269, %272 : vector<16x16xi32>
      %c0_i32_122 = arith.constant 0 : i32
      %274 = arith.cmpi slt, %267, %c0_i32_122 : i32
      %275 = vector.broadcast %274 : i1 to vector<16x16xi1>
      %276 = vector.broadcast %275 : vector<16x16xi1> to vector<16x16xi1>
      %277 = arith.xori %273, %276 : vector<16x16xi1>
      %278 = arith.andi %277, %271 : vector<16x16xi1>
      %279 = vector.broadcast %267 : i32 to vector<16x16xi32>
      %280 = arith.addi %269, %279 : vector<16x16xi32>
      %281 = arith.select %278, %280, %269 : vector<16x16xi1>, vector<16x16xi32>
      %c5_i32 = arith.constant 5 : i32
      %282 = vector.broadcast %c5_i32 : i32 to vector<16x16xi32>
      %283 = arith.cmpi slt, %281, %282 : vector<16x16xi32>
      %284 = arith.andi %265, %283 : vector<16x16xi1>
      %cst_123 = arith.constant 1.000000e+00 : f32
      %cst_124 = arith.constant 0.000000e+00 : f32
      %285 = vector.broadcast %cst_123 : f32 to vector<16x16xf32>
      %286 = vector.broadcast %cst_124 : f32 to vector<16x16xf32>
      %287 = arith.select %284, %285, %286 : vector<16x16xi1>, vector<16x16xf32>
      %cst_125 = arith.constant dense<0.000000e+00> : vector<16x32xf32>
      %288 = tpu.matmul %287, %204, %cst_125 {dimension_numbers = #tpu.dot_dimension_numbers<[1], [0], [0], [1], [0, 0, 1, 1], [], []>} : vector<16x16xf32>, vector<16x32xf32>, vector<16x32xf32> -> vector<16x32xf32>
      %289 = tpu.iota {dimensions = array<i32: 0>} : vector<16x16xi32>
      %c8_i32_126 = arith.constant 8 : i32
      %c0_i32_127 = arith.constant 0 : i32
      %290 = arith.cmpi eq, %c8_i32_126, %c0_i32_127 : i32
      %c1_i32_128 = arith.constant 1 : i32
      %291 = arith.select %290, %c1_i32_128, %c8_i32_126 : i32
      %292 = vector.broadcast %291 : i32 to vector<16x16xi32>
      %293 = arith.remsi %289, %292 : vector<16x16xi32>
      %c0_i32_129 = arith.constant 0 : i32
      %294 = vector.broadcast %c0_i32_129 : i32 to vector<16x16xi32>
      %295 = arith.cmpi ne, %293, %294 : vector<16x16xi32>
      %c0_i32_130 = arith.constant 0 : i32
      %296 = vector.broadcast %c0_i32_130 : i32 to vector<16x16xi32>
      %297 = arith.cmpi slt, %293, %296 : vector<16x16xi32>
      %c0_i32_131 = arith.constant 0 : i32
      %298 = arith.cmpi slt, %291, %c0_i32_131 : i32
      %299 = vector.broadcast %298 : i1 to vector<16x16xi1>
      %300 = vector.broadcast %299 : vector<16x16xi1> to vector<16x16xi1>
      %301 = arith.xori %297, %300 : vector<16x16xi1>
      %302 = arith.andi %301, %295 : vector<16x16xi1>
      %303 = vector.broadcast %291 : i32 to vector<16x16xi32>
      %304 = arith.addi %293, %303 : vector<16x16xi32>
      %305 = arith.select %302, %304, %293 : vector<16x16xi1>, vector<16x16xi32>
      %c0_132 = arith.constant 0 : index
      %c0_133 = arith.constant 0 : index
      %c0_134 = arith.constant 0 : index
      %306 = vector.load %arg21[%c0_132, %c0_133, %c0_134] : memref<2x32x16xf32, #tpu.memory_space<vmem>>, vector<1x32x16xf32>
      %307 = vector.shape_cast %306 : vector<1x32x16xf32> to vector<32x16xf32>
      %cst_135 = arith.constant dense<0.000000e+00> : vector<16x16xf32>
      %308 = tpu.matmul %204, %307, %cst_135 {dimension_numbers = #tpu.dot_dimension_numbers<[1], [0], [0], [1], [0, 0, 1, 1], [], []>} : vector<16x32xf32>, vector<32x16xf32>, vector<16x16xf32> -> vector<16x16xf32>
      %c1 = arith.constant 1 : index
      %c0_136 = arith.constant 0 : index
      %c0_137 = arith.constant 0 : index
      %309 = vector.load %arg21[%c1, %c0_136, %c0_137] : memref<2x32x16xf32, #tpu.memory_space<vmem>>, vector<1x32x16xf32>
      %310 = vector.shape_cast %309 : vector<1x32x16xf32> to vector<32x16xf32>
      %cst_138 = arith.constant dense<0.000000e+00> : vector<16x16xf32>
      %311 = tpu.matmul %236, %310, %cst_138 {dimension_numbers = #tpu.dot_dimension_numbers<[1], [0], [0], [1], [0, 0, 1, 1], [], []>} : vector<16x32xf32>, vector<32x16xf32>, vector<16x16xf32> -> vector<16x16xf32>
      %312 = arith.addf %308, %311 : vector<16x16xf32>
      %c0_139 = arith.constant 0 : index
      %c0_140 = arith.constant 0 : index
      %313 = vector.load %arg22[%c0_139, %c0_140] : memref<1x16xf32, #tpu.memory_space<vmem>>, vector<1x16xf32>
      %314 = vector.broadcast %313 : vector<1x16xf32> to vector<16x16xf32>
      %315 = arith.addf %312, %314 : vector<16x16xf32>
      %cst_141 = arith.constant 0.000000e+00 : f32
      %316 = vector.broadcast %cst_141 : f32 to vector<16x16xf32>
      %317 = arith.maximumf %315, %316 : vector<16x16xf32>
      %c6_i32_142 = arith.constant 6 : i32
      %318 = vector.broadcast %c6_i32_142 : i32 to vector<16x16xi32>
      %319 = arith.cmpi sle, %305, %318 : vector<16x16xi32>
      %cst_143 = arith.constant 0.000000e+00 : f32
      %320 = vector.broadcast %cst_143 : f32 to vector<16x16xf32>
      %321 = arith.select %319, %317, %320 : vector<16x16xi1>, vector<16x16xf32>
      %322 = vector.shape_cast %321 : vector<16x16xf32> to vector<2x8x16xf32>
      %cst_144 = arith.constant dense<0xFF800000> : vector<2x16xf32>
      %323 = vector.multi_reduction <maximumf>, %322, %cst_144 [1] : vector<2x8x16xf32> to vector<2x16xf32>
      %c0_145 = arith.constant 0 : index
      %c0_146 = arith.constant 0 : index
      %c0_147 = arith.constant 0 : index
      %324 = vector.load %arg23[%c0_145, %c0_146, %c0_147] : memref<3x32x16xf32, #tpu.memory_space<vmem>>, vector<1x32x16xf32>
      %325 = vector.shape_cast %324 : vector<1x32x16xf32> to vector<32x16xf32>
      %cst_148 = arith.constant dense<0.000000e+00> : vector<16x16xf32>
      %326 = tpu.matmul %204, %325, %cst_148 {dimension_numbers = #tpu.dot_dimension_numbers<[1], [0], [0], [1], [0, 0, 1, 1], [], []>} : vector<16x32xf32>, vector<32x16xf32>, vector<16x16xf32> -> vector<16x16xf32>
      %c1_149 = arith.constant 1 : index
      %c0_150 = arith.constant 0 : index
      %c0_151 = arith.constant 0 : index
      %327 = vector.load %arg23[%c1_149, %c0_150, %c0_151] : memref<3x32x16xf32, #tpu.memory_space<vmem>>, vector<1x32x16xf32>
      %328 = vector.shape_cast %327 : vector<1x32x16xf32> to vector<32x16xf32>
      %cst_152 = arith.constant dense<0.000000e+00> : vector<16x16xf32>
      %329 = tpu.matmul %236, %328, %cst_152 {dimension_numbers = #tpu.dot_dimension_numbers<[1], [0], [0], [1], [0, 0, 1, 1], [], []>} : vector<16x32xf32>, vector<32x16xf32>, vector<16x16xf32> -> vector<16x16xf32>
      %330 = arith.addf %326, %329 : vector<16x16xf32>
      %c2 = arith.constant 2 : index
      %c0_153 = arith.constant 0 : index
      %c0_154 = arith.constant 0 : index
      %331 = vector.load %arg23[%c2, %c0_153, %c0_154] : memref<3x32x16xf32, #tpu.memory_space<vmem>>, vector<1x32x16xf32>
      %332 = vector.shape_cast %331 : vector<1x32x16xf32> to vector<32x16xf32>
      %cst_155 = arith.constant dense<0.000000e+00> : vector<16x16xf32>
      %333 = tpu.matmul %262, %332, %cst_155 {dimension_numbers = #tpu.dot_dimension_numbers<[1], [0], [0], [1], [0, 0, 1, 1], [], []>} : vector<16x32xf32>, vector<32x16xf32>, vector<16x16xf32> -> vector<16x16xf32>
      %334 = arith.addf %330, %333 : vector<16x16xf32>
      %c0_156 = arith.constant 0 : index
      %c0_157 = arith.constant 0 : index
      %335 = vector.load %arg24[%c0_156, %c0_157] : memref<1x16xf32, #tpu.memory_space<vmem>>, vector<1x16xf32>
      %336 = vector.broadcast %335 : vector<1x16xf32> to vector<16x16xf32>
      %337 = arith.addf %334, %336 : vector<16x16xf32>
      %cst_158 = arith.constant 0.000000e+00 : f32
      %338 = vector.broadcast %cst_158 : f32 to vector<16x16xf32>
      %339 = arith.maximumf %337, %338 : vector<16x16xf32>
      %c5_i32_159 = arith.constant 5 : i32
      %340 = vector.broadcast %c5_i32_159 : i32 to vector<16x16xi32>
      %341 = arith.cmpi sle, %305, %340 : vector<16x16xi32>
      %cst_160 = arith.constant 0.000000e+00 : f32
      %342 = vector.broadcast %cst_160 : f32 to vector<16x16xf32>
      %343 = arith.select %341, %339, %342 : vector<16x16xi1>, vector<16x16xf32>
      %344 = vector.shape_cast %343 : vector<16x16xf32> to vector<2x8x16xf32>
      %cst_161 = arith.constant dense<0xFF800000> : vector<2x16xf32>
      %345 = vector.multi_reduction <maximumf>, %344, %cst_161 [1] : vector<2x8x16xf32> to vector<2x16xf32>
      %c0_162 = arith.constant 0 : index
      %c0_163 = arith.constant 0 : index
      %c0_164 = arith.constant 0 : index
      %346 = vector.load %arg25[%c0_162, %c0_163, %c0_164] : memref<4x32x16xf32, #tpu.memory_space<vmem>>, vector<1x32x16xf32>
      %347 = vector.shape_cast %346 : vector<1x32x16xf32> to vector<32x16xf32>
      %cst_165 = arith.constant dense<0.000000e+00> : vector<16x16xf32>
      %348 = tpu.matmul %204, %347, %cst_165 {dimension_numbers = #tpu.dot_dimension_numbers<[1], [0], [0], [1], [0, 0, 1, 1], [], []>} : vector<16x32xf32>, vector<32x16xf32>, vector<16x16xf32> -> vector<16x16xf32>
      %c1_166 = arith.constant 1 : index
      %c0_167 = arith.constant 0 : index
      %c0_168 = arith.constant 0 : index
      %349 = vector.load %arg25[%c1_166, %c0_167, %c0_168] : memref<4x32x16xf32, #tpu.memory_space<vmem>>, vector<1x32x16xf32>
      %350 = vector.shape_cast %349 : vector<1x32x16xf32> to vector<32x16xf32>
      %cst_169 = arith.constant dense<0.000000e+00> : vector<16x16xf32>
      %351 = tpu.matmul %236, %350, %cst_169 {dimension_numbers = #tpu.dot_dimension_numbers<[1], [0], [0], [1], [0, 0, 1, 1], [], []>} : vector<16x32xf32>, vector<32x16xf32>, vector<16x16xf32> -> vector<16x16xf32>
      %352 = arith.addf %348, %351 : vector<16x16xf32>
      %c2_170 = arith.constant 2 : index
      %c0_171 = arith.constant 0 : index
      %c0_172 = arith.constant 0 : index
      %353 = vector.load %arg25[%c2_170, %c0_171, %c0_172] : memref<4x32x16xf32, #tpu.memory_space<vmem>>, vector<1x32x16xf32>
      %354 = vector.shape_cast %353 : vector<1x32x16xf32> to vector<32x16xf32>
      %cst_173 = arith.constant dense<0.000000e+00> : vector<16x16xf32>
      %355 = tpu.matmul %262, %354, %cst_173 {dimension_numbers = #tpu.dot_dimension_numbers<[1], [0], [0], [1], [0, 0, 1, 1], [], []>} : vector<16x32xf32>, vector<32x16xf32>, vector<16x16xf32> -> vector<16x16xf32>
      %356 = arith.addf %352, %355 : vector<16x16xf32>
      %c3 = arith.constant 3 : index
      %c0_174 = arith.constant 0 : index
      %c0_175 = arith.constant 0 : index
      %357 = vector.load %arg25[%c3, %c0_174, %c0_175] : memref<4x32x16xf32, #tpu.memory_space<vmem>>, vector<1x32x16xf32>
      %358 = vector.shape_cast %357 : vector<1x32x16xf32> to vector<32x16xf32>
      %cst_176 = arith.constant dense<0.000000e+00> : vector<16x16xf32>
      %359 = tpu.matmul %288, %358, %cst_176 {dimension_numbers = #tpu.dot_dimension_numbers<[1], [0], [0], [1], [0, 0, 1, 1], [], []>} : vector<16x32xf32>, vector<32x16xf32>, vector<16x16xf32> -> vector<16x16xf32>
      %360 = arith.addf %356, %359 : vector<16x16xf32>
      %c0_177 = arith.constant 0 : index
      %c0_178 = arith.constant 0 : index
      %361 = vector.load %arg26[%c0_177, %c0_178] : memref<1x16xf32, #tpu.memory_space<vmem>>, vector<1x16xf32>
      %362 = vector.broadcast %361 : vector<1x16xf32> to vector<16x16xf32>
      %363 = arith.addf %360, %362 : vector<16x16xf32>
      %cst_179 = arith.constant 0.000000e+00 : f32
      %364 = vector.broadcast %cst_179 : f32 to vector<16x16xf32>
      %365 = arith.maximumf %363, %364 : vector<16x16xf32>
      %c4_i32 = arith.constant 4 : i32
      %366 = vector.broadcast %c4_i32 : i32 to vector<16x16xi32>
      %367 = arith.cmpi sle, %305, %366 : vector<16x16xi32>
      %cst_180 = arith.constant 0.000000e+00 : f32
      %368 = vector.broadcast %cst_180 : f32 to vector<16x16xf32>
      %369 = arith.select %367, %365, %368 : vector<16x16xi1>, vector<16x16xf32>
      %370 = vector.shape_cast %369 : vector<16x16xf32> to vector<2x8x16xf32>
      %cst_181 = arith.constant dense<0xFF800000> : vector<2x16xf32>
      %371 = vector.multi_reduction <maximumf>, %370, %cst_181 [1] : vector<2x8x16xf32> to vector<2x16xf32>
      %c0_182 = arith.constant 0 : index
      %c0_183 = arith.constant 0 : index
      %372 = vector.load %arg27[%c0_182, %c0_183] : memref<16x128xf32, #tpu.memory_space<vmem>>, vector<16x128xf32>
      %cst_184 = arith.constant dense<0.000000e+00> : vector<2x128xf32>
      %373 = tpu.matmul %323, %372, %cst_184 {dimension_numbers = #tpu.dot_dimension_numbers<[1], [0], [0], [1], [0, 0, 1, 1], [], []>} : vector<2x16xf32>, vector<16x128xf32>, vector<2x128xf32> -> vector<2x128xf32>
      %c0_185 = arith.constant 0 : index
      %c0_186 = arith.constant 0 : index
      %374 = vector.load %arg28[%c0_185, %c0_186] : memref<16x128xf32, #tpu.memory_space<vmem>>, vector<16x128xf32>
      %cst_187 = arith.constant dense<0.000000e+00> : vector<2x128xf32>
      %375 = tpu.matmul %345, %374, %cst_187 {dimension_numbers = #tpu.dot_dimension_numbers<[1], [0], [0], [1], [0, 0, 1, 1], [], []>} : vector<2x16xf32>, vector<16x128xf32>, vector<2x128xf32> -> vector<2x128xf32>
      %376 = arith.addf %373, %375 : vector<2x128xf32>
      %c0_188 = arith.constant 0 : index
      %c0_189 = arith.constant 0 : index
      %377 = vector.load %arg29[%c0_188, %c0_189] : memref<16x128xf32, #tpu.memory_space<vmem>>, vector<16x128xf32>
      %cst_190 = arith.constant dense<0.000000e+00> : vector<2x128xf32>
      %378 = tpu.matmul %371, %377, %cst_190 {dimension_numbers = #tpu.dot_dimension_numbers<[1], [0], [0], [1], [0, 0, 1, 1], [], []>} : vector<2x16xf32>, vector<16x128xf32>, vector<2x128xf32> -> vector<2x128xf32>
      %379 = arith.addf %376, %378 : vector<2x128xf32>
      %c0_191 = arith.constant 0 : index
      %c0_192 = arith.constant 0 : index
      %380 = vector.load %arg30[%c0_191, %c0_192] : memref<1x128xf32, #tpu.memory_space<vmem>>, vector<1x128xf32>
      %381 = vector.broadcast %380 : vector<1x128xf32> to vector<2x128xf32>
      %382 = arith.addf %379, %381 : vector<2x128xf32>
      %c0_193 = arith.constant 0 : index
      %c0_194 = arith.constant 0 : index
      %383 = vector.load %arg31[%c0_193, %c0_194] : memref<2x128xf32, #tpu.memory_space<vmem>>, vector<2x128xf32>
      tpu.vector_store %arg31[%c0_193, %c0_194], %382 {strides = array<i32>} : memref<2x128xf32, #tpu.memory_space<vmem>>, vector<2x128xf32>,
    } else {
    }
    return
  }
  func.func @transform_0(%arg0: i32) -> (i32, i32, i32) {
    %c0_i32 = arith.constant 0 : i32
    %c0_i32_0 = arith.constant 0 : i32
    %c0_i32_1 = arith.constant 0 : i32
    %c0_i32_2 = arith.constant 0 : i32
    return %c0_i32, %c0_i32_0, %c0_i32_1 : i32, i32, i32
  }
  func.func @transform_1(%arg0: i32) -> (i32, i32, i32) {
    %c0_i32 = arith.constant 0 : i32
    %c0_i32_0 = arith.constant 0 : i32
    %c0_i32_1 = arith.constant 0 : i32
    %c0_i32_2 = arith.constant 0 : i32
    return %c0_i32, %c0_i32_0, %c0_i32_1 : i32, i32, i32
  }
  func.func @transform_2(%arg0: i32) -> (i32, i32) {
    %c0_i32 = arith.constant 0 : i32
    %c0_i32_0 = arith.constant 0 : i32
    %c0_i32_1 = arith.constant 0 : i32
    return %c0_i32, %c0_i32_0 : i32, i32
  }
  func.func @transform_3(%arg0: i32) -> (i32, i32) {
    %c0_i32 = arith.constant 0 : i32
    %c0_i32_0 = arith.constant 0 : i32
    %c0_i32_1 = arith.constant 0 : i32
    return %c0_i32, %c0_i32_0 : i32, i32
  }
  func.func @transform_4(%arg0: i32) -> (i32, i32, i32) {
    %c0_i32 = arith.constant 0 : i32
    %c0_i32_0 = arith.constant 0 : i32
    %c0_i32_1 = arith.constant 0 : i32
    return %arg0, %c0_i32, %c0_i32_0 : i32, i32, i32
  }
  func.func @transform_5(%arg0: i32) -> (i32, i32, i32) {
    %c0_i32 = arith.constant 0 : i32
    %c0_i32_0 = arith.constant 0 : i32
    %c0_i32_1 = arith.constant 0 : i32
    return %arg0, %c0_i32, %c0_i32_0 : i32, i32, i32
  }
  func.func @transform_6(%arg0: i32) -> (i32, i32, i32) {
    %c0_i32 = arith.constant 0 : i32
    %c0_i32_0 = arith.constant 0 : i32
    %c0_i32_1 = arith.constant 0 : i32
    return %arg0, %c0_i32, %c0_i32_0 : i32, i32, i32
  }
  func.func @transform_7(%arg0: i32) -> (i32, i32, i32) {
    %c0_i32 = arith.constant 0 : i32
    %c0_i32_0 = arith.constant 0 : i32
    %c0_i32_1 = arith.constant 0 : i32
    return %arg0, %c0_i32, %c0_i32_0 : i32, i32, i32
  }
  func.func @transform_8(%arg0: i32) -> (i32, i32, i32) {
    %c0_i32 = arith.constant 0 : i32
    %c0_i32_0 = arith.constant 0 : i32
    %c0_i32_1 = arith.constant 0 : i32
    return %arg0, %c0_i32, %c0_i32_0 : i32, i32, i32
  }
  func.func @transform_9(%arg0: i32) -> (i32, i32, i32) {
    %c0_i32 = arith.constant 0 : i32
    %c0_i32_0 = arith.constant 0 : i32
    %c0_i32_1 = arith.constant 0 : i32
    return %arg0, %c0_i32, %c0_i32_0 : i32, i32, i32
  }
  func.func @transform_10(%arg0: i32) -> (i32, i32, i32) {
    %c0_i32 = arith.constant 0 : i32
    %c0_i32_0 = arith.constant 0 : i32
    %c0_i32_1 = arith.constant 0 : i32
    return %arg0, %c0_i32, %c0_i32_0 : i32, i32, i32
  }
  func.func @transform_11(%arg0: i32) -> (i32, i32, i32) {
    %c0_i32 = arith.constant 0 : i32
    %c0_i32_0 = arith.constant 0 : i32
    %c0_i32_1 = arith.constant 0 : i32
    return %arg0, %c0_i32, %c0_i32_0 : i32, i32, i32
  }
  func.func @transform_12(%arg0: i32) -> (i32, i32, i32) {
    %c0_i32 = arith.constant 0 : i32
    %c0_i32_0 = arith.constant 0 : i32
    %c0_i32_1 = arith.constant 0 : i32
    return %arg0, %c0_i32, %c0_i32_0 : i32, i32, i32
  }
  func.func @transform_13(%arg0: i32) -> (i32, i32, i32) {
    %c0_i32 = arith.constant 0 : i32
    %c0_i32_0 = arith.constant 0 : i32
    %c0_i32_1 = arith.constant 0 : i32
    return %arg0, %c0_i32, %c0_i32_0 : i32, i32, i32
  }
  func.func @transform_14(%arg0: i32) -> (i32, i32, i32) {
    %c0_i32 = arith.constant 0 : i32
    %c0_i32_0 = arith.constant 0 : i32
    %c0_i32_1 = arith.constant 0 : i32
    return %arg0, %c0_i32, %c0_i32_0 : i32, i32, i32
  }
  func.func @transform_15(%arg0: i32) -> (i32, i32, i32) {
    %c0_i32 = arith.constant 0 : i32
    %c0_i32_0 = arith.constant 0 : i32
    %c0_i32_1 = arith.constant 0 : i32
    return %arg0, %c0_i32, %c0_i32_0 : i32, i32, i32
  }
  func.func @transform_16(%arg0: i32) -> (i32, i32, i32) {
    %c0_i32 = arith.constant 0 : i32
    %c0_i32_0 = arith.constant 0 : i32
    %c0_i32_1 = arith.constant 0 : i32
    return %arg0, %c0_i32, %c0_i32_0 : i32, i32, i32
  }
  func.func @transform_17(%arg0: i32) -> (i32, i32, i32) {
    %c0_i32 = arith.constant 0 : i32
    %c0_i32_0 = arith.constant 0 : i32
    %c0_i32_1 = arith.constant 0 : i32
    return %arg0, %c0_i32, %c0_i32_0 : i32, i32, i32
  }
  func.func @transform_18(%arg0: i32) -> (i32, i32, i32) {
    %c0_i32 = arith.constant 0 : i32
    %c0_i32_0 = arith.constant 0 : i32
    %c0_i32_1 = arith.constant 0 : i32
    return %arg0, %c0_i32, %c0_i32_0 : i32, i32, i32
  }
  func.func @transform_19(%arg0: i32) -> (i32, i32, i32) {
    %c0_i32 = arith.constant 0 : i32
    %c0_i32_0 = arith.constant 0 : i32
    %c0_i32_1 = arith.constant 0 : i32
    return %arg0, %c0_i32, %c0_i32_0 : i32, i32, i32
  }
  func.func @transform_20(%arg0: i32) -> (i32, i32, i32) {
    %c0_i32 = arith.constant 0 : i32
    %c0_i32_0 = arith.constant 0 : i32
    %c0_i32_1 = arith.constant 0 : i32
    %c0_i32_2 = arith.constant 0 : i32
    return %c0_i32, %c0_i32_0, %c0_i32_1 : i32, i32, i32
  }
  func.func @transform_21(%arg0: i32) -> (i32, i32) {
    %c0_i32 = arith.constant 0 : i32
    %c0_i32_0 = arith.constant 0 : i32
    %c0_i32_1 = arith.constant 0 : i32
    return %c0_i32, %c0_i32_0 : i32, i32
  }
  func.func @transform_22(%arg0: i32) -> (i32, i32, i32) {
    %c0_i32 = arith.constant 0 : i32
    %c0_i32_0 = arith.constant 0 : i32
    %c0_i32_1 = arith.constant 0 : i32
    %c0_i32_2 = arith.constant 0 : i32
    return %c0_i32, %c0_i32_0, %c0_i32_1 : i32, i32, i32
  }
  func.func @transform_23(%arg0: i32) -> (i32, i32) {
    %c0_i32 = arith.constant 0 : i32
    %c0_i32_0 = arith.constant 0 : i32
    %c0_i32_1 = arith.constant 0 : i32
    return %c0_i32, %c0_i32_0 : i32, i32
  }
  func.func @transform_24(%arg0: i32) -> (i32, i32, i32) {
    %c0_i32 = arith.constant 0 : i32
    %c0_i32_0 = arith.constant 0 : i32
    %c0_i32_1 = arith.constant 0 : i32
    %c0_i32_2 = arith.constant 0 : i32
    return %c0_i32, %c0_i32_0, %c0_i32_1 : i32, i32, i32
  }
  func.func @transform_25(%arg0: i32) -> (i32, i32) {
    %c0_i32 = arith.constant 0 : i32
    %c0_i32_0 = arith.constant 0 : i32
    %c0_i32_1 = arith.constant 0 : i32
    return %c0_i32, %c0_i32_0 : i32, i32
  }
  func.func @transform_26(%arg0: i32) -> (i32, i32) {
    %c0_i32 = arith.constant 0 : i32
    %c0_i32_0 = arith.constant 0 : i32
    %c0_i32_1 = arith.constant 0 : i32
    return %c0_i32, %c0_i32_0 : i32, i32
  }
  func.func @transform_27(%arg0: i32) -> (i32, i32) {
    %c0_i32 = arith.constant 0 : i32
    %c0_i32_0 = arith.constant 0 : i32
    %c0_i32_1 = arith.constant 0 : i32
    return %c0_i32, %c0_i32_0 : i32, i32
  }
  func.func @transform_28(%arg0: i32) -> (i32, i32) {
    %c0_i32 = arith.constant 0 : i32
    %c0_i32_0 = arith.constant 0 : i32
    %c0_i32_1 = arith.constant 0 : i32
    return %c0_i32, %c0_i32_0 : i32, i32
  }
  func.func @transform_29(%arg0: i32) -> (i32, i32) {
    %c0_i32 = arith.constant 0 : i32
    %c0_i32_0 = arith.constant 0 : i32
    %c0_i32_1 = arith.constant 0 : i32
    return %c0_i32, %c0_i32_0 : i32, i32
  }
  func.func @transform_30(%arg0: i32) -> (i32, i32) {
    %c0_i32 = arith.constant 0 : i32
    %c0_i32_0 = arith.constant 0 : i32
    %c0_i32_1 = arith.constant 0 : i32
    return %c0_i32, %c0_i32_0 : i32, i32
  }
}

</mosaic_0001>

<llo_original>
// kernel: tpu_custom_call.1
$region0: #{tpu_custom_call.1}
  #allocation0 [shape = 'u32[]', space=smem, size = 0x4, offset = 0x4, fixed_abs, tag = 'smem constant byte address 0x4 - core index']
  #allocation1 [shape = 'u32[72,128]{1,0:T(1,128)}', space=vmem, size = 0x9000, scoped, tag = 'internal scratch']
  #allocation2 [shape = 'f32[16,32]{1,0:T(8,128)}', space=vmem, size = 0x2000, scoped, tag = 'scratch operand']
  %s0 = inlined_call_operand.smem [shape: u32[31], index: -1, kind: input, shape index: {}]
  %s1 = sld [smem:[%s0]]
  %s2 = scalar_lea.smem %s0, 1
  %s3 = sld [smem:[%s2]]
  %s4 = scalar_lea.smem %s0, 2
  %s5 = sld [smem:[%s4]]
  %s6 = scalar_lea.smem %s0, 3
  %s7 = sld [smem:[%s6]]
  %s8 = scalar_lea.smem %s0, 4
  %s9 = sld [smem:[%s8]]
  %s10 = scalar_lea.smem %s0, 5
  %s11 = sld [smem:[%s10]]
  %s12 = scalar_lea.smem %s0, 6
  %s13 = sld [smem:[%s12]]
  %s14 = scalar_lea.smem %s0, 7
  %s15 = sld [smem:[%s14]]
  %s16 = scalar_lea.smem %s0, 8
  %s17 = sld [smem:[%s16]]
  %s18 = scalar_lea.smem %s0, 9
  %s19 = sld [smem:[%s18]]
  %s20 = scalar_lea.smem %s0, 10
  %s21 = sld [smem:[%s20]]
  %s22 = scalar_lea.smem %s0, 11
  %s23 = sld [smem:[%s22]]
  %s24 = scalar_lea.smem %s0, 12
  %s25 = sld [smem:[%s24]]
  %s26 = scalar_lea.smem %s0, 13
  %s27 = sld [smem:[%s26]]
  %s28 = scalar_lea.smem %s0, 14
  %s29 = sld [smem:[%s28]]
  %s30 = scalar_lea.smem %s0, 15
  %s31 = sld [smem:[%s30]]
  %s32 = scalar_lea.smem %s0, 16
  %s33 = sld [smem:[%s32]]
  %s34 = scalar_lea.smem %s0, 17
  %s35 = sld [smem:[%s34]]
  %s36 = scalar_lea.smem %s0, 18
  %s37 = sld [smem:[%s36]]
  %s38 = scalar_lea.smem %s0, 19
  %s39 = sld [smem:[%s38]]
  %s40 = scalar_lea.smem %s0, 20
  %s41 = sld [smem:[%s40]]
  %s42 = scalar_lea.smem %s0, 21
  %s43 = sld [smem:[%s42]]
  %s44 = scalar_lea.smem %s0, 22
  %s45 = sld [smem:[%s44]]
  %s46 = scalar_lea.smem %s0, 23
  %s47 = sld [smem:[%s46]]
  %s48 = scalar_lea.smem %s0, 24
  %s49 = sld [smem:[%s48]]
  %s50 = scalar_lea.smem %s0, 25
  %s51 = sld [smem:[%s50]]
  %s52 = scalar_lea.smem %s0, 26
  %s53 = sld [smem:[%s52]]
  %s54 = scalar_lea.smem %s0, 27
  %s55 = sld [smem:[%s54]]
  %s56 = scalar_lea.smem %s0, 28
  %s57 = sld [smem:[%s56]]
  %s58 = scalar_lea.smem %s0, 29
  %s59 = sld [smem:[%s58]]
  %s60 = scalar_lea.smem %s0, 30
  %s61 = sld [smem:[%s60]]
  %s62 = sld [smem:[#allocation0]]
  $region161: #{tpu_custom_call.1} parent=0
    _
  %s64 = ssub.s32 1, %s62
  %s65 = scalar_select 0, %s64, %s62
  $region1: #{tpu_custom_call.1} parent=0
    #allocation3 [shape = 'u8[1024]{0}', space=vmem, size = 0x400, scoped, tag = 'output window, operand 0, single buffered']
    #allocation4 [shape = 's32[2]{0}', space=sflag, size = 0x8, scoped, tag = 'scoped memory for tpu_custom_call.1']
    %66 = vsyncpa [#allocation4], 0
    loop: start=0, step=1, limit=4
    $region2: #{tpu_custom_call.1} parent=1 // loop_pre_header
      _
    $region3: #{tpu_custom_call.1} parent=1 // loop_header
      %s68 = sphi 0, %s72
      %p69 = scmp.ge.s32.totalorder %s68, 4
      %s76 = sphi 0, %s76
      %s78 = sphi 0, %s76
      %s79 = sphi 0, %s78
      %s93 = sphi 0, %s79
      %s97 = sphi 0, %s97
      %s99 = sphi 0, %s97
      %s100 = sphi 0, %s99
      %s114 = sphi 0, %s100
      %s118 = sphi 0, %s118
      %s120 = sphi 0, %s118
      %s121 = sphi 0, %s120
      %s135 = sphi 0, %s121
      %s139 = sphi 0, %s139
      %s141 = sphi 0, %s139
      %s142 = sphi 0, %s141
      %s156 = sphi 0, %s142
      %s162 = sphi 0, %s164
      %s165 = sphi 0, %s162
      %s166 = sphi 0, %s165
      %s182 = sphi 0, %s166
      %s188 = sphi 0, %s190
      %s191 = sphi 0, %s188
      %s192 = sphi 0, %s191
      %s208 = sphi 0, %s192
      %s214 = sphi 0, %s216
      %s217 = sphi 0, %s214
      %s218 = sphi 0, %s217
      %s234 = sphi 0, %s218
      %s240 = sphi 0, %s242
      %s243 = sphi 0, %s240
      %s244 = sphi 0, %s243
      %s260 = sphi 0, %s244
      %s266 = sphi 0, %s268
      %s269 = sphi 0, %s266
      %s270 = sphi 0, %s269
      %s286 = sphi 0, %s270
      %s292 = sphi 0, %s294
      %s295 = sphi 0, %s292
      %s296 = sphi 0, %s295
      %s312 = sphi 0, %s296
      %s318 = sphi 0, %s320
      %s321 = sphi 0, %s318
      %s322 = sphi 0, %s321
      %s338 = sphi 0, %s322
      %s344 = sphi 0, %s346
      %s347 = sphi 0, %s344
      %s348 = sphi 0, %s347
      %s364 = sphi 0, %s348
      %s370 = sphi 0, %s372
      %s373 = sphi 0, %s370
      %s374 = sphi 0, %s373
      %s390 = sphi 0, %s374
      %s396 = sphi 0, %s398
      %s399 = sphi 0, %s396
      %s400 = sphi 0, %s399
      %s416 = sphi 0, %s400
      %s422 = sphi 0, %s424
      %s425 = sphi 0, %s422
      %s426 = sphi 0, %s425
      %s442 = sphi 0, %s426
      %s448 = sphi 0, %s450
      %s451 = sphi 0, %s448
      %s452 = sphi 0, %s451
      %s468 = sphi 0, %s452
      %s474 = sphi 0, %s476
      %s477 = sphi 0, %s474
      %s478 = sphi 0, %s477
      %s494 = sphi 0, %s478
      %s500 = sphi 0, %s502
      %s503 = sphi 0, %s500
      %s504 = sphi 0, %s503
      %s520 = sphi 0, %s504
      %s526 = sphi 0, %s528
      %s529 = sphi 0, %s526
      %s530 = sphi 0, %s529
      %s546 = sphi 0, %s530
      %s552 = sphi 0, %s554
      %s555 = sphi 0, %s552
      %s556 = sphi 0, %s555
      %s572 = sphi 0, %s556
      %s576 = sphi 0, %s576
      %s578 = sphi 0, %s576
      %s579 = sphi 0, %s578
      %s593 = sphi 0, %s579
      %s597 = sphi 0, %s597
      %s599 = sphi 0, %s597
      %s600 = sphi 0, %s599
      %s614 = sphi 0, %s600
      %s618 = sphi 0, %s618
      %s620 = sphi 0, %s618
      %s621 = sphi 0, %s620
      %s635 = sphi 0, %s621
      %s639 = sphi 0, %s639
      %s641 = sphi 0, %s639
      %s642 = sphi 0, %s641
      %s656 = sphi 0, %s642
      %s660 = sphi 0, %s660
      %s662 = sphi 0, %s660
      %s663 = sphi 0, %s662
      %s677 = sphi 0, %s663
      %s681 = sphi 0, %s681
      %s683 = sphi 0, %s681
      %s684 = sphi 0, %s683
      %s698 = sphi 0, %s684
      %s702 = sphi 0, %s702
      %s704 = sphi 0, %s702
      %s705 = sphi 0, %s704
      %s719 = sphi 0, %s705
      %s723 = sphi 0, %s723
      %s725 = sphi 0, %s723
      %s726 = sphi 0, %s725
      %s740 = sphi 0, %s726
      %s744 = sphi 0, %s744
      %s746 = sphi 0, %s744
      %s747 = sphi 0, %s746
      %s761 = sphi 0, %s747
      %s765 = sphi 0, %s765
      %s767 = sphi 0, %s765
      %s768 = sphi 0, %s767
      %s782 = sphi 0, %s768
      %s786 = sphi 0, %s786
      %s788 = sphi 0, %s786
      %s789 = sphi 0, %s788
      %s803 = sphi 0, %s789
    $region4: #{tpu_custom_call.1} parent=1 // loop_header_branch
      %71 = sbr.rel (%p69) target = $region8
    $region5: #{tpu_custom_call.1} parent=1 // loop_body
      %s73 = ssub.s32 %s68, 1
      %s74 = ssub.s32 %s68, 2
      %s75 = sadd.s32 %s68, 1
      %s77 = sadd.s32 %s76, 1
      %p80 = scmp.eq.s32.totalorder %s68, 1
      %p81 = scmp.ne.s32.totalorder %s76, %s78
      %p82 = scmp.eq.s32.totalorder %s68, 0
      %p83 = por %p81, %p82
      %p84 = scmp.ne.s32.totalorder %s76, %s78
      %p85 = scmp.eq.s32.totalorder %s73, 1
      %p86 = por %p84, %p85
      %p87 = scmp.ne.s32.totalorder %s78, %s79
      %p88 = scmp.eq.s32.totalorder %s73, 0
      %p89 = por %p87, %p88
      %p90 = scmp.ne.s32.totalorder %s78, %s79
      %p91 = scmp.eq.s32.totalorder %s74, 1
      %p92 = por %p90, %p91
      %p94 = scmp.ne.s32.totalorder %s79, %s93
      %p95 = scmp.eq.s32.totalorder %s74, 0
      %p96 = por %p94, %p95
      %s98 = sadd.s32 %s97, 1
      %p101 = scmp.eq.s32.totalorder %s68, 1
      %p102 = scmp.ne.s32.totalorder %s97, %s99
      %p103 = scmp.eq.s32.totalorder %s68, 0
      %p104 = por %p102, %p103
      %p105 = scmp.ne.s32.totalorder %s97, %s99
      %p106 = scmp.eq.s32.totalorder %s73, 1
      %p107 = por %p105, %p106
      %p108 = scmp.ne.s32.totalorder %s99, %s100
      %p109 = scmp.eq.s32.totalorder %s73, 0
      %p110 = por %p108, %p109
      %p111 = scmp.ne.s32.totalorder %s99, %s100
      %p112 = scmp.eq.s32.totalorder %s74, 1
      %p113 = por %p111, %p112
      %p115 = scmp.ne.s32.totalorder %s100, %s114
      %p116 = scmp.eq.s32.totalorder %s74, 0
      %p117 = por %p115, %p116
      %s119 = sadd.s32 %s118, 1
      %p122 = scmp.eq.s32.totalorder %s68, 1
      %p123 = scmp.ne.s32.totalorder %s118, %s120
      %p124 = scmp.eq.s32.totalorder %s68, 0
      %p125 = por %p123, %p124
      %p126 = scmp.ne.s32.totalorder %s118, %s120
      %p127 = scmp.eq.s32.totalorder %s73, 1
      %p128 = por %p126, %p127
      %p129 = scmp.ne.s32.totalorder %s120, %s121
      %p130 = scmp.eq.s32.totalorder %s73, 0
      %p131 = por %p129, %p130
      %p132 = scmp.ne.s32.totalorder %s120, %s121
      %p133 = scmp.eq.s32.totalorder %s74, 1
      %p134 = por %p132, %p133
      %p136 = scmp.ne.s32.totalorder %s121, %s135
      %p137 = scmp.eq.s32.totalorder %s74, 0
      %p138 = por %p136, %p137
      %s140 = sadd.s32 %s139, 1
      %p143 = scmp.eq.s32.totalorder %s68, 1
      %p144 = scmp.ne.s32.totalorder %s139, %s141
      %p145 = scmp.eq.s32.totalorder %s68, 0
      %p146 = por %p144, %p145
      %p147 = scmp.ne.s32.totalorder %s139, %s141
      %p148 = scmp.eq.s32.totalorder %s73, 1
      %p149 = por %p147, %p148
      %p150 = scmp.ne.s32.totalorder %s141, %s142
      %p151 = scmp.eq.s32.totalorder %s73, 0
      %p152 = por %p150, %p151
      %p153 = scmp.ne.s32.totalorder %s141, %s142
      %p154 = scmp.eq.s32.totalorder %s74, 1
      %p155 = por %p153, %p154
      %p157 = scmp.ne.s32.totalorder %s142, %s156
      %p158 = scmp.eq.s32.totalorder %s74, 0
      %p159 = por %p157, %p158
      %s160 = ssub.s32 %s68, %s75
      %p161 = scmp.eq.s32.totalorder %s160, 0
      %s163 = sadd.s32 %s162, 1
      %s164 = scalar_select %p161, %s162, %s163
      %p167 = pneg %p161
      %p168 = scmp.eq.s32.totalorder %s68, 1
      %p169 = por %p167, %p168
      %p170 = scmp.ne.s32.totalorder %s162, %s165
      %p171 = scmp.eq.s32.totalorder %s68, 0
      %p172 = por %p170, %p171
      %p173 = scmp.ne.s32.totalorder %s162, %s165
      %p174 = scmp.eq.s32.totalorder %s73, 1
      %p175 = por %p173, %p174
      %p176 = scmp.ne.s32.totalorder %s165, %s166
      %p177 = scmp.eq.s32.totalorder %s73, 0
      %p178 = por %p176, %p177
      %p179 = scmp.ne.s32.totalorder %s165, %s166
      %p180 = scmp.eq.s32.totalorder %s74, 1
      %p181 = por %p179, %p180
      %p183 = scmp.ne.s32.totalorder %s166, %s182
      %p184 = scmp.eq.s32.totalorder %s74, 0
      %p185 = por %p183, %p184
      %s186 = ssub.s32 %s68, %s75
      %p187 = scmp.eq.s32.totalorder %s186, 0
      %s189 = sadd.s32 %s188, 1
      %s190 = scalar_select %p187, %s188, %s189
      %p193 = pneg %p187
      %p194 = scmp.eq.s32.totalorder %s68, 1
      %p195 = por %p193, %p194
      %p196 = scmp.ne.s32.totalorder %s188, %s191
      %p197 = scmp.eq.s32.totalorder %s68, 0
      %p198 = por %p196, %p197
      %p199 = scmp.ne.s32.totalorder %s188, %s191
      %p200 = scmp.eq.s32.totalorder %s73, 1
      %p201 = por %p199, %p200
      %p202 = scmp.ne.s32.totalorder %s191, %s192
      %p203 = scmp.eq.s32.totalorder %s73, 0
      %p204 = por %p202, %p203
      %p205 = scmp.ne.s32.totalorder %s191, %s192
      %p206 = scmp.eq.s32.totalorder %s74, 1
      %p207 = por %p205, %p206
      %p209 = scmp.ne.s32.totalorder %s192, %s208
      %p210 = scmp.eq.s32.totalorder %s74, 0
      %p211 = por %p209, %p210
      %s212 = ssub.s32 %s68, %s75
      %p213 = scmp.eq.s32.totalorder %s212, 0
      %s215 = sadd.s32 %s214, 1
      %s216 = scalar_select %p213, %s214, %s215
      %p219 = pneg %p213
      %p220 = scmp.eq.s32.totalorder %s68, 1
      %p221 = por %p219, %p220
      %p222 = scmp.ne.s32.totalorder %s214, %s217
      %p223 = scmp.eq.s32.totalorder %s68, 0
      %p224 = por %p222, %p223
      %p225 = scmp.ne.s32.totalorder %s214, %s217
      %p226 = scmp.eq.s32.totalorder %s73, 1
      %p227 = por %p225, %p226
      %p228 = scmp.ne.s32.totalorder %s217, %s218
      %p229 = scmp.eq.s32.totalorder %s73, 0
      %p230 = por %p228, %p229
      %p231 = scmp.ne.s32.totalorder %s217, %s218
      %p232 = scmp.eq.s32.totalorder %s74, 1
      %p233 = por %p231, %p232
      %p235 = scmp.ne.s32.totalorder %s218, %s234
      %p236 = scmp.eq.s32.totalorder %s74, 0
      %p237 = por %p235, %p236
      %s238 = ssub.s32 %s68, %s75
      %p239 = scmp.eq.s32.totalorder %s238, 0
      %s241 = sadd.s32 %s240, 1
      %s242 = scalar_select %p239, %s240, %s241
      %p245 = pneg %p239
      %p246 = scmp.eq.s32.totalorder %s68, 1
      %p247 = por %p245, %p246
      %p248 = scmp.ne.s32.totalorder %s240, %s243
      %p249 = scmp.eq.s32.totalorder %s68, 0
      %p250 = por %p248, %p249
      %p251 = scmp.ne.s32.totalorder %s240, %s243
      %p252 = scmp.eq.s32.totalorder %s73, 1
      %p253 = por %p251, %p252
      %p254 = scmp.ne.s32.totalorder %s243, %s244
      %p255 = scmp.eq.s32.totalorder %s73, 0
      %p256 = por %p254, %p255
      %p257 = scmp.ne.s32.totalorder %s243, %s244
      %p258 = scmp.eq.s32.totalorder %s74, 1
      %p259 = por %p257, %p258
      %p261 = scmp.ne.s32.totalorder %s244, %s260
      %p262 = scmp.eq.s32.totalorder %s74, 0
      %p263 = por %p261, %p262
      %s264 = ssub.s32 %s68, %s75
      %p265 = scmp.eq.s32.totalorder %s264, 0
      %s267 = sadd.s32 %s266, 1
      %s268 = scalar_select %p265, %s266, %s267
      %p271 = pneg %p265
      %p272 = scmp.eq.s32.totalorder %s68, 1
      %p273 = por %p271, %p272
      %p274 = scmp.ne.s32.totalorder %s266, %s269
      %p275 = scmp.eq.s32.totalorder %s68, 0
      %p276 = por %p274, %p275
      %p277 = scmp.ne.s32.totalorder %s266, %s269
      %p278 = scmp.eq.s32.totalorder %s73, 1
      %p279 = por %p277, %p278
      %p280 = scmp.ne.s32.totalorder %s269, %s270
      %p281 = scmp.eq.s32.totalorder %s73, 0
      %p282 = por %p280, %p281
      %p283 = scmp.ne.s32.totalorder %s269, %s270
      %p284 = scmp.eq.s32.totalorder %s74, 1
      %p285 = por %p283, %p284
      %p287 = scmp.ne.s32.totalorder %s270, %s286
      %p288 = scmp.eq.s32.totalorder %s74, 0
      %p289 = por %p287, %p288
      %s290 = ssub.s32 %s68, %s75
      %p291 = scmp.eq.s32.totalorder %s290, 0
      %s293 = sadd.s32 %s292, 1
      %s294 = scalar_select %p291, %s292, %s293
      %p297 = pneg %p291
      %p298 = scmp.eq.s32.totalorder %s68, 1
      %p299 = por %p297, %p298
      %p300 = scmp.ne.s32.totalorder %s292, %s295
      %p301 = scmp.eq.s32.totalorder %s68, 0
      %p302 = por %p300, %p301
      %p303 = scmp.ne.s32.totalorder %s292, %s295
      %p304 = scmp.eq.s32.totalorder %s73, 1
      %p305 = por %p303, %p304
      %p306 = scmp.ne.s32.totalorder %s295, %s296
      %p307 = scmp.eq.s32.totalorder %s73, 0
      %p308 = por %p306, %p307
      %p309 = scmp.ne.s32.totalorder %s295, %s296
      %p310 = scmp.eq.s32.totalorder %s74, 1
      %p311 = por %p309, %p310
      %p313 = scmp.ne.s32.totalorder %s296, %s312
      %p314 = scmp.eq.s32.totalorder %s74, 0
      %p315 = por %p313, %p314
      %s316 = ssub.s32 %s68, %s75
      %p317 = scmp.eq.s32.totalorder %s316, 0
      %s319 = sadd.s32 %s318, 1
      %s320 = scalar_select %p317, %s318, %s319
      %p323 = pneg %p317
      %p324 = scmp.eq.s32.totalorder %s68, 1
      %p325 = por %p323, %p324
      %p326 = scmp.ne.s32.totalorder %s318, %s321
      %p327 = scmp.eq.s32.totalorder %s68, 0
      %p328 = por %p326, %p327
      %p329 = scmp.ne.s32.totalorder %s318, %s321
      %p330 = scmp.eq.s32.totalorder %s73, 1
      %p331 = por %p329, %p330
      %p332 = scmp.ne.s32.totalorder %s321, %s322
      %p333 = scmp.eq.s32.totalorder %s73, 0
      %p334 = por %p332, %p333
      %p335 = scmp.ne.s32.totalorder %s321, %s322
      %p336 = scmp.eq.s32.totalorder %s74, 1
      %p337 = por %p335, %p336
      %p339 = scmp.ne.s32.totalorder %s322, %s338
      %p340 = scmp.eq.s32.totalorder %s74, 0
      %p341 = por %p339, %p340
      %s342 = ssub.s32 %s68, %s75
      %p343 = scmp.eq.s32.totalorder %s342, 0
      %s345 = sadd.s32 %s344, 1
      %s346 = scalar_select %p343, %s344, %s345
      %p349 = pneg %p343
      %p350 = scmp.eq.s32.totalorder %s68, 1
      %p351 = por %p349, %p350
      %p352 = scmp.ne.s32.totalorder %s344, %s347
      %p353 = scmp.eq.s32.totalorder %s68, 0
      %p354 = por %p352, %p353
      %p355 = scmp.ne.s32.totalorder %s344, %s347
      %p356 = scmp.eq.s32.totalorder %s73, 1
      %p357 = por %p355, %p356
      %p358 = scmp.ne.s32.totalorder %s347, %s348
      %p359 = scmp.eq.s32.totalorder %s73, 0
      %p360 = por %p358, %p359
      %p361 = scmp.ne.s32.totalorder %s347, %s348
      %p362 = scmp.eq.s32.totalorder %s74, 1
      %p363 = por %p361, %p362
      %p365 = scmp.ne.s32.totalorder %s348, %s364
      %p366 = scmp.eq.s32.totalorder %s74, 0
      %p367 = por %p365, %p366
      %s368 = ssub.s32 %s68, %s75
      %p369 = scmp.eq.s32.totalorder %s368, 0
      %s371 = sadd.s32 %s370, 1
      %s372 = scalar_select %p369, %s370, %s371
      %p375 = pneg %p369
      %p376 = scmp.eq.s32.totalorder %s68, 1
      %p377 = por %p375, %p376
      %p378 = scmp.ne.s32.totalorder %s370, %s373
      %p379 = scmp.eq.s32.totalorder %s68, 0
      %p380 = por %p378, %p379
      %p381 = scmp.ne.s32.totalorder %s370, %s373
      %p382 = scmp.eq.s32.totalorder %s73, 1
      %p383 = por %p381, %p382
      %p384 = scmp.ne.s32.totalorder %s373, %s374
      %p385 = scmp.eq.s32.totalorder %s73, 0
      %p386 = por %p384, %p385
      %p387 = scmp.ne.s32.totalorder %s373, %s374
      %p388 = scmp.eq.s32.totalorder %s74, 1
      %p389 = por %p387, %p388
      %p391 = scmp.ne.s32.totalorder %s374, %s390
      %p392 = scmp.eq.s32.totalorder %s74, 0
      %p393 = por %p391, %p392
      %s394 = ssub.s32 %s68, %s75
      %p395 = scmp.eq.s32.totalorder %s394, 0
      %s397 = sadd.s32 %s396, 1
      %s398 = scalar_select %p395, %s396, %s397
      %p401 = pneg %p395
      %p402 = scmp.eq.s32.totalorder %s68, 1
      %p403 = por %p401, %p402
      %p404 = scmp.ne.s32.totalorder %s396, %s399
      %p405 = scmp.eq.s32.totalorder %s68, 0
      %p406 = por %p404, %p405
      %p407 = scmp.ne.s32.totalorder %s396, %s399
      %p408 = scmp.eq.s32.totalorder %s73, 1
      %p409 = por %p407, %p408
      %p410 = scmp.ne.s32.totalorder %s399, %s400
      %p411 = scmp.eq.s32.totalorder %s73, 0
      %p412 = por %p410, %p411
      %p413 = scmp.ne.s32.totalorder %s399, %s400
      %p414 = scmp.eq.s32.totalorder %s74, 1
      %p415 = por %p413, %p414
      %p417 = scmp.ne.s32.totalorder %s400, %s416
      %p418 = scmp.eq.s32.totalorder %s74, 0
      %p419 = por %p417, %p418
      %s420 = ssub.s32 %s68, %s75
      %p421 = scmp.eq.s32.totalorder %s420, 0
      %s423 = sadd.s32 %s422, 1
      %s424 = scalar_select %p421, %s422, %s423
      %p427 = pneg %p421
      %p428 = scmp.eq.s32.totalorder %s68, 1
      %p429 = por %p427, %p428
      %p430 = scmp.ne.s32.totalorder %s422, %s425
      %p431 = scmp.eq.s32.totalorder %s68, 0
      %p432 = por %p430, %p431
      %p433 = scmp.ne.s32.totalorder %s422, %s425
      %p434 = scmp.eq.s32.totalorder %s73, 1
      %p435 = por %p433, %p434
      %p436 = scmp.ne.s32.totalorder %s425, %s426
      %p437 = scmp.eq.s32.totalorder %s73, 0
      %p438 = por %p436, %p437
      %p439 = scmp.ne.s32.totalorder %s425, %s426
      %p440 = scmp.eq.s32.totalorder %s74, 1
      %p441 = por %p439, %p440
      %p443 = scmp.ne.s32.totalorder %s426, %s442
      %p444 = scmp.eq.s32.totalorder %s74, 0
      %p445 = por %p443, %p444
      %s446 = ssub.s32 %s68, %s75
      %p447 = scmp.eq.s32.totalorder %s446, 0
      %s449 = sadd.s32 %s448, 1
      %s450 = scalar_select %p447, %s448, %s449
      %p453 = pneg %p447
      %p454 = scmp.eq.s32.totalorder %s68, 1
      %p455 = por %p453, %p454
      %p456 = scmp.ne.s32.totalorder %s448, %s451
      %p457 = scmp.eq.s32.totalorder %s68, 0
      %p458 = por %p456, %p457
      %p459 = scmp.ne.s32.totalorder %s448, %s451
      %p460 = scmp.eq.s32.totalorder %s73, 1
      %p461 = por %p459, %p460
      %p462 = scmp.ne.s32.totalorder %s451, %s452
      %p463 = scmp.eq.s32.totalorder %s73, 0
      %p464 = por %p462, %p463
      %p465 = scmp.ne.s32.totalorder %s451, %s452
      %p466 = scmp.eq.s32.totalorder %s74, 1
      %p467 = por %p465, %p466
      %p469 = scmp.ne.s32.totalorder %s452, %s468
      %p470 = scmp.eq.s32.totalorder %s74, 0
      %p471 = por %p469, %p470
      %s472 = ssub.s32 %s68, %s75
      %p473 = scmp.eq.s32.totalorder %s472, 0
      %s475 = sadd.s32 %s474, 1
      %s476 = scalar_select %p473, %s474, %s475
      %p479 = pneg %p473
      %p480 = scmp.eq.s32.totalorder %s68, 1
      %p481 = por %p479, %p480
      %p482 = scmp.ne.s32.totalorder %s474, %s477
      %p483 = scmp.eq.s32.totalorder %s68, 0
      %p484 = por %p482, %p483
      %p485 = scmp.ne.s32.totalorder %s474, %s477
      %p486 = scmp.eq.s32.totalorder %s73, 1
      %p487 = por %p485, %p486
      %p488 = scmp.ne.s32.totalorder %s477, %s478
      %p489 = scmp.eq.s32.totalorder %s73, 0
      %p490 = por %p488, %p489
      %p491 = scmp.ne.s32.totalorder %s477, %s478
      %p492 = scmp.eq.s32.totalorder %s74, 1
      %p493 = por %p491, %p492
      %p495 = scmp.ne.s32.totalorder %s478, %s494
      %p496 = scmp.eq.s32.totalorder %s74, 0
      %p497 = por %p495, %p496
      %s498 = ssub.s32 %s68, %s75
      %p499 = scmp.eq.s32.totalorder %s498, 0
      %s501 = sadd.s32 %s500, 1
      %s502 = scalar_select %p499, %s500, %s501
      %p505 = pneg %p499
      %p506 = scmp.eq.s32.totalorder %s68, 1
      %p507 = por %p505, %p506
      %p508 = scmp.ne.s32.totalorder %s500, %s503
      %p509 = scmp.eq.s32.totalorder %s68, 0
      %p510 = por %p508, %p509
      %p511 = scmp.ne.s32.totalorder %s500, %s503
      %p512 = scmp.eq.s32.totalorder %s73, 1
      %p513 = por %p511, %p512
      %p514 = scmp.ne.s32.totalorder %s503, %s504
      %p515 = scmp.eq.s32.totalorder %s73, 0
      %p516 = por %p514, %p515
      %p517 = scmp.ne.s32.totalorder %s503, %s504
      %p518 = scmp.eq.s32.totalorder %s74, 1
      %p519 = por %p517, %p518
      %p521 = scmp.ne.s32.totalorder %s504, %s520
      %p522 = scmp.eq.s32.totalorder %s74, 0
      %p523 = por %p521, %p522
      %s524 = ssub.s32 %s68, %s75
      %p525 = scmp.eq.s32.totalorder %s524, 0
      %s527 = sadd.s32 %s526, 1
      %s528 = scalar_select %p525, %s526, %s527
      %p531 = pneg %p525
      %p532 = scmp.eq.s32.totalorder %s68, 1
      %p533 = por %p531, %p532
      %p534 = scmp.ne.s32.totalorder %s526, %s529
      %p535 = scmp.eq.s32.totalorder %s68, 0
      %p536 = por %p534, %p535
      %p537 = scmp.ne.s32.totalorder %s526, %s529
      %p538 = scmp.eq.s32.totalorder %s73, 1
      %p539 = por %p537, %p538
      %p540 = scmp.ne.s32.totalorder %s529, %s530
      %p541 = scmp.eq.s32.totalorder %s73, 0
      %p542 = por %p540, %p541
      %p543 = scmp.ne.s32.totalorder %s529, %s530
      %p544 = scmp.eq.s32.totalorder %s74, 1
      %p545 = por %p543, %p544
      %p547 = scmp.ne.s32.totalorder %s530, %s546
      %p548 = scmp.eq.s32.totalorder %s74, 0
      %p549 = por %p547, %p548
      %s550 = ssub.s32 %s68, %s75
      %p551 = scmp.eq.s32.totalorder %s550, 0
      %s553 = sadd.s32 %s552, 1
      %s554 = scalar_select %p551, %s552, %s553
      %p557 = pneg %p551
      %p558 = scmp.eq.s32.totalorder %s68, 1
      %p559 = por %p557, %p558
      %p560 = scmp.ne.s32.totalorder %s552, %s555
      %p561 = scmp.eq.s32.totalorder %s68, 0
      %p562 = por %p560, %p561
      %p563 = scmp.ne.s32.totalorder %s552, %s555
      %p564 = scmp.eq.s32.totalorder %s73, 1
      %p565 = por %p563, %p564
      %p566 = scmp.ne.s32.totalorder %s555, %s556
      %p567 = scmp.eq.s32.totalorder %s73, 0
      %p568 = por %p566, %p567
      %p569 = scmp.ne.s32.totalorder %s555, %s556
      %p570 = scmp.eq.s32.totalorder %s74, 1
      %p571 = por %p569, %p570
      %p573 = scmp.ne.s32.totalorder %s556, %s572
      %p574 = scmp.eq.s32.totalorder %s74, 0
      %p575 = por %p573, %p574
      %s577 = sadd.s32 %s576, 1
      %p580 = scmp.eq.s32.totalorder %s68, 1
      %p581 = scmp.ne.s32.totalorder %s576, %s578
      %p582 = scmp.eq.s32.totalorder %s68, 0
      %p583 = por %p581, %p582
      %p584 = scmp.ne.s32.totalorder %s576, %s578
      %p585 = scmp.eq.s32.totalorder %s73, 1
      %p586 = por %p584, %p585
      %p587 = scmp.ne.s32.totalorder %s578, %s579
      %p588 = scmp.eq.s32.totalorder %s73, 0
      %p589 = por %p587, %p588
      %p590 = scmp.ne.s32.totalorder %s578, %s579
      %p591 = scmp.eq.s32.totalorder %s74, 1
      %p592 = por %p590, %p591
      %p594 = scmp.ne.s32.totalorder %s579, %s593
      %p595 = scmp.eq.s32.totalorder %s74, 0
      %p596 = por %p594, %p595
      %s598 = sadd.s32 %s597, 1
      %p601 = scmp.eq.s32.totalorder %s68, 1
      %p602 = scmp.ne.s32.totalorder %s597, %s599
      %p603 = scmp.eq.s32.totalorder %s68, 0
      %p604 = por %p602, %p603
      %p605 = scmp.ne.s32.totalorder %s597, %s599
      %p606 = scmp.eq.s32.totalorder %s73, 1
      %p607 = por %p605, %p606
      %p608 = scmp.ne.s32.totalorder %s599, %s600
      %p609 = scmp.eq.s32.totalorder %s73, 0
      %p610 = por %p608, %p609
      %p611 = scmp.ne.s32.totalorder %s599, %s600
      %p612 = scmp.eq.s32.totalorder %s74, 1
      %p613 = por %p611, %p612
      %p615 = scmp.ne.s32.totalorder %s600, %s614
      %p616 = scmp.eq.s32.totalorder %s74, 0
      %p617 = por %p615, %p616
      %s619 = sadd.s32 %s618, 1
      %p622 = scmp.eq.s32.totalorder %s68, 1
      %p623 = scmp.ne.s32.totalorder %s618, %s620
      %p624 = scmp.eq.s32.totalorder %s68, 0
      %p625 = por %p623, %p624
      %p626 = scmp.ne.s32.totalorder %s618, %s620
      %p627 = scmp.eq.s32.totalorder %s73, 1
      %p628 = por %p626, %p627
      %p629 = scmp.ne.s32.totalorder %s620, %s621
      %p630 = scmp.eq.s32.totalorder %s73, 0
      %p631 = por %p629, %p630
      %p632 = scmp.ne.s32.totalorder %s620, %s621
      %p633 = scmp.eq.s32.totalorder %s74, 1
      %p634 = por %p632, %p633
      %p636 = scmp.ne.s32.totalorder %s621, %s635
      %p637 = scmp.eq.s32.totalorder %s74, 0
      %p638 = por %p636, %p637
      %s640 = sadd.s32 %s639, 1
      %p643 = scmp.eq.s32.totalorder %s68, 1
      %p644 = scmp.ne.s32.totalorder %s639, %s641
      %p645 = scmp.eq.s32.totalorder %s68, 0
      %p646 = por %p644, %p645
      %p647 = scmp.ne.s32.totalorder %s639, %s641
      %p648 = scmp.eq.s32.totalorder %s73, 1
      %p649 = por %p647, %p648
      %p650 = scmp.ne.s32.totalorder %s641, %s642
      %p651 = scmp.eq.s32.totalorder %s73, 0
      %p652 = por %p650, %p651
      %p653 = scmp.ne.s32.totalorder %s641, %s642
      %p654 = scmp.eq.s32.totalorder %s74, 1
      %p655 = por %p653, %p654
      %p657 = scmp.ne.s32.totalorder %s642, %s656
      %p658 = scmp.eq.s32.totalorder %s74, 0
      %p659 = por %p657, %p658
      %s661 = sadd.s32 %s660, 1
      %p664 = scmp.eq.s32.totalorder %s68, 1
      %p665 = scmp.ne.s32.totalorder %s660, %s662
      %p666 = scmp.eq.s32.totalorder %s68, 0
      %p667 = por %p665, %p666
      %p668 = scmp.ne.s32.totalorder %s660, %s662
      %p669 = scmp.eq.s32.totalorder %s73, 1
      %p670 = por %p668, %p669
      %p671 = scmp.ne.s32.totalorder %s662, %s663
      %p672 = scmp.eq.s32.totalorder %s73, 0
      %p673 = por %p671, %p672
      %p674 = scmp.ne.s32.totalorder %s662, %s663
      %p675 = scmp.eq.s32.totalorder %s74, 1
      %p676 = por %p674, %p675
      %p678 = scmp.ne.s32.totalorder %s663, %s677
      %p679 = scmp.eq.s32.totalorder %s74, 0
      %p680 = por %p678, %p679
      %s682 = sadd.s32 %s681, 1
      %p685 = scmp.eq.s32.totalorder %s68, 1
      %p686 = scmp.ne.s32.totalorder %s681, %s683
      %p687 = scmp.eq.s32.totalorder %s68, 0
      %p688 = por %p686, %p687
      %p689 = scmp.ne.s32.totalorder %s681, %s683
      %p690 = scmp.eq.s32.totalorder %s73, 1
      %p691 = por %p689, %p690
      %p692 = scmp.ne.s32.totalorder %s683, %s684
      %p693 = scmp.eq.s32.totalorder %s73, 0
      %p694 = por %p692, %p693
      %p695 = scmp.ne.s32.totalorder %s683, %s684
      %p696 = scmp.eq.s32.totalorder %s74, 1
      %p697 = por %p695, %p696
      %p699 = scmp.ne.s32.totalorder %s684, %s698
      %p700 = scmp.eq.s32.totalorder %s74, 0
      %p701 = por %p699, %p700
      %s703 = sadd.s32 %s702, 1
      %p706 = scmp.eq.s32.totalorder %s68, 1
      %p707 = scmp.ne.s32.totalorder %s702, %s704
      %p708 = scmp.eq.s32.totalorder %s68, 0
      %p709 = por %p707, %p708
      %p710 = scmp.ne.s32.totalorder %s702, %s704
      %p711 = scmp.eq.s32.totalorder %s73, 1
      %p712 = por %p710, %p711
      %p713 = scmp.ne.s32.totalorder %s704, %s705
      %p714 = scmp.eq.s32.totalorder %s73, 0
      %p715 = por %p713, %p714
      %p716 = scmp.ne.s32.totalorder %s704, %s705
      %p717 = scmp.eq.s32.totalorder %s74, 1
      %p718 = por %p716, %p717
      %p720 = scmp.ne.s32.totalorder %s705, %s719
      %p721 = scmp.eq.s32.totalorder %s74, 0
      %p722 = por %p720, %p721
      %s724 = sadd.s32 %s723, 1
      %p727 = scmp.eq.s32.totalorder %s68, 1
      %p728 = scmp.ne.s32.totalorder %s723, %s725
      %p729 = scmp.eq.s32.totalorder %s68, 0
      %p730 = por %p728, %p729
      %p731 = scmp.ne.s32.totalorder %s723, %s725
      %p732 = scmp.eq.s32.totalorder %s73, 1
      %p733 = por %p731, %p732
      %p734 = scmp.ne.s32.totalorder %s725, %s726
      %p735 = scmp.eq.s32.totalorder %s73, 0
      %p736 = por %p734, %p735
      %p737 = scmp.ne.s32.totalorder %s725, %s726
      %p738 = scmp.eq.s32.totalorder %s74, 1
      %p739 = por %p737, %p738
      %p741 = scmp.ne.s32.totalorder %s726, %s740
      %p742 = scmp.eq.s32.totalorder %s74, 0
      %p743 = por %p741, %p742
      %s745 = sadd.s32 %s744, 1
      %p748 = scmp.eq.s32.totalorder %s68, 1
      %p749 = scmp.ne.s32.totalorder %s744, %s746
      %p750 = scmp.eq.s32.totalorder %s68, 0
      %p751 = por %p749, %p750
      %p752 = scmp.ne.s32.totalorder %s744, %s746
      %p753 = scmp.eq.s32.totalorder %s73, 1
      %p754 = por %p752, %p753
      %p755 = scmp.ne.s32.totalorder %s746, %s747
      %p756 = scmp.eq.s32.totalorder %s73, 0
      %p757 = por %p755, %p756
      %p758 = scmp.ne.s32.totalorder %s746, %s747
      %p759 = scmp.eq.s32.totalorder %s74, 1
      %p760 = por %p758, %p759
      %p762 = scmp.ne.s32.totalorder %s747, %s761
      %p763 = scmp.eq.s32.totalorder %s74, 0
      %p764 = por %p762, %p763
      %s766 = sadd.s32 %s765, 1
      %p769 = scmp.eq.s32.totalorder %s68, 1
      %p770 = scmp.ne.s32.totalorder %s765, %s767
      %p771 = scmp.eq.s32.totalorder %s68, 0
      %p772 = por %p770, %p771
      %p773 = scmp.ne.s32.totalorder %s765, %s767
      %p774 = scmp.eq.s32.totalorder %s73, 1
      %p775 = por %p773, %p774
      %p776 = scmp.ne.s32.totalorder %s767, %s768
      %p777 = scmp.eq.s32.totalorder %s73, 0
      %p778 = por %p776, %p777
      %p779 = scmp.ne.s32.totalorder %s767, %s768
      %p780 = scmp.eq.s32.totalorder %s74, 1
      %p781 = por %p779, %p780
      %p783 = scmp.ne.s32.totalorder %s768, %s782
      %p784 = scmp.eq.s32.totalorder %s74, 0
      %p785 = por %p783, %p784
      %s787 = sadd.s32 %s786, 1
      %p790 = scmp.eq.s32.totalorder %s68, 1
      %p791 = scmp.ne.s32.totalorder %s786, %s788
      %p792 = scmp.eq.s32.totalorder %s68, 0
      %p793 = por %p791, %p792
      %p794 = scmp.ne.s32.totalorder %s786, %s788
      %p795 = scmp.eq.s32.totalorder %s73, 1
      %p796 = por %p794, %p795
      %p797 = scmp.ne.s32.totalorder %s788, %s789
      %p798 = scmp.eq.s32.totalorder %s73, 0
      %p799 = por %p797, %p798
      %p800 = scmp.ne.s32.totalorder %s788, %s789
      %p801 = scmp.eq.s32.totalorder %s74, 1
      %p802 = por %p800, %p801
      %p804 = scmp.ne.s32.totalorder %s789, %s803
      %p805 = scmp.eq.s32.totalorder %s74, 0
      %p806 = por %p804, %p805
      %p807 = scmp.le.s32.totalorder 1, %s68
      %p808 = scmp.lt.s32.totalorder %s68, 3
      %p809 = pnand %p807, %p808
      %p810 = pneg %p809
      // Predicated region
      $region9: #{tpu_custom_call.1} parent=5 // pred_check
        _
      $region10: #{tpu_custom_call.1} parent=5 // pred_check_branch
        %812 = sbr.rel (%p809) target = $region12
      $region11: #{tpu_custom_call.1} parent=5 // pred_region
        %s813 = ssub.s32 %s68, 1
        // Predicated region
        $region13: #{tpu_custom_call.1} parent=11 // pred_check
          %p814 = pneg %p89
        $region14: #{tpu_custom_call.1} parent=11 // pred_check_branch
          %816 = sbr.rel (%p814) target = $region16
        $region15: #{tpu_custom_call.1} parent=11 // pred_region
          _
        $region16: #{tpu_custom_call.1} parent=11 // pred_fallthru
          _
        // Predicated region
        $region17: #{tpu_custom_call.1} parent=11 // pred_check
          %p817 = pneg %p110
        $region18: #{tpu_custom_call.1} parent=11 // pred_check_branch
          %819 = sbr.rel (%p817) target = $region20
        $region19: #{tpu_custom_call.1} parent=11 // pred_region
          _
        $region20: #{tpu_custom_call.1} parent=11 // pred_fallthru
          _
        // Predicated region
        $region21: #{tpu_custom_call.1} parent=11 // pred_check
          %p820 = pneg %p131
        $region22: #{tpu_custom_call.1} parent=11 // pred_check_branch
          %822 = sbr.rel (%p820) target = $region24
        $region23: #{tpu_custom_call.1} parent=11 // pred_region
          _
        $region24: #{tpu_custom_call.1} parent=11 // pred_fallthru
          _
        // Predicated region
        $region25: #{tpu_custom_call.1} parent=11 // pred_check
          %p823 = pneg %p152
        $region26: #{tpu_custom_call.1} parent=11 // pred_check_branch
          %825 = sbr.rel (%p823) target = $region28
        $region27: #{tpu_custom_call.1} parent=11 // pred_region
          _
        $region28: #{tpu_custom_call.1} parent=11 // pred_fallthru
          _
        // Predicated region
        $region29: #{tpu_custom_call.1} parent=11 // pred_check
          %p826 = pneg %p589
        $region30: #{tpu_custom_call.1} parent=11 // pred_check_branch
          %828 = sbr.rel (%p826) target = $region32
        $region31: #{tpu_custom_call.1} parent=11 // pred_region
          _
        $region32: #{tpu_custom_call.1} parent=11 // pred_fallthru
          _
        // Predicated region
        $region33: #{tpu_custom_call.1} parent=11 // pred_check
          %p829 = pneg %p610
        $region34: #{tpu_custom_call.1} parent=11 // pred_check_branch
          %831 = sbr.rel (%p829) target = $region36
        $region35: #{tpu_custom_call.1} parent=11 // pred_region
          _
        $region36: #{tpu_custom_call.1} parent=11 // pred_fallthru
          _
        // Predicated region
        $region37: #{tpu_custom_call.1} parent=11 // pred_check
          %p832 = pneg %p631
        $region38: #{tpu_custom_call.1} parent=11 // pred_check_branch
          %834 = sbr.rel (%p832) target = $region40
        $region39: #{tpu_custom_call.1} parent=11 // pred_region
          _
        $region40: #{tpu_custom_call.1} parent=11 // pred_fallthru
          _
        // Predicated region
        $region41: #{tpu_custom_call.1} parent=11 // pred_check
          %p835 = pneg %p652
        $region42: #{tpu_custom_call.1} parent=11 // pred_check_branch
          %837 = sbr.rel (%p835) target = $region44
        $region43: #{tpu_custom_call.1} parent=11 // pred_region
          _
        $region44: #{tpu_custom_call.1} parent=11 // pred_fallthru
          _
        // Predicated region
        $region45: #{tpu_custom_call.1} parent=11 // pred_check
          %p838 = pneg %p673
        $region46: #{tpu_custom_call.1} parent=11 // pred_check_branch
          %840 = sbr.rel (%p838) target = $region48
        $region47: #{tpu_custom_call.1} parent=11 // pred_region
          _
        $region48: #{tpu_custom_call.1} parent=11 // pred_fallthru
          _
        // Predicated region
        $region49: #{tpu_custom_call.1} parent=11 // pred_check
          %p841 = pneg %p694
        $region50: #{tpu_custom_call.1} parent=11 // pred_check_branch
          %843 = sbr.rel (%p841) target = $region52
        $region51: #{tpu_custom_call.1} parent=11 // pred_region
          _
        $region52: #{tpu_custom_call.1} parent=11 // pred_fallthru
          _
        // Predicated region
        $region53: #{tpu_custom_call.1} parent=11 // pred_check
          %p844 = pneg %p715
        $region54: #{tpu_custom_call.1} parent=11 // pred_check_branch
          %846 = sbr.rel (%p844) target = $region56
        $region55: #{tpu_custom_call.1} parent=11 // pred_region
          _
        $region56: #{tpu_custom_call.1} parent=11 // pred_fallthru
          _
        // Predicated region
        $region57: #{tpu_custom_call.1} parent=11 // pred_check
          %p847 = pneg %p736
        $region58: #{tpu_custom_call.1} parent=11 // pred_check_branch
          %849 = sbr.rel (%p847) target = $region60
        $region59: #{tpu_custom_call.1} parent=11 // pred_region
          _
        $region60: #{tpu_custom_call.1} parent=11 // pred_fallthru
          _
        // Predicated region
        $region61: #{tpu_custom_call.1} parent=11 // pred_check
          %p850 = pneg %p757
        $region62: #{tpu_custom_call.1} parent=11 // pred_check_branch
          %852 = sbr.rel (%p850) target = $region64
        $region63: #{tpu_custom_call.1} parent=11 // pred_region
          _
        $region64: #{tpu_custom_call.1} parent=11 // pred_fallthru
          _
        // Predicated region
        $region65: #{tpu_custom_call.1} parent=11 // pred_check
          %p853 = pneg %p778
        $region66: #{tpu_custom_call.1} parent=11 // pred_check_branch
          %855 = sbr.rel (%p853) target = $region68
        $region67: #{tpu_custom_call.1} parent=11 // pred_region
          _
        $region68: #{tpu_custom_call.1} parent=11 // pred_fallthru
          _
      $region12: #{tpu_custom_call.1} parent=5 // pred_fallthru
        _
      %p856 = scmp.lt.s32.totalorder %s68, 2
      // Predicated region
      $region69: #{tpu_custom_call.1} parent=5 // pred_check
        %p857 = pneg %p856
      $region70: #{tpu_custom_call.1} parent=5 // pred_check_branch
        %859 = sbr.rel (%p857) target = $region72
      $region71: #{tpu_custom_call.1} parent=5 // pred_region
        // Predicated region
        $region73: #{tpu_custom_call.1} parent=71 // pred_check
          %p860 = pneg %p172
        $region74: #{tpu_custom_call.1} parent=71 // pred_check_branch
          %862 = sbr.rel (%p860) target = $region76
        $region75: #{tpu_custom_call.1} parent=71 // pred_region
          %p863 = scmp.lt.s32.totalorder %s68, 1
          %s864 = scalar_select %p863, %s68, 1
          %s865 = smul.addr %s864, 4
          %s866 = smul.addr %s865, 8
          %s867 = scalar_lea.vmem %s9, %s866
        $region76: #{tpu_custom_call.1} parent=71 // pred_fallthru
          _
        // Predicated region
        $region77: #{tpu_custom_call.1} parent=71 // pred_check
          %p868 = pneg %p198
        $region78: #{tpu_custom_call.1} parent=71 // pred_check_branch
          %870 = sbr.rel (%p868) target = $region80
        $region79: #{tpu_custom_call.1} parent=71 // pred_region
          %p871 = scmp.lt.s32.totalorder %s68, 1
          %s872 = scalar_select %p871, %s68, 1
          %s873 = scalar_lea.vmem %s11, %s872
        $region80: #{tpu_custom_call.1} parent=71 // pred_fallthru
          _
        // Predicated region
        $region81: #{tpu_custom_call.1} parent=71 // pred_check
          %p874 = pneg %p224
        $region82: #{tpu_custom_call.1} parent=71 // pred_check_branch
          %876 = sbr.rel (%p874) target = $region84
        $region83: #{tpu_custom_call.1} parent=71 // pred_region
          %p877 = scmp.lt.s32.totalorder %s68, 1
          %s878 = scalar_select %p877, %s68, 1
          %s879 = smul.addr %s878, 4
          %s880 = smul.addr %s879, 8
          %s881 = scalar_lea.vmem %s13, %s880
        $region84: #{tpu_custom_call.1} parent=71 // pred_fallthru
          _
        // Predicated region
        $region85: #{tpu_custom_call.1} parent=71 // pred_check
          %p882 = pneg %p250
        $region86: #{tpu_custom_call.1} parent=71 // pred_check_branch
          %884 = sbr.rel (%p882) target = $region88
        $region87: #{tpu_custom_call.1} parent=71 // pred_region
          %p885 = scmp.lt.s32.totalorder %s68, 1
          %s886 = scalar_select %p885, %s68, 1
          %s887 = scalar_lea.vmem %s15, %s886
        $region88: #{tpu_custom_call.1} parent=71 // pred_fallthru
          _
        // Predicated region
        $region89: #{tpu_custom_call.1} parent=71 // pred_check
          %p888 = pneg %p276
        $region90: #{tpu_custom_call.1} parent=71 // pred_check_branch
          %890 = sbr.rel (%p888) target = $region92
        $region91: #{tpu_custom_call.1} parent=71 // pred_region
          %p891 = scmp.lt.s32.totalorder %s68, 1
          %s892 = scalar_select %p891, %s68, 1
          %s893 = smul.addr %s892, 4
          %s894 = smul.addr %s893, 8
          %s895 = scalar_lea.vmem %s17, %s894
        $region92: #{tpu_custom_call.1} parent=71 // pred_fallthru
          _
        // Predicated region
        $region93: #{tpu_custom_call.1} parent=71 // pred_check
          %p896 = pneg %p302
        $region94: #{tpu_custom_call.1} parent=71 // pred_check_branch
          %898 = sbr.rel (%p896) target = $region96
        $region95: #{tpu_custom_call.1} parent=71 // pred_region
          %p899 = scmp.lt.s32.totalorder %s68, 1
          %s900 = scalar_select %p899, %s68, 1
          %s901 = scalar_lea.vmem %s19, %s900
        $region96: #{tpu_custom_call.1} parent=71 // pred_fallthru
          _
        // Predicated region
        $region97: #{tpu_custom_call.1} parent=71 // pred_check
          %p902 = pneg %p328
        $region98: #{tpu_custom_call.1} parent=71 // pred_check_branch
          %904 = sbr.rel (%p902) target = $region100
        $region99: #{tpu_custom_call.1} parent=71 // pred_region
          %p905 = scmp.lt.s32.totalorder %s68, 1
          %s906 = scalar_select %p905, %s68, 1
          %s907 = smul.addr %s906, 4
          %s908 = smul.addr %s907, 8
          %s909 = scalar_lea.vmem %s21, %s908
        $region100: #{tpu_custom_call.1} parent=71 // pred_fallthru
          _
        // Predicated region
        $region101: #{tpu_custom_call.1} parent=71 // pred_check
          %p910 = pneg %p354
        $region102: #{tpu_custom_call.1} parent=71 // pred_check_branch
          %912 = sbr.rel (%p910) target = $region104
        $region103: #{tpu_custom_call.1} parent=71 // pred_region
          %p913 = scmp.lt.s32.totalorder %s68, 1
          %s914 = scalar_select %p913, %s68, 1
          %s915 = scalar_lea.vmem %s23, %s914
        $region104: #{tpu_custom_call.1} parent=71 // pred_fallthru
          _
        // Predicated region
        $region105: #{tpu_custom_call.1} parent=71 // pred_check
          %p916 = pneg %p380
        $region106: #{tpu_custom_call.1} parent=71 // pred_check_branch
          %918 = sbr.rel (%p916) target = $region108
        $region107: #{tpu_custom_call.1} parent=71 // pred_region
          %p919 = scmp.lt.s32.totalorder %s68, 1
          %s920 = scalar_select %p919, %s68, 1
          %s921 = scalar_lea.vmem %s25, %s920
        $region108: #{tpu_custom_call.1} parent=71 // pred_fallthru
          _
        // Predicated region
        $region109: #{tpu_custom_call.1} parent=71 // pred_check
          %p922 = pneg %p406
        $region110: #{tpu_custom_call.1} parent=71 // pred_check_branch
          %924 = sbr.rel (%p922) target = $region112
        $region111: #{tpu_custom_call.1} parent=71 // pred_region
          %p925 = scmp.lt.s32.totalorder %s68, 1
          %s926 = scalar_select %p925, %s68, 1
          %s927 = scalar_lea.vmem %s27, %s926
        $region112: #{tpu_custom_call.1} parent=71 // pred_fallthru
          _
        // Predicated region
        $region113: #{tpu_custom_call.1} parent=71 // pred_check
          %p928 = pneg %p432
        $region114: #{tpu_custom_call.1} parent=71 // pred_check_branch
          %930 = sbr.rel (%p928) target = $region116
        $region115: #{tpu_custom_call.1} parent=71 // pred_region
          %p931 = scmp.lt.s32.totalorder %s68, 1
          %s932 = scalar_select %p931, %s68, 1
          %s933 = smul.addr %s932, 4
          %s934 = smul.addr %s933, 8
          %s935 = scalar_lea.vmem %s29, %s934
        $region116: #{tpu_custom_call.1} parent=71 // pred_fallthru
          _
        // Predicated region
        $region117: #{tpu_custom_call.1} parent=71 // pred_check
          %p936 = pneg %p458
        $region118: #{tpu_custom_call.1} parent=71 // pred_check_branch
          %938 = sbr.rel (%p936) target = $region120
        $region119: #{tpu_custom_call.1} parent=71 // pred_region
          %p939 = scmp.lt.s32.totalorder %s68, 1
          %s940 = scalar_select %p939, %s68, 1
          %s941 = scalar_lea.vmem %s31, %s940
        $region120: #{tpu_custom_call.1} parent=71 // pred_fallthru
          _
        // Predicated region
        $region121: #{tpu_custom_call.1} parent=71 // pred_check
          %p942 = pneg %p484
        $region122: #{tpu_custom_call.1} parent=71 // pred_check_branch
          %944 = sbr.rel (%p942) target = $region124
        $region123: #{tpu_custom_call.1} parent=71 // pred_region
          %p945 = scmp.lt.s32.totalorder %s68, 1
          %s946 = scalar_select %p945, %s68, 1
          %s947 = smul.addr %s946, 8
          %s948 = smul.addr %s947, 8
          %s949 = scalar_lea.vmem %s33, %s948
        $region124: #{tpu_custom_call.1} parent=71 // pred_fallthru
          _
        // Predicated region
        $region125: #{tpu_custom_call.1} parent=71 // pred_check
          %p950 = pneg %p510
        $region126: #{tpu_custom_call.1} parent=71 // pred_check_branch
          %952 = sbr.rel (%p950) target = $region128
        $region127: #{tpu_custom_call.1} parent=71 // pred_region
          %p953 = scmp.lt.s32.totalorder %s68, 1
          %s954 = scalar_select %p953, %s68, 1
          %s955 = scalar_lea.vmem %s35, %s954
        $region128: #{tpu_custom_call.1} parent=71 // pred_fallthru
          _
        // Predicated region
        $region129: #{tpu_custom_call.1} parent=71 // pred_check
          %p956 = pneg %p536
        $region130: #{tpu_custom_call.1} parent=71 // pred_check_branch
          %958 = sbr.rel (%p956) target = $region132
        $region131: #{tpu_custom_call.1} parent=71 // pred_region
          %p959 = scmp.lt.s32.totalorder %s68, 1
          %s960 = scalar_select %p959, %s68, 1
          %s961 = scalar_lea.vmem %s37, %s960
        $region132: #{tpu_custom_call.1} parent=71 // pred_fallthru
          _
        // Predicated region
        $region133: #{tpu_custom_call.1} parent=71 // pred_check
          %p962 = pneg %p562
        $region134: #{tpu_custom_call.1} parent=71 // pred_check_branch
          %964 = sbr.rel (%p962) target = $region136
        $region135: #{tpu_custom_call.1} parent=71 // pred_region
          %p965 = scmp.lt.s32.totalorder %s68, 1
          %s966 = scalar_select %p965, %s68, 1
          %s967 = scalar_lea.vmem %s39, %s966
        $region136: #{tpu_custom_call.1} parent=71 // pred_fallthru
          _
      $region72: #{tpu_custom_call.1} parent=5 // pred_fallthru
        _
      %p968 = scmp.le.s32.totalorder 1, %s68
      %p969 = scmp.lt.s32.totalorder %s68, 3
      %p970 = pnand %p968, %p969
      %p971 = pneg %p970
      // Predicated region
      $region137: #{tpu_custom_call.1} parent=5 // pred_check
        _
      $region138: #{tpu_custom_call.1} parent=5 // pred_check_branch
        %973 = sbr.rel (%p970) target = $region140
      $region139: #{tpu_custom_call.1} parent=5 // pred_region
        %s974 = ssub.s32 %s68, 1
        %p975 = pneg %p89
        %p976 = pneg %p86
        %p977 = pneg %p110
        %p978 = pneg %p107
        %p979 = pneg %p131
        %p980 = pneg %p128
        %p981 = pneg %p152
        %p982 = pneg %p149
        %p983 = scmp.lt.s32.totalorder %s73, 1
        %s984 = scalar_select %p983, %s73, 1
        %s985 = smul.addr %s984, 4
        %s986 = smul.addr %s985, 8
        %s987 = scalar_lea.vmem %s9, %s986
        %p988 = pneg %p178
        %p989 = pneg %p175
        %p990 = scmp.lt.s32.totalorder %s73, 1
        %s991 = scalar_select %p990, %s73, 1
        %s992 = scalar_lea.vmem %s11, %s991
        %p993 = pneg %p204
        %p994 = pneg %p201
        %p995 = scmp.lt.s32.totalorder %s73, 1
        %s996 = scalar_select %p995, %s73, 1
        %s997 = smul.addr %s996, 4
        %s998 = smul.addr %s997, 8
        %s999 = scalar_lea.vmem %s13, %s998
        %p1000 = pneg %p230
        %p1001 = pneg %p227
        %p1002 = scmp.lt.s32.totalorder %s73, 1
        %s1003 = scalar_select %p1002, %s73, 1
        %s1004 = scalar_lea.vmem %s15, %s1003
        %p1005 = pneg %p256
        %p1006 = pneg %p253
        %p1007 = scmp.lt.s32.totalorder %s73, 1
        %s1008 = scalar_select %p1007, %s73, 1
        %s1009 = smul.addr %s1008, 4
        %s1010 = smul.addr %s1009, 8
        %s1011 = scalar_lea.vmem %s17, %s1010
        %p1012 = pneg %p282
        %p1013 = pneg %p279
        %p1014 = scmp.lt.s32.totalorder %s73, 1
        %s1015 = scalar_select %p1014, %s73, 1
        %s1016 = scalar_lea.vmem %s19, %s1015
        %p1017 = pneg %p308
        %p1018 = pneg %p305
        %p1019 = scmp.lt.s32.totalorder %s73, 1
        %s1020 = scalar_select %p1019, %s73, 1
        %s1021 = smul.addr %s1020, 4
        %s1022 = smul.addr %s1021, 8
        %s1023 = scalar_lea.vmem %s21, %s1022
        %p1024 = pneg %p334
        %p1025 = pneg %p331
        %p1026 = scmp.lt.s32.totalorder %s73, 1
        %s1027 = scalar_select %p1026, %s73, 1
        %s1028 = scalar_lea.vmem %s23, %s1027
        %p1029 = pneg %p360
        %p1030 = pneg %p357
        %p1031 = scmp.lt.s32.totalorder %s73, 1
        %s1032 = scalar_select %p1031, %s73, 1
        %s1033 = scalar_lea.vmem %s25, %s1032
        %p1034 = pneg %p386
        %p1035 = pneg %p383
        %p1036 = scmp.lt.s32.totalorder %s73, 1
        %s1037 = scalar_select %p1036, %s73, 1
        %s1038 = scalar_lea.vmem %s27, %s1037
        %p1039 = pneg %p412
        %p1040 = pneg %p409
        %p1041 = scmp.lt.s32.totalorder %s73, 1
        %s1042 = scalar_select %p1041, %s73, 1
        %s1043 = smul.addr %s1042, 4
        %s1044 = smul.addr %s1043, 8
        %s1045 = scalar_lea.vmem %s29, %s1044
        %p1046 = pneg %p438
        %p1047 = pneg %p435
        %p1048 = scmp.lt.s32.totalorder %s73, 1
        %s1049 = scalar_select %p1048, %s73, 1
        %s1050 = scalar_lea.vmem %s31, %s1049
        %p1051 = pneg %p464
        %p1052 = pneg %p461
        %p1053 = scmp.lt.s32.totalorder %s73, 1
        %s1054 = scalar_select %p1053, %s73, 1
        %s1055 = smul.addr %s1054, 8
        %s1056 = smul.addr %s1055, 8
        %s1057 = scalar_lea.vmem %s33, %s1056
        %p1058 = pneg %p490
        %p1059 = pneg %p487
        %p1060 = scmp.lt.s32.totalorder %s73, 1
        %s1061 = scalar_select %p1060, %s73, 1
        %s1062 = scalar_lea.vmem %s35, %s1061
        %p1063 = pneg %p516
        %p1064 = pneg %p513
        %p1065 = scmp.lt.s32.totalorder %s73, 1
        %s1066 = scalar_select %p1065, %s73, 1
        %s1067 = scalar_lea.vmem %s37, %s1066
        %p1068 = pneg %p542
        %p1069 = pneg %p539
        %p1070 = scmp.lt.s32.totalorder %s73, 1
        %s1071 = scalar_select %p1070, %s73, 1
        %s1072 = scalar_lea.vmem %s39, %s1071
        %p1073 = pneg %p568
        %p1074 = pneg %p565
        %p1075 = pneg %p589
        %p1076 = pneg %p586
        %p1077 = pneg %p610
        %p1078 = pneg %p607
        %p1079 = pneg %p631
        %p1080 = pneg %p628
        %p1081 = pneg %p652
        %p1082 = pneg %p649
        %p1083 = pneg %p673
        %p1084 = pneg %p670
        %p1085 = pneg %p694
        %p1086 = pneg %p691
        %p1087 = pneg %p715
        %p1088 = pneg %p712
        %p1089 = pneg %p736
        %p1090 = pneg %p733
        %p1091 = pneg %p757
        %p1092 = pneg %p754
        %p1093 = pneg %p778
        %p1094 = pneg %p775
        %p1095 = pneg %p799
        %p1096 = pneg %p796
        %p1097 = scmp.lt.s32.totalorder %s73, 1
        %s1098 = scalar_select %p1097, %s73, 1
        %s1099 = smul.addr %s1098, 4
        %s1100 = smul.addr %s1099, 8
        %s1101 = scalar_lea.vmem %s9, %s1100
        %p1102 = scmp.lt.s32.totalorder %s73, 1
        %s1103 = scalar_select %p1102, %s73, 1
        %s1104 = scalar_lea.vmem %s11, %s1103
        %p1105 = scmp.lt.s32.totalorder %s73, 1
        %s1106 = scalar_select %p1105, %s73, 1
        %s1107 = smul.addr %s1106, 4
        %s1108 = smul.addr %s1107, 8
        %s1109 = scalar_lea.vmem %s13, %s1108
        %p1110 = scmp.lt.s32.totalorder %s73, 1
        %s1111 = scalar_select %p1110, %s73, 1
        %s1112 = scalar_lea.vmem %s15, %s1111
        %p1113 = scmp.lt.s32.totalorder %s73, 1
        %s1114 = scalar_select %p1113, %s73, 1
        %s1115 = smul.addr %s1114, 4
        %s1116 = smul.addr %s1115, 8
        %s1117 = scalar_lea.vmem %s17, %s1116
        %p1118 = scmp.lt.s32.totalorder %s73, 1
        %s1119 = scalar_select %p1118, %s73, 1
        %s1120 = scalar_lea.vmem %s19, %s1119
        %p1121 = scmp.lt.s32.totalorder %s73, 1
        %s1122 = scalar_select %p1121, %s73, 1
        %s1123 = smul.addr %s1122, 4
        %s1124 = smul.addr %s1123, 8
        %s1125 = scalar_lea.vmem %s21, %s1124
        %p1126 = scmp.lt.s32.totalorder %s73, 1
        %s1127 = scalar_select %p1126, %s73, 1
        %s1128 = scalar_lea.vmem %s23, %s1127
        %p1129 = scmp.lt.s32.totalorder %s73, 1
        %s1130 = scalar_select %p1129, %s73, 1
        %s1131 = scalar_lea.vmem %s25, %s1130
        %p1132 = scmp.lt.s32.totalorder %s73, 1
        %s1133 = scalar_select %p1132, %s73, 1
        %s1134 = scalar_lea.vmem %s27, %s1133
        %p1135 = scmp.lt.s32.totalorder %s73, 1
        %s1136 = scalar_select %p1135, %s73, 1
        %s1137 = smul.addr %s1136, 4
        %s1138 = smul.addr %s1137, 8
        %s1139 = scalar_lea.vmem %s29, %s1138
        %p1140 = scmp.lt.s32.totalorder %s73, 1
        %s1141 = scalar_select %p1140, %s73, 1
        %s1142 = scalar_lea.vmem %s31, %s1141
        %p1143 = scmp.lt.s32.totalorder %s73, 1
        %s1144 = scalar_select %p1143, %s73, 1
        %s1145 = smul.addr %s1144, 8
        %s1146 = smul.addr %s1145, 8
        %s1147 = scalar_lea.vmem %s33, %s1146
        %p1148 = scmp.lt.s32.totalorder %s73, 1
        %s1149 = scalar_select %p1148, %s73, 1
        %s1150 = scalar_lea.vmem %s35, %s1149
        %p1151 = scmp.lt.s32.totalorder %s73, 1
        %s1152 = scalar_select %p1151, %s73, 1
        %s1153 = scalar_lea.vmem %s37, %s1152
        %p1154 = scmp.lt.s32.totalorder %s73, 1
        %s1155 = scalar_select %p1154, %s73, 1
        %s1156 = scalar_lea.vmem %s39, %s1155
        %p1157 = scmp.eq.s32.totalorder %s73, 0
        // Predicated region
        $region141: #{tpu_custom_call.1} parent=139 // pred_check
          %p1158 = pneg %p1157
        $region142: #{tpu_custom_call.1} parent=139 // pred_check_branch
          %1160 = sbr.rel (%p1158) target = $region144
        $region143: #{tpu_custom_call.1} parent=139 // pred_region
          %v1161 = vld [vmem:[%s1] sm:$0xff]
          %v1162 = vld [vmem:[%s1 + $0x8] sm:$0xff]
          %v1163 = vld [vmem:[%s5] sm:$0x1]
          %v1164 = vld [vmem:[%s7] sm:$0x1]
          %vm1165 = vcmask 261120
          %v1166 = vsel %vm1165, %v1161, 0.0
          %1167 = vadd.xlane.f32.xlu0 %v1166
          %v1168 = vpop.xlane.xlu0 %1167
          %v1169 = vsel %vm1165, %v1162, 0.0
          %1170 = vadd.xlane.f32.xlu0 %v1169
          %v1171 = vpop.xlane.xlu0 %1170
          %v1172 = vrcp.pop 32.0
          %v1173 = vmul.f32 32.0, %v1172
          %v1174 = vsub.f32 1.0, %v1173
          %v1175 = vmul.f32 %v1172, %v1174
          %v1176 = vadd.f32 %v1172, %v1175
          %vm1177 = vweird.f32 %v1172
          %v1178 = vsel %vm1177, %v1172, %v1176
          %v1179 = vmul.f32 %v1168, %v1178
          %v1180 = vmul.f32 %v1171, %v1178
          %v1181 = vsub.f32 %v1161, %v1179
          %v1182 = vsub.f32 %v1162, %v1180
          %v1183 = vmul.f32 %v1181, %v1181
          %v1184 = vmul.f32 %v1182, %v1182
          %v1185 = vsel %vm1165, %v1183, 0.0
          %1186 = vadd.xlane.f32.xlu0 %v1185
          %v1187 = vpop.xlane.xlu0 %1186
          %v1188 = vsel %vm1165, %v1184, 0.0
          %1189 = vadd.xlane.f32.xlu0 %v1188
          %v1190 = vpop.xlane.xlu0 %1189
          %v1191 = vmul.f32 %v1187, %v1178
          %v1192 = vmul.f32 %v1190, %v1178
          %v1193 = vadd.f32 %v1191, 1e-12
          %v1194 = vadd.f32 %v1192, 1e-12
          %v1195 = vrsqrt.pop %v1193
          %v1196 = vmul.f32 %v1195, %v1193
          %v1197 = vmul.f32 %v1196, %v1195
          %v1198 = vmul.f32 0.5, %v1197
          %v1199 = vsub.f32 1.5, %v1198
          %v1200 = vmul.f32 %v1195, %v1199
          %vm1201 = vweird.f32 %v1193
          %vm1202 = vweird.f32 %v1195
          %vm1203 = vmor %vm1201, %vm1202
          %v1204 = vsel %vm1203, %v1195, %v1200
          %v1205 = vrsqrt.pop %v1194
          %v1206 = vmul.f32 %v1205, %v1194
          %v1207 = vmul.f32 %v1206, %v1205
          %v1208 = vmul.f32 0.5, %v1207
          %v1209 = vsub.f32 1.5, %v1208
          %v1210 = vmul.f32 %v1205, %v1209
          %vm1211 = vweird.f32 %v1194
          %vm1212 = vweird.f32 %v1205
          %vm1213 = vmor %vm1211, %vm1212
          %v1214 = vsel %vm1213, %v1205, %v1210
          %v1215 = vmul.f32 %v1181, %v1204
          %v1216 = vmul.f32 %v1182, %v1214
          %v1218 = vperm.slane %v1163, 0
          %v1220 = vmul.f32 %v1215, %v1218
          %v1221 = vmul.f32 %v1216, %v1218
          %v1223 = vperm.slane %v1164, 0
          %v1225 = vadd.f32 %v1220, %v1223
          %v1226 = vadd.f32 %v1221, %v1223
          %1227 = vst.msk [vmem:[#allocation2] sm:$0xff] %vm1165, %v1225
          %1228 = vst.msk [vmem:[#allocation2 + $0x8] sm:$0xff] %vm1165, %v1226
        $region144: #{tpu_custom_call.1} parent=139 // pred_fallthru
          _
        %v1229 = vld [vmem:[#allocation2] sm:$0xff]
        %v1230 = vld [vmem:[#allocation2 + $0x8] sm:$0xff]
        %v1231 = vld [vmem:[%s1101] sm:$0xff]
        %v1232 = vld [vmem:[%s1101 + $0x8] sm:$0xff]
        %v1233 = vld [vmem:[%s1101 + $0x10] sm:$0xff]
        %v1234 = vld [vmem:[%s1101 + $0x18] sm:$0xff]
        %v1235 = vld [vmem:[%s1104] sm:$0x1]
        %v1237 = vperm.slane %v1235, 0
        %vm1239 = vcmask 261120
        %v1241 = vsel %vm1239, %v1229, 0
        %v1244 = vsel %vm1239, %v1230, 0
        %1246 = vmatpush.msra.mxu0 0.0
        %1247 = vmatpush.msra.mxu0 0.0
        %1248 = vmatpush.msra.mxu0 0.0
        %1249 = vmatpush.msra.mxu0 0.0
        %1250 = vmatpush.msra.mxu0 0.0
        %1251 = vmatpush.msra.mxu0 0.0
        %1252 = vmatpush.msra.mxu0 0.0
        %1253 = vmatpush.msra.mxu0 0.0
        %1254 = vmatpush.msra.mxu0 0.0
        %1255 = vmatpush.msra.mxu0 0.0
        %1256 = vmatpush.msra.mxu0 0.0
        %1257 = vmatpush.msra.mxu0 0.0
        %1258 = vmatpush.msra.mxu0 %v1234
        %1259 = vmatpush.msra.mxu0 %v1233
        %1260 = vmatpush.msra.mxu0 %v1232
        %1261 = vmatpush.msra.mxu0 %v1231
        %1262 = vmatmul.f32.gmra.mxu0 %v1241
        %v1263 = vpop.f32.mrf.mxu0
        %v1264 = vadd.f32 %v1237, %v1263
        %1265 = vmatmul.f32.gmra.mxu0 %v1244
        %v1266 = vpop.f32.mrf.mxu0
        %v1267 = vadd.f32 %v1237, %v1266
        %1268 = vdwg.mxu0
        %v1269 = vld [vmem:[%s1109] sm:$0xff]
        %v1270 = vld [vmem:[%s1109 + $0x8] sm:$0xff]
        %v1271 = vld [vmem:[%s1109 + $0x10] sm:$0xff]
        %v1272 = vld [vmem:[%s1109 + $0x18] sm:$0xff]
        %v1273 = vld [vmem:[%s1112] sm:$0x1]
        %v1275 = vperm.slane %v1273, 0
        %1277 = vmatpush.msra.mxu0 0.0
        %1278 = vmatpush.msra.mxu0 0.0
        %1279 = vmatpush.msra.mxu0 0.0
        %1280 = vmatpush.msra.mxu0 0.0
        %1281 = vmatpush.msra.mxu0 0.0
        %1282 = vmatpush.msra.mxu0 0.0
        %1283 = vmatpush.msra.mxu0 0.0
        %1284 = vmatpush.msra.mxu0 0.0
        %1285 = vmatpush.msra.mxu0 0.0
        %1286 = vmatpush.msra.mxu0 0.0
        %1287 = vmatpush.msra.mxu0 0.0
        %1288 = vmatpush.msra.mxu0 0.0
        %1289 = vmatpush.msra.mxu0 %v1272
        %1290 = vmatpush.msra.mxu0 %v1271
        %1291 = vmatpush.msra.mxu0 %v1270
        %1292 = vmatpush.msra.mxu0 %v1269
        %1293 = vmatmul.f32.gmra.mxu0 %v1241
        %v1294 = vpop.f32.mrf.mxu0
        %v1295 = vadd.f32 %v1275, %v1294
        %1296 = vmatmul.f32.gmra.mxu0 %v1244
        %v1297 = vpop.f32.mrf.mxu0
        %v1298 = vadd.f32 %v1275, %v1297
        %1299 = vdwg.mxu0
        %v1300 = vld [vmem:[%s1117] sm:$0xff]
        %v1301 = vld [vmem:[%s1117 + $0x8] sm:$0xff]
        %v1302 = vld [vmem:[%s1117 + $0x10] sm:$0xff]
        %v1303 = vld [vmem:[%s1117 + $0x18] sm:$0xff]
        %v1304 = vld [vmem:[%s1120] sm:$0x1]
        %v1306 = vperm.slane %v1304, 0
        %1308 = vmatpush.msra.mxu0 0.0
        %1309 = vmatpush.msra.mxu0 0.0
        %1310 = vmatpush.msra.mxu0 0.0
        %1311 = vmatpush.msra.mxu0 0.0
        %1312 = vmatpush.msra.mxu0 0.0
        %1313 = vmatpush.msra.mxu0 0.0
        %1314 = vmatpush.msra.mxu0 0.0
        %1315 = vmatpush.msra.mxu0 0.0
        %1316 = vmatpush.msra.mxu0 0.0
        %1317 = vmatpush.msra.mxu0 0.0
        %1318 = vmatpush.msra.mxu0 0.0
        %1319 = vmatpush.msra.mxu0 0.0
        %1320 = vmatpush.msra.mxu0 %v1303
        %1321 = vmatpush.msra.mxu0 %v1302
        %1322 = vmatpush.msra.mxu0 %v1301
        %1323 = vmatpush.msra.mxu0 %v1300
        %1324 = vmatmul.f32.gmra.mxu0 %v1241
        %v1325 = vpop.f32.mrf.mxu0
        %v1326 = vadd.f32 %v1306, %v1325
        %1327 = vmatmul.f32.gmra.mxu0 %v1244
        %v1328 = vpop.f32.mrf.mxu0
        %v1329 = vadd.f32 %v1306, %v1328
        %1330 = vdwg.mxu0
        %v1331 = vld [vmem:[%s3] sm:$0x1]
        %v1332 = vld [vmem:[%s3 + $0x1] sm:$0x1]
        %v1333 = vld [vmem:[%s1125] sm:$0xff]
        %v1334 = vld [vmem:[%s1125 + $0x8] sm:$0xff]
        %v1335 = vld [vmem:[%s1125 + $0x10] sm:$0xff]
        %v1336 = vld [vmem:[%s1125 + $0x18] sm:$0xff]
        %vm1337 = vcmask 64512
        %v1339 = vsel %vm1337, %v1264, 0
        %v1342 = vsel %vm1337, %v1295, 0
        %1344 = vmatpush.xpose.msra.mxu0 0.0
        %1345 = vmatpush.xpose.msra.mxu0 0.0
        %1346 = vmatpush.xpose.msra.mxu0 0.0
        %1347 = vmatpush.xpose.msra.mxu0 0.0
        %1348 = vmatpush.xpose.msra.mxu0 0.0
        %1349 = vmatpush.xpose.msra.mxu0 0.0
        %1350 = vmatpush.xpose.msra.mxu0 0.0
        %1351 = vmatpush.xpose.msra.mxu0 0.0
        %1352 = vmatpush.xpose.msra.mxu0 0.0
        %1353 = vmatpush.xpose.msra.mxu0 0.0
        %1354 = vmatpush.xpose.msra.mxu0 0.0
        %1355 = vmatpush.xpose.msra.mxu0 0.0
        %1356 = vmatpush.xpose.msra.mxu0 0.0
        %1357 = vmatpush.xpose.msra.mxu0 0.0
        %1358 = vmatpush.xpose.msra.mxu0 0.0
        %1359 = vmatpush.xpose.msra.mxu0 %v1342
        %1360 = vmatmul.f32.gmra.mxu0 %v1339
        %v1361 = vpop.f32.mrf.mxu0
        %v1362 = vadd.f32 0.0, %v1361
        %1363 = vdwg.mxu0
        %v1365 = vsel %vm1337, %v1267, 0
        %v1368 = vsel %vm1337, %v1298, 0
        %1370 = vmatpush.xpose.msra.mxu0 0.0
        %1371 = vmatpush.xpose.msra.mxu0 0.0
        %1372 = vmatpush.xpose.msra.mxu0 0.0
        %1373 = vmatpush.xpose.msra.mxu0 0.0
        %1374 = vmatpush.xpose.msra.mxu0 0.0
        %1375 = vmatpush.xpose.msra.mxu0 0.0
        %1376 = vmatpush.xpose.msra.mxu0 0.0
        %1377 = vmatpush.xpose.msra.mxu0 0.0
        %1378 = vmatpush.xpose.msra.mxu0 0.0
        %1379 = vmatpush.xpose.msra.mxu0 0.0
        %1380 = vmatpush.xpose.msra.mxu0 0.0
        %1381 = vmatpush.xpose.msra.mxu0 0.0
        %1382 = vmatpush.xpose.msra.mxu0 0.0
        %1383 = vmatpush.xpose.msra.mxu0 0.0
        %1384 = vmatpush.xpose.msra.mxu0 0.0
        %1385 = vmatpush.xpose.msra.mxu0 %v1368
        %1386 = vmatmul.f32.gmra.mxu0 %v1365
        %v1387 = vpop.f32.mrf.mxu0
        %v1388 = vadd.f32 0.0, %v1387
        %1389 = vdwg.mxu0
        %v1390 = vmul.f32 %v1362, 0.35355338
        %v1391 = vmul.f32 %v1388, 0.35355338
        %v1394 = vperm.slane %v1331, 0
        %v1395 = vperm.slane %v1332, 0
        %v1398 = vadd.f32 %v1390, %v1394
        %v1399 = vadd.f32 %v1391, %v1395
        %v1400 = vsel %vm1337, %v1398, -inf
        %1401 = vmax.xlane.f32.xlu0 %v1400
        %v1402 = vpop.xlane.xlu0 %1401
        %v1403 = vsel %vm1337, %v1399, -inf
        %1404 = vmax.xlane.f32.xlu0 %v1403
        %v1405 = vpop.xlane.xlu0 %1404
        %v1406 = vsub.f32 %v1398, %v1402
        %v1407 = vsub.f32 %v1399, %v1405
        %v1408 = vmul.f32 %v1406, 1.442695
        %v1409 = vpow.pop %v1408
        %v1410 = vmul.f32 %v1407, 1.442695
        %v1411 = vpow.pop %v1410
        %v1412 = vsel %vm1337, %v1409, 0.0
        %1413 = vadd.xlane.f32.xlu0 %v1412
        %v1414 = vpop.xlane.xlu0 %1413
        %v1415 = vsel %vm1337, %v1411, 0.0
        %1416 = vadd.xlane.f32.xlu0 %v1415
        %v1417 = vpop.xlane.xlu0 %1416
        %v1418 = vrcp.pop %v1414
        %v1419 = vmul.f32 %v1414, %v1418
        %v1420 = vsub.f32 1.0, %v1419
        %v1421 = vmul.f32 %v1418, %v1420
        %v1422 = vadd.f32 %v1418, %v1421
        %vm1423 = vweird.f32 %v1414
        %vm1424 = vweird.f32 %v1418
        %vm1425 = vmor %vm1423, %vm1424
        %v1426 = vsel %vm1425, %v1418, %v1422
        %v1427 = vand.u32 2147483647, %v1414
        %vm1428 = vcmp.eq.f32.partialorder %v1427, 8.507059e+37
        %v1429 = vand.u32 %v1414, 2147483648
        %v1430 = vor.u32 1.1754944e-38, %v1429
        %v1431 = vsel %vm1428, %v1430, %v1426
        %v1432 = vmul.f32 %v1409, %v1431
        %v1433 = vrcp.pop %v1417
        %v1434 = vmul.f32 %v1417, %v1433
        %v1435 = vsub.f32 1.0, %v1434
        %v1436 = vmul.f32 %v1433, %v1435
        %v1437 = vadd.f32 %v1433, %v1436
        %vm1438 = vweird.f32 %v1417
        %vm1439 = vweird.f32 %v1433
        %vm1440 = vmor %vm1438, %vm1439
        %v1441 = vsel %vm1440, %v1433, %v1437
        %v1442 = vand.u32 2147483647, %v1417
        %vm1443 = vcmp.eq.f32.partialorder %v1442, 8.507059e+37
        %v1444 = vand.u32 %v1417, 2147483648
        %v1445 = vor.u32 1.1754944e-38, %v1444
        %v1446 = vsel %vm1443, %v1445, %v1441
        %v1447 = vmul.f32 %v1411, %v1446
        %v1449 = vsel %vm1337, %v1432, 0
        %1451 = vmatpush.msra.mxu0 0.0
        %1452 = vmatpush.msra.mxu0 0.0
        %1453 = vmatpush.msra.mxu0 0.0
        %1454 = vmatpush.msra.mxu0 0.0
        %1455 = vmatpush.msra.mxu0 0.0
        %1456 = vmatpush.msra.mxu0 0.0
        %1457 = vmatpush.msra.mxu0 0.0
        %1458 = vmatpush.msra.mxu0 0.0
        %1459 = vmatpush.msra.mxu0 0.0
        %1460 = vmatpush.msra.mxu0 0.0
        %1461 = vmatpush.msra.mxu0 0.0
        %1462 = vmatpush.msra.mxu0 0.0
        %1463 = vmatpush.msra.mxu0 0.0
        %1464 = vmatpush.msra.mxu0 0.0
        %1465 = vmatpush.msra.mxu0 0.0
        %1466 = vmatpush.msra.mxu0 %v1326
        %1467 = vmatmul.f32.gmra.mxu0 %v1449
        %v1468 = vpop.f32.mrf.mxu0
        %v1469 = vadd.f32 0.0, %v1468
        %1470 = vdwg.mxu0
        %v1472 = vsel %vm1337, %v1447, 0
        %1474 = vmatpush.msra.mxu0 0.0
        %1475 = vmatpush.msra.mxu0 0.0
        %1476 = vmatpush.msra.mxu0 0.0
        %1477 = vmatpush.msra.mxu0 0.0
        %1478 = vmatpush.msra.mxu0 0.0
        %1479 = vmatpush.msra.mxu0 0.0
        %1480 = vmatpush.msra.mxu0 0.0
        %1481 = vmatpush.msra.mxu0 0.0
        %1482 = vmatpush.msra.mxu0 0.0
        %1483 = vmatpush.msra.mxu0 0.0
        %1484 = vmatpush.msra.mxu0 0.0
        %1485 = vmatpush.msra.mxu0 0.0
        %1486 = vmatpush.msra.mxu0 0.0
        %1487 = vmatpush.msra.mxu0 0.0
        %1488 = vmatpush.msra.mxu0 0.0
        %1489 = vmatpush.msra.mxu0 %v1329
        %1490 = vmatmul.f32.gmra.mxu0 %v1472
        %v1491 = vpop.f32.mrf.mxu0
        %v1492 = vadd.f32 0.0, %v1491
        %1493 = vdwg.mxu0
        %1494 = vrot.lane.b32.xlu0 %v1264, 120
        %v1495 = vpop.permute.xlu0 %1494
        %1496 = vrot.lane.b32.xlu0 %v1295, 120
        %v1497 = vpop.permute.xlu0 %1496
        %v1498 = vsel %vm1337, %v1495, 0
        %v1500 = vsel %vm1337, %v1497, 0
        %1502 = vmatpush.xpose.msra.mxu0 0.0
        %1503 = vmatpush.xpose.msra.mxu0 0.0
        %1504 = vmatpush.xpose.msra.mxu0 0.0
        %1505 = vmatpush.xpose.msra.mxu0 0.0
        %1506 = vmatpush.xpose.msra.mxu0 0.0
        %1507 = vmatpush.xpose.msra.mxu0 0.0
        %1508 = vmatpush.xpose.msra.mxu0 0.0
        %1509 = vmatpush.xpose.msra.mxu0 0.0
        %1510 = vmatpush.xpose.msra.mxu0 0.0
        %1511 = vmatpush.xpose.msra.mxu0 0.0
        %1512 = vmatpush.xpose.msra.mxu0 0.0
        %1513 = vmatpush.xpose.msra.mxu0 0.0
        %1514 = vmatpush.xpose.msra.mxu0 0.0
        %1515 = vmatpush.xpose.msra.mxu0 0.0
        %1516 = vmatpush.xpose.msra.mxu0 0.0
        %1517 = vmatpush.xpose.msra.mxu0 %v1500
        %1518 = vmatmul.f32.gmra.mxu0 %v1498
        %v1519 = vpop.f32.mrf.mxu0
        %v1520 = vadd.f32 0.0, %v1519
        %1521 = vdwg.mxu0
        %1522 = vrot.lane.b32.xlu0 %v1267, 120
        %v1523 = vpop.permute.xlu0 %1522
        %1524 = vrot.lane.b32.xlu0 %v1298, 120
        %v1525 = vpop.permute.xlu0 %1524
        %v1526 = vsel %vm1337, %v1523, 0
        %v1528 = vsel %vm1337, %v1525, 0
        %1530 = vmatpush.xpose.msra.mxu0 0.0
        %1531 = vmatpush.xpose.msra.mxu0 0.0
        %1532 = vmatpush.xpose.msra.mxu0 0.0
        %1533 = vmatpush.xpose.msra.mxu0 0.0
        %1534 = vmatpush.xpose.msra.mxu0 0.0
        %1535 = vmatpush.xpose.msra.mxu0 0.0
        %1536 = vmatpush.xpose.msra.mxu0 0.0
        %1537 = vmatpush.xpose.msra.mxu0 0.0
        %1538 = vmatpush.xpose.msra.mxu0 0.0
        %1539 = vmatpush.xpose.msra.mxu0 0.0
        %1540 = vmatpush.xpose.msra.mxu0 0.0
        %1541 = vmatpush.xpose.msra.mxu0 0.0
        %1542 = vmatpush.xpose.msra.mxu0 0.0
        %1543 = vmatpush.xpose.msra.mxu0 0.0
        %1544 = vmatpush.xpose.msra.mxu0 0.0
        %1545 = vmatpush.xpose.msra.mxu0 %v1528
        %1546 = vmatmul.f32.gmra.mxu0 %v1526
        %v1547 = vpop.f32.mrf.mxu0
        %v1548 = vadd.f32 0.0, %v1547
        %1549 = vdwg.mxu0
        %v1550 = vmul.f32 %v1520, 0.35355338
        %v1551 = vmul.f32 %v1548, 0.35355338
        %v1552 = vadd.f32 %v1550, %v1394
        %v1553 = vadd.f32 %v1551, %v1395
        %v1554 = vsel %vm1337, %v1552, -inf
        %1555 = vmax.xlane.f32.xlu0 %v1554
        %v1556 = vpop.xlane.xlu0 %1555
        %v1557 = vsel %vm1337, %v1553, -inf
        %1558 = vmax.xlane.f32.xlu0 %v1557
        %v1559 = vpop.xlane.xlu0 %1558
        %v1560 = vsub.f32 %v1552, %v1556
        %v1561 = vsub.f32 %v1553, %v1559
        %v1562 = vmul.f32 %v1560, 1.442695
        %v1563 = vpow.pop %v1562
        %v1564 = vmul.f32 %v1561, 1.442695
        %v1565 = vpow.pop %v1564
        %v1566 = vsel %vm1337, %v1563, 0.0
        %1567 = vadd.xlane.f32.xlu0 %v1566
        %v1568 = vpop.xlane.xlu0 %1567
        %v1569 = vsel %vm1337, %v1565, 0.0
        %1570 = vadd.xlane.f32.xlu0 %v1569
        %v1571 = vpop.xlane.xlu0 %1570
        %v1572 = vrcp.pop %v1568
        %v1573 = vmul.f32 %v1568, %v1572
        %v1574 = vsub.f32 1.0, %v1573
        %v1575 = vmul.f32 %v1572, %v1574
        %v1576 = vadd.f32 %v1572, %v1575
        %vm1577 = vweird.f32 %v1568
        %vm1578 = vweird.f32 %v1572
        %vm1579 = vmor %vm1577, %vm1578
        %v1580 = vsel %vm1579, %v1572, %v1576
        %v1581 = vand.u32 2147483647, %v1568
        %vm1582 = vcmp.eq.f32.partialorder %v1581, 8.507059e+37
        %v1583 = vand.u32 %v1568, 2147483648
        %v1584 = vor.u32 1.1754944e-38, %v1583
        %v1585 = vsel %vm1582, %v1584, %v1580
        %v1586 = vmul.f32 %v1563, %v1585
        %v1587 = vrcp.pop %v1571
        %v1588 = vmul.f32 %v1571, %v1587
        %v1589 = vsub.f32 1.0, %v1588
        %v1590 = vmul.f32 %v1587, %v1589
        %v1591 = vadd.f32 %v1587, %v1590
        %vm1592 = vweird.f32 %v1571
        %vm1593 = vweird.f32 %v1587
        %vm1594 = vmor %vm1592, %vm1593
        %v1595 = vsel %vm1594, %v1587, %v1591
        %v1596 = vand.u32 2147483647, %v1571
        %vm1597 = vcmp.eq.f32.partialorder %v1596, 8.507059e+37
        %v1598 = vand.u32 %v1571, 2147483648
        %v1599 = vor.u32 1.1754944e-38, %v1598
        %v1600 = vsel %vm1597, %v1599, %v1595
        %v1601 = vmul.f32 %v1565, %v1600
        %1603 = vrot.lane.b32.xlu0 %v1326, 120
        %v1604 = vpop.permute.xlu0 %1603
        %v1607 = vsel %vm1337, %v1586, 0
        %1609 = vmatpush.msra.mxu0 0.0
        %1610 = vmatpush.msra.mxu0 0.0
        %1611 = vmatpush.msra.mxu0 0.0
        %1612 = vmatpush.msra.mxu0 0.0
        %1613 = vmatpush.msra.mxu0 0.0
        %1614 = vmatpush.msra.mxu0 0.0
        %1615 = vmatpush.msra.mxu0 0.0
        %1616 = vmatpush.msra.mxu0 0.0
        %1617 = vmatpush.msra.mxu0 0.0
        %1618 = vmatpush.msra.mxu0 0.0
        %1619 = vmatpush.msra.mxu0 0.0
        %1620 = vmatpush.msra.mxu0 0.0
        %1621 = vmatpush.msra.mxu0 0.0
        %1622 = vmatpush.msra.mxu0 0.0
        %1623 = vmatpush.msra.mxu0 0.0
        %1624 = vmatpush.msra.mxu0 %v1604
        %1625 = vmatmul.f32.gmra.mxu0 %v1607
        %v1626 = vpop.f32.mrf.mxu0
        %v1627 = vadd.f32 0.0, %v1626
        %1628 = vdwg.mxu0
        %1630 = vrot.lane.b32.xlu0 %v1329, 120
        %v1631 = vpop.permute.xlu0 %1630
        %v1634 = vsel %vm1337, %v1601, 0
        %1636 = vmatpush.msra.mxu0 0.0
        %1637 = vmatpush.msra.mxu0 0.0
        %1638 = vmatpush.msra.mxu0 0.0
        %1639 = vmatpush.msra.mxu0 0.0
        %1640 = vmatpush.msra.mxu0 0.0
        %1641 = vmatpush.msra.mxu0 0.0
        %1642 = vmatpush.msra.mxu0 0.0
        %1643 = vmatpush.msra.mxu0 0.0
        %1644 = vmatpush.msra.mxu0 0.0
        %1645 = vmatpush.msra.mxu0 0.0
        %1646 = vmatpush.msra.mxu0 0.0
        %1647 = vmatpush.msra.mxu0 0.0
        %1648 = vmatpush.msra.mxu0 0.0
        %1649 = vmatpush.msra.mxu0 0.0
        %1650 = vmatpush.msra.mxu0 0.0
        %1651 = vmatpush.msra.mxu0 %v1631
        %1652 = vmatmul.f32.gmra.mxu0 %v1634
        %v1653 = vpop.f32.mrf.mxu0
        %v1654 = vadd.f32 0.0, %v1653
        %1655 = vdwg.mxu0
        %v1657 = vsel %vm1337, %v1627, 0
        %v1660 = vsel %vm1337, %v1654, 0
        %1662 = vmatpush.msra.mxu0 0.0
        %1663 = vmatpush.msra.mxu0 0.0
        %1664 = vmatpush.msra.mxu0 0.0
        %1665 = vmatpush.msra.mxu0 0.0
        %1666 = vmatpush.msra.mxu0 0.0
        %1667 = vmatpush.msra.mxu0 0.0
        %1668 = vmatpush.msra.mxu0 0.0
        %1669 = vmatpush.msra.mxu0 0.0
        %1670 = vmatpush.msra.mxu0 0.0
        %1671 = vmatpush.msra.mxu0 0.0
        %1672 = vmatpush.msra.mxu0 0.0
        %1673 = vmatpush.msra.mxu0 0.0
        %1674 = vmatpush.msra.mxu0 0.0
        %1675 = vmatpush.msra.mxu0 0.0
        %1676 = vmatpush.msra.mxu0 0.0
        %1677 = vmatpush.msra.mxu0 %v1334
        %1678 = vmatmul.f32.gmra.mxu0 %v1657
        %v1679 = vpop.f32.mrf.mxu0
        %v1680 = vadd.f32 0.0, %v1679
        %1681 = vmatmul.f32.gmra.mxu0 %v1660
        %v1682 = vpop.f32.mrf.mxu0
        %v1683 = vadd.f32 0.0, %v1682
        %1684 = vdwg.mxu0
        %v1686 = vsel %vm1337, %v1469, 0
        %v1689 = vsel %vm1337, %v1492, 0
        %1691 = vmatpush.msra.mxu0 0.0
        %1692 = vmatpush.msra.mxu0 0.0
        %1693 = vmatpush.msra.mxu0 0.0
        %1694 = vmatpush.msra.mxu0 0.0
        %1695 = vmatpush.msra.mxu0 0.0
        %1696 = vmatpush.msra.mxu0 0.0
        %1697 = vmatpush.msra.mxu0 0.0
        %1698 = vmatpush.msra.mxu0 0.0
        %1699 = vmatpush.msra.mxu0 0.0
        %1700 = vmatpush.msra.mxu0 0.0
        %1701 = vmatpush.msra.mxu0 0.0
        %1702 = vmatpush.msra.mxu0 0.0
        %1703 = vmatpush.msra.mxu0 0.0
        %1704 = vmatpush.msra.mxu0 0.0
        %1705 = vmatpush.msra.mxu0 0.0
        %1706 = vmatpush.msra.mxu0 %v1333
        %1707 = vmatmul.f32.gmra.mxu0 %v1686
        %v1708 = vpop.f32.mrf.mxu0
        %v1709 = vadd.f32 %v1680, %v1708
        %1710 = vmatmul.f32.gmra.mxu0 %v1689
        %v1711 = vpop.f32.mrf.mxu0
        %v1712 = vadd.f32 %v1683, %v1711
        %1713 = vdwg.mxu0
        %1714 = vrot.lane.b32.xlu0 %v1264, 112
        %v1715 = vpop.permute.xlu0 %1714
        %1716 = vrot.lane.b32.xlu0 %v1295, 112
        %v1717 = vpop.permute.xlu0 %1716
        %v1718 = vsel %vm1337, %v1715, 0
        %v1720 = vsel %vm1337, %v1717, 0
        %1722 = vmatpush.xpose.msra.mxu0 0.0
        %1723 = vmatpush.xpose.msra.mxu0 0.0
        %1724 = vmatpush.xpose.msra.mxu0 0.0
        %1725 = vmatpush.xpose.msra.mxu0 0.0
        %1726 = vmatpush.xpose.msra.mxu0 0.0
        %1727 = vmatpush.xpose.msra.mxu0 0.0
        %1728 = vmatpush.xpose.msra.mxu0 0.0
        %1729 = vmatpush.xpose.msra.mxu0 0.0
        %1730 = vmatpush.xpose.msra.mxu0 0.0
        %1731 = vmatpush.xpose.msra.mxu0 0.0
        %1732 = vmatpush.xpose.msra.mxu0 0.0
        %1733 = vmatpush.xpose.msra.mxu0 0.0
        %1734 = vmatpush.xpose.msra.mxu0 0.0
        %1735 = vmatpush.xpose.msra.mxu0 0.0
        %1736 = vmatpush.xpose.msra.mxu0 0.0
        %1737 = vmatpush.xpose.msra.mxu0 %v1720
        %1738 = vmatmul.f32.gmra.mxu0 %v1718
        %v1739 = vpop.f32.mrf.mxu0
        %v1740 = vadd.f32 0.0, %v1739
        %1741 = vdwg.mxu0
        %1742 = vrot.lane.b32.xlu0 %v1267, 112
        %v1743 = vpop.permute.xlu0 %1742
        %1744 = vrot.lane.b32.xlu0 %v1298, 112
        %v1745 = vpop.permute.xlu0 %1744
        %v1746 = vsel %vm1337, %v1743, 0
        %v1748 = vsel %vm1337, %v1745, 0
        %1750 = vmatpush.xpose.msra.mxu0 0.0
        %1751 = vmatpush.xpose.msra.mxu0 0.0
        %1752 = vmatpush.xpose.msra.mxu0 0.0
        %1753 = vmatpush.xpose.msra.mxu0 0.0
        %1754 = vmatpush.xpose.msra.mxu0 0.0
        %1755 = vmatpush.xpose.msra.mxu0 0.0
        %1756 = vmatpush.xpose.msra.mxu0 0.0
        %1757 = vmatpush.xpose.msra.mxu0 0.0
        %1758 = vmatpush.xpose.msra.mxu0 0.0
        %1759 = vmatpush.xpose.msra.mxu0 0.0
        %1760 = vmatpush.xpose.msra.mxu0 0.0
        %1761 = vmatpush.xpose.msra.mxu0 0.0
        %1762 = vmatpush.xpose.msra.mxu0 0.0
        %1763 = vmatpush.xpose.msra.mxu0 0.0
        %1764 = vmatpush.xpose.msra.mxu0 0.0
        %1765 = vmatpush.xpose.msra.mxu0 %v1748
        %1766 = vmatmul.f32.gmra.mxu0 %v1746
        %v1767 = vpop.f32.mrf.mxu0
        %v1768 = vadd.f32 0.0, %v1767
        %1769 = vdwg.mxu0
        %v1770 = vmul.f32 %v1740, 0.35355338
        %v1771 = vmul.f32 %v1768, 0.35355338
        %v1772 = vadd.f32 %v1770, %v1394
        %v1773 = vadd.f32 %v1771, %v1395
        %v1774 = vsel %vm1337, %v1772, -inf
        %1775 = vmax.xlane.f32.xlu0 %v1774
        %v1776 = vpop.xlane.xlu0 %1775
        %v1777 = vsel %vm1337, %v1773, -inf
        %1778 = vmax.xlane.f32.xlu0 %v1777
        %v1779 = vpop.xlane.xlu0 %1778
        %v1780 = vsub.f32 %v1772, %v1776
        %v1781 = vsub.f32 %v1773, %v1779
        %v1782 = vmul.f32 %v1780, 1.442695
        %v1783 = vpow.pop %v1782
        %v1784 = vmul.f32 %v1781, 1.442695
        %v1785 = vpow.pop %v1784
        %v1786 = vsel %vm1337, %v1783, 0.0
        %1787 = vadd.xlane.f32.xlu0 %v1786
        %v1788 = vpop.xlane.xlu0 %1787
        %v1789 = vsel %vm1337, %v1785, 0.0
        %1790 = vadd.xlane.f32.xlu0 %v1789
        %v1791 = vpop.xlane.xlu0 %1790
        %v1792 = vrcp.pop %v1788
        %v1793 = vmul.f32 %v1788, %v1792
        %v1794 = vsub.f32 1.0, %v1793
        %v1795 = vmul.f32 %v1792, %v1794
        %v1796 = vadd.f32 %v1792, %v1795
        %vm1797 = vweird.f32 %v1788
        %vm1798 = vweird.f32 %v1792
        %vm1799 = vmor %vm1797, %vm1798
        %v1800 = vsel %vm1799, %v1792, %v1796
        %v1801 = vand.u32 2147483647, %v1788
        %vm1802 = vcmp.eq.f32.partialorder %v1801, 8.507059e+37
        %v1803 = vand.u32 %v1788, 2147483648
        %v1804 = vor.u32 1.1754944e-38, %v1803
        %v1805 = vsel %vm1802, %v1804, %v1800
        %v1806 = vmul.f32 %v1783, %v1805
        %v1807 = vrcp.pop %v1791
        %v1808 = vmul.f32 %v1791, %v1807
        %v1809 = vsub.f32 1.0, %v1808
        %v1810 = vmul.f32 %v1807, %v1809
        %v1811 = vadd.f32 %v1807, %v1810
        %vm1812 = vweird.f32 %v1791
        %vm1813 = vweird.f32 %v1807
        %vm1814 = vmor %vm1812, %vm1813
        %v1815 = vsel %vm1814, %v1807, %v1811
        %v1816 = vand.u32 2147483647, %v1791
        %vm1817 = vcmp.eq.f32.partialorder %v1816, 8.507059e+37
        %v1818 = vand.u32 %v1791, 2147483648
        %v1819 = vor.u32 1.1754944e-38, %v1818
        %v1820 = vsel %vm1817, %v1819, %v1815
        %v1821 = vmul.f32 %v1785, %v1820
        %1822 = vrot.lane.b32.xlu0 %v1326, 112
        %v1823 = vpop.permute.xlu0 %1822
        %v1826 = vsel %vm1337, %v1806, 0
        %1828 = vmatpush.msra.mxu0 0.0
        %1829 = vmatpush.msra.mxu0 0.0
        %1830 = vmatpush.msra.mxu0 0.0
        %1831 = vmatpush.msra.mxu0 0.0
        %1832 = vmatpush.msra.mxu0 0.0
        %1833 = vmatpush.msra.mxu0 0.0
        %1834 = vmatpush.msra.mxu0 0.0
        %1835 = vmatpush.msra.mxu0 0.0
        %1836 = vmatpush.msra.mxu0 0.0
        %1837 = vmatpush.msra.mxu0 0.0
        %1838 = vmatpush.msra.mxu0 0.0
        %1839 = vmatpush.msra.mxu0 0.0
        %1840 = vmatpush.msra.mxu0 0.0
        %1841 = vmatpush.msra.mxu0 0.0
        %1842 = vmatpush.msra.mxu0 0.0
        %1843 = vmatpush.msra.mxu0 %v1823
        %1844 = vmatmul.f32.gmra.mxu0 %v1826
        %v1845 = vpop.f32.mrf.mxu0
        %v1846 = vadd.f32 0.0, %v1845
        %1847 = vdwg.mxu0
        %1848 = vrot.lane.b32.xlu0 %v1329, 112
        %v1849 = vpop.permute.xlu0 %1848
        %v1852 = vsel %vm1337, %v1821, 0
        %1854 = vmatpush.msra.mxu0 0.0
        %1855 = vmatpush.msra.mxu0 0.0
        %1856 = vmatpush.msra.mxu0 0.0
        %1857 = vmatpush.msra.mxu0 0.0
        %1858 = vmatpush.msra.mxu0 0.0
        %1859 = vmatpush.msra.mxu0 0.0
        %1860 = vmatpush.msra.mxu0 0.0
        %1861 = vmatpush.msra.mxu0 0.0
        %1862 = vmatpush.msra.mxu0 0.0
        %1863 = vmatpush.msra.mxu0 0.0
        %1864 = vmatpush.msra.mxu0 0.0
        %1865 = vmatpush.msra.mxu0 0.0
        %1866 = vmatpush.msra.mxu0 0.0
        %1867 = vmatpush.msra.mxu0 0.0
        %1868 = vmatpush.msra.mxu0 0.0
        %1869 = vmatpush.msra.mxu0 %v1849
        %1870 = vmatmul.f32.gmra.mxu0 %v1852
        %v1871 = vpop.f32.mrf.mxu0
        %v1872 = vadd.f32 0.0, %v1871
        %1873 = vdwg.mxu0
        %v1875 = vsel %vm1337, %v1846, 0
        %v1878 = vsel %vm1337, %v1872, 0
        %1880 = vmatpush.msra.mxu0 0.0
        %1881 = vmatpush.msra.mxu0 0.0
        %1882 = vmatpush.msra.mxu0 0.0
        %1883 = vmatpush.msra.mxu0 0.0
        %1884 = vmatpush.msra.mxu0 0.0
        %1885 = vmatpush.msra.mxu0 0.0
        %1886 = vmatpush.msra.mxu0 0.0
        %1887 = vmatpush.msra.mxu0 0.0
        %1888 = vmatpush.msra.mxu0 0.0
        %1889 = vmatpush.msra.mxu0 0.0
        %1890 = vmatpush.msra.mxu0 0.0
        %1891 = vmatpush.msra.mxu0 0.0
        %1892 = vmatpush.msra.mxu0 0.0
        %1893 = vmatpush.msra.mxu0 0.0
        %1894 = vmatpush.msra.mxu0 0.0
        %1895 = vmatpush.msra.mxu0 %v1335
        %1896 = vmatmul.f32.gmra.mxu0 %v1875
        %v1897 = vpop.f32.mrf.mxu0
        %v1898 = vadd.f32 0.0, %v1897
        %1899 = vmatmul.f32.gmra.mxu0 %v1878
        %v1900 = vpop.f32.mrf.mxu0
        %v1901 = vadd.f32 0.0, %v1900
        %1902 = vdwg.mxu0
        %v1903 = vadd.f32 %v1709, %v1898
        %v1904 = vadd.f32 %v1712, %v1901
        %1905 = vrot.lane.b32.xlu0 %v1264, 104
        %v1906 = vpop.permute.xlu0 %1905
        %1907 = vrot.lane.b32.xlu0 %v1295, 104
        %v1908 = vpop.permute.xlu0 %1907
        %v1909 = vsel %vm1337, %v1906, 0
        %v1911 = vsel %vm1337, %v1908, 0
        %1913 = vmatpush.xpose.msra.mxu0 0.0
        %1914 = vmatpush.xpose.msra.mxu0 0.0
        %1915 = vmatpush.xpose.msra.mxu0 0.0
        %1916 = vmatpush.xpose.msra.mxu0 0.0
        %1917 = vmatpush.xpose.msra.mxu0 0.0
        %1918 = vmatpush.xpose.msra.mxu0 0.0
        %1919 = vmatpush.xpose.msra.mxu0 0.0
        %1920 = vmatpush.xpose.msra.mxu0 0.0
        %1921 = vmatpush.xpose.msra.mxu0 0.0
        %1922 = vmatpush.xpose.msra.mxu0 0.0
        %1923 = vmatpush.xpose.msra.mxu0 0.0
        %1924 = vmatpush.xpose.msra.mxu0 0.0
        %1925 = vmatpush.xpose.msra.mxu0 0.0
        %1926 = vmatpush.xpose.msra.mxu0 0.0
        %1927 = vmatpush.xpose.msra.mxu0 0.0
        %1928 = vmatpush.xpose.msra.mxu0 %v1911
        %1929 = vmatmul.f32.gmra.mxu0 %v1909
        %v1930 = vpop.f32.mrf.mxu0
        %v1931 = vadd.f32 0.0, %v1930
        %1932 = vdwg.mxu0
        %1933 = vrot.lane.b32.xlu0 %v1267, 104
        %v1934 = vpop.permute.xlu0 %1933
        %1935 = vrot.lane.b32.xlu0 %v1298, 104
        %v1936 = vpop.permute.xlu0 %1935
        %v1937 = vsel %vm1337, %v1934, 0
        %v1939 = vsel %vm1337, %v1936, 0
        %1941 = vmatpush.xpose.msra.mxu0 0.0
        %1942 = vmatpush.xpose.msra.mxu0 0.0
        %1943 = vmatpush.xpose.msra.mxu0 0.0
        %1944 = vmatpush.xpose.msra.mxu0 0.0
        %1945 = vmatpush.xpose.msra.mxu0 0.0
        %1946 = vmatpush.xpose.msra.mxu0 0.0
        %1947 = vmatpush.xpose.msra.mxu0 0.0
        %1948 = vmatpush.xpose.msra.mxu0 0.0
        %1949 = vmatpush.xpose.msra.mxu0 0.0
        %1950 = vmatpush.xpose.msra.mxu0 0.0
        %1951 = vmatpush.xpose.msra.mxu0 0.0
        %1952 = vmatpush.xpose.msra.mxu0 0.0
        %1953 = vmatpush.xpose.msra.mxu0 0.0
        %1954 = vmatpush.xpose.msra.mxu0 0.0
        %1955 = vmatpush.xpose.msra.mxu0 0.0
        %1956 = vmatpush.xpose.msra.mxu0 %v1939
        %1957 = vmatmul.f32.gmra.mxu0 %v1937
        %v1958 = vpop.f32.mrf.mxu0
        %v1959 = vadd.f32 0.0, %v1958
        %1960 = vdwg.mxu0
        %v1961 = vmul.f32 %v1931, 0.35355338
        %v1962 = vmul.f32 %v1959, 0.35355338
        %v1963 = vadd.f32 %v1961, %v1394
        %v1964 = vadd.f32 %v1962, %v1395
        %v1965 = vsel %vm1337, %v1963, -inf
        %1966 = vmax.xlane.f32.xlu0 %v1965
        %v1967 = vpop.xlane.xlu0 %1966
        %v1968 = vsel %vm1337, %v1964, -inf
        %1969 = vmax.xlane.f32.xlu0 %v1968
        %v1970 = vpop.xlane.xlu0 %1969
        %v1971 = vsub.f32 %v1963, %v1967
        %v1972 = vsub.f32 %v1964, %v1970
        %v1973 = vmul.f32 %v1971, 1.442695
        %v1974 = vpow.pop %v1973
        %v1975 = vmul.f32 %v1972, 1.442695
        %v1976 = vpow.pop %v1975
        %v1977 = vsel %vm1337, %v1974, 0.0
        %1978 = vadd.xlane.f32.xlu0 %v1977
        %v1979 = vpop.xlane.xlu0 %1978
        %v1980 = vsel %vm1337, %v1976, 0.0
        %1981 = vadd.xlane.f32.xlu0 %v1980
        %v1982 = vpop.xlane.xlu0 %1981
        %v1983 = vrcp.pop %v1979
        %v1984 = vmul.f32 %v1979, %v1983
        %v1985 = vsub.f32 1.0, %v1984
        %v1986 = vmul.f32 %v1983, %v1985
        %v1987 = vadd.f32 %v1983, %v1986
        %vm1988 = vweird.f32 %v1979
        %vm1989 = vweird.f32 %v1983
        %vm1990 = vmor %vm1988, %vm1989
        %v1991 = vsel %vm1990, %v1983, %v1987
        %v1992 = vand.u32 2147483647, %v1979
        %vm1993 = vcmp.eq.f32.partialorder %v1992, 8.507059e+37
        %v1994 = vand.u32 %v1979, 2147483648
        %v1995 = vor.u32 1.1754944e-38, %v1994
        %v1996 = vsel %vm1993, %v1995, %v1991
        %v1997 = vmul.f32 %v1974, %v1996
        %v1998 = vrcp.pop %v1982
        %v1999 = vmul.f32 %v1982, %v1998
        %v2000 = vsub.f32 1.0, %v1999
        %v2001 = vmul.f32 %v1998, %v2000
        %v2002 = vadd.f32 %v1998, %v2001
        %vm2003 = vweird.f32 %v1982
        %vm2004 = vweird.f32 %v1998
        %vm2005 = vmor %vm2003, %vm2004
        %v2006 = vsel %vm2005, %v1998, %v2002
        %v2007 = vand.u32 2147483647, %v1982
        %vm2008 = vcmp.eq.f32.partialorder %v2007, 8.507059e+37
        %v2009 = vand.u32 %v1982, 2147483648
        %v2010 = vor.u32 1.1754944e-38, %v2009
        %v2011 = vsel %vm2008, %v2010, %v2006
        %v2012 = vmul.f32 %v1976, %v2011
        %2013 = vrot.lane.b32.xlu0 %v1326, 104
        %v2014 = vpop.permute.xlu0 %2013
        %v2017 = vsel %vm1337, %v1997, 0
        %2019 = vmatpush.msra.mxu0 0.0
        %2020 = vmatpush.msra.mxu0 0.0
        %2021 = vmatpush.msra.mxu0 0.0
        %2022 = vmatpush.msra.mxu0 0.0
        %2023 = vmatpush.msra.mxu0 0.0
        %2024 = vmatpush.msra.mxu0 0.0
        %2025 = vmatpush.msra.mxu0 0.0
        %2026 = vmatpush.msra.mxu0 0.0
        %2027 = vmatpush.msra.mxu0 0.0
        %2028 = vmatpush.msra.mxu0 0.0
        %2029 = vmatpush.msra.mxu0 0.0
        %2030 = vmatpush.msra.mxu0 0.0
        %2031 = vmatpush.msra.mxu0 0.0
        %2032 = vmatpush.msra.mxu0 0.0
        %2033 = vmatpush.msra.mxu0 0.0
        %2034 = vmatpush.msra.mxu0 %v2014
        %2035 = vmatmul.f32.gmra.mxu0 %v2017
        %v2036 = vpop.f32.mrf.mxu0
        %v2037 = vadd.f32 0.0, %v2036
        %2038 = vdwg.mxu0
        %2039 = vrot.lane.b32.xlu0 %v1329, 104
        %v2040 = vpop.permute.xlu0 %2039
        %v2043 = vsel %vm1337, %v2012, 0
        %2045 = vmatpush.msra.mxu0 0.0
        %2046 = vmatpush.msra.mxu0 0.0
        %2047 = vmatpush.msra.mxu0 0.0
        %2048 = vmatpush.msra.mxu0 0.0
        %2049 = vmatpush.msra.mxu0 0.0
        %2050 = vmatpush.msra.mxu0 0.0
        %2051 = vmatpush.msra.mxu0 0.0
        %2052 = vmatpush.msra.mxu0 0.0
        %2053 = vmatpush.msra.mxu0 0.0
        %2054 = vmatpush.msra.mxu0 0.0
        %2055 = vmatpush.msra.mxu0 0.0
        %2056 = vmatpush.msra.mxu0 0.0
        %2057 = vmatpush.msra.mxu0 0.0
        %2058 = vmatpush.msra.mxu0 0.0
        %2059 = vmatpush.msra.mxu0 0.0
        %2060 = vmatpush.msra.mxu0 %v2040
        %2061 = vmatmul.f32.gmra.mxu0 %v2043
        %v2062 = vpop.f32.mrf.mxu0
        %v2063 = vadd.f32 0.0, %v2062
        %2064 = vdwg.mxu0
        %v2066 = vsel %vm1337, %v2037, 0
        %v2069 = vsel %vm1337, %v2063, 0
        %2071 = vmatpush.msra.mxu0 0.0
        %2072 = vmatpush.msra.mxu0 0.0
        %2073 = vmatpush.msra.mxu0 0.0
        %2074 = vmatpush.msra.mxu0 0.0
        %2075 = vmatpush.msra.mxu0 0.0
        %2076 = vmatpush.msra.mxu0 0.0
        %2077 = vmatpush.msra.mxu0 0.0
        %2078 = vmatpush.msra.mxu0 0.0
        %2079 = vmatpush.msra.mxu0 0.0
        %2080 = vmatpush.msra.mxu0 0.0
        %2081 = vmatpush.msra.mxu0 0.0
        %2082 = vmatpush.msra.mxu0 0.0
        %2083 = vmatpush.msra.mxu0 0.0
        %2084 = vmatpush.msra.mxu0 0.0
        %2085 = vmatpush.msra.mxu0 0.0
        %2086 = vmatpush.msra.mxu0 %v1336
        %2087 = vmatmul.f32.gmra.mxu0 %v2066
        %v2088 = vpop.f32.mrf.mxu0
        %v2089 = vadd.f32 0.0, %v2088
        %2090 = vmatmul.f32.gmra.mxu0 %v2069
        %v2091 = vpop.f32.mrf.mxu0
        %v2092 = vadd.f32 0.0, %v2091
        %2093 = vdwg.mxu0
        %v2094 = vadd.f32 %v1903, %v2089
        %v2095 = vadd.f32 %v1904, %v2092
        %v2096 = vld [vmem:[%s1128] sm:$0x1]
        %v2098 = vperm.slane %v2096, 0
        %v2100 = vadd.f32 %v2094, %v2098
        %v2101 = vadd.f32 %v2095, %v2098
        %v2102 = vadd.f32 %v1229, %v2100
        %v2103 = vadd.f32 %v1230, %v2101
        %v2104 = vld [vmem:[%s1131] sm:$0x1]
        %v2105 = vld [vmem:[%s1134] sm:$0x1]
        %v2106 = vsel %vm1239, %v2102, 0.0
        %2107 = vadd.xlane.f32.xlu0 %v2106
        %v2108 = vpop.xlane.xlu0 %2107
        %v2109 = vsel %vm1239, %v2103, 0.0
        %2110 = vadd.xlane.f32.xlu0 %v2109
        %v2111 = vpop.xlane.xlu0 %2110
        %v2112 = vrcp.pop 32.0
        %v2113 = vmul.f32 32.0, %v2112
        %v2114 = vsub.f32 1.0, %v2113
        %v2115 = vmul.f32 %v2112, %v2114
        %v2116 = vadd.f32 %v2112, %v2115
        %vm2117 = vweird.f32 %v2112
        %v2118 = vsel %vm2117, %v2112, %v2116
        %v2119 = vmul.f32 %v2108, %v2118
        %v2120 = vmul.f32 %v2111, %v2118
        %v2121 = vsub.f32 %v2102, %v2119
        %v2122 = vsub.f32 %v2103, %v2120
        %v2123 = vmul.f32 %v2121, %v2121
        %v2124 = vmul.f32 %v2122, %v2122
        %v2125 = vsel %vm1239, %v2123, 0.0
        %2126 = vadd.xlane.f32.xlu0 %v2125
        %v2127 = vpop.xlane.xlu0 %2126
        %v2128 = vsel %vm1239, %v2124, 0.0
        %2129 = vadd.xlane.f32.xlu0 %v2128
        %v2130 = vpop.xlane.xlu0 %2129
        %v2131 = vmul.f32 %v2127, %v2118
        %v2132 = vmul.f32 %v2130, %v2118
        %v2133 = vadd.f32 %v2131, 1e-12
        %v2134 = vadd.f32 %v2132, 1e-12
        %v2135 = vrsqrt.pop %v2133
        %v2136 = vmul.f32 %v2135, %v2133
        %v2137 = vmul.f32 %v2136, %v2135
        %v2138 = vmul.f32 0.5, %v2137
        %v2139 = vsub.f32 1.5, %v2138
        %v2140 = vmul.f32 %v2135, %v2139
        %vm2141 = vweird.f32 %v2133
        %vm2142 = vweird.f32 %v2135
        %vm2143 = vmor %vm2141, %vm2142
        %v2144 = vsel %vm2143, %v2135, %v2140
        %v2145 = vrsqrt.pop %v2134
        %v2146 = vmul.f32 %v2145, %v2134
        %v2147 = vmul.f32 %v2146, %v2145
        %v2148 = vmul.f32 0.5, %v2147
        %v2149 = vsub.f32 1.5, %v2148
        %v2150 = vmul.f32 %v2145, %v2149
        %vm2151 = vweird.f32 %v2134
        %vm2152 = vweird.f32 %v2145
        %vm2153 = vmor %vm2151, %vm2152
        %v2154 = vsel %vm2153, %v2145, %v2150
        %v2155 = vmul.f32 %v2121, %v2144
        %v2156 = vmul.f32 %v2122, %v2154
        %v2158 = vperm.slane %v2104, 0
        %v2160 = vmul.f32 %v2155, %v2158
        %v2161 = vmul.f32 %v2156, %v2158
        %v2163 = vperm.slane %v2105, 0
        %v2165 = vadd.f32 %v2160, %v2163
        %v2166 = vadd.f32 %v2161, %v2163
        %v2167 = vld [vmem:[%s1139] sm:$0xff]
        %v2168 = vld [vmem:[%s1139 + $0x8] sm:$0xff]
        %v2169 = vld [vmem:[%s1139 + $0x10] sm:$0xff]
        %v2170 = vld [vmem:[%s1139 + $0x18] sm:$0xff]
        %v2171 = vld [vmem:[%s1142] sm:$0x1]
        %v2173 = vperm.slane %v2171, 0
        %v2176 = vsel %vm1239, %v2165, 0
        %v2179 = vsel %vm1239, %v2166, 0
        %2181 = vmatpush.msra.mxu0 0.0
        %2182 = vmatpush.msra.mxu0 0.0
        %2183 = vmatpush.msra.mxu0 0.0
        %2184 = vmatpush.msra.mxu0 0.0
        %2185 = vmatpush.msra.mxu0 0.0
        %2186 = vmatpush.msra.mxu0 0.0
        %2187 = vmatpush.msra.mxu0 0.0
        %2188 = vmatpush.msra.mxu0 0.0
        %2189 = vmatpush.msra.mxu0 0.0
        %2190 = vmatpush.msra.mxu0 0.0
        %2191 = vmatpush.msra.mxu0 0.0
        %2192 = vmatpush.msra.mxu0 0.0
        %2193 = vmatpush.msra.mxu0 %v2170
        %2194 = vmatpush.msra.mxu0 %v2169
        %2195 = vmatpush.msra.mxu0 %v2168
        %2196 = vmatpush.msra.mxu0 %v2167
        %2197 = vmatmul.f32.gmra.mxu0 %v2176
        %v2198 = vpop.f32.mrf.mxu0
        %v2199 = vadd.f32 %v2173, %v2198
        %2200 = vmatmul.f32.gmra.mxu0 %v2179
        %v2201 = vpop.f32.mrf.mxu0
        %v2202 = vadd.f32 %v2173, %v2201
        %2203 = vdwg.mxu0
        %v2204 = vmul.f32 %v2199, %v2199
        %v2205 = vmul.f32 %v2202, %v2202
        %v2206 = vmul.f32 %v2199, %v2204
        %v2207 = vmul.f32 %v2202, %v2205
        %v2208 = vmul.f32 %v2206, 0.044715
        %v2209 = vmul.f32 %v2207, 0.044715
        %v2210 = vadd.f32 %v2199, %v2208
        %v2211 = vadd.f32 %v2202, %v2209
        %v2212 = vmul.f32 %v2210, 0.7978846
        %v2213 = vmul.f32 %v2211, 0.7978846
        %v2214 = vtanh.pop %v2212
        %v2215 = vtanh.pop %v2213
        %v2216 = vadd.f32 %v2214, 1.0
        %v2217 = vadd.f32 %v2215, 1.0
        %v2218 = vmul.f32 %v2216, 0.5
        %v2219 = vmul.f32 %v2217, 0.5
        %v2220 = vmul.f32 %v2199, %v2218
        %v2221 = vmul.f32 %v2202, %v2219
        %v2222 = vld [vmem:[%s1147] sm:$0xff]
        %v2223 = vld [vmem:[%s1147 + $0x8] sm:$0xff]
        %v2224 = vld [vmem:[%s1147 + $0x10] sm:$0xff]
        %v2225 = vld [vmem:[%s1147 + $0x18] sm:$0xff]
        %v2226 = vld [vmem:[%s1147 + $0x20] sm:$0xff]
        %v2227 = vld [vmem:[%s1147 + $0x28] sm:$0xff]
        %v2228 = vld [vmem:[%s1147 + $0x30] sm:$0xff]
        %v2229 = vld [vmem:[%s1147 + $0x38] sm:$0xff]
        %v2230 = vld [vmem:[%s1150] sm:$0x1]
        %v2232 = vperm.slane %v2230, 0
        %vm2234 = vcmask 523264
        %v2236 = vsel %vm2234, %v2220, 0
        %v2239 = vsel %vm2234, %v2221, 0
        %2241 = vmatpush.msra.mxu0 0.0
        %2242 = vmatpush.msra.mxu0 0.0
        %2243 = vmatpush.msra.mxu0 0.0
        %2244 = vmatpush.msra.mxu0 0.0
        %2245 = vmatpush.msra.mxu0 0.0
        %2246 = vmatpush.msra.mxu0 0.0
        %2247 = vmatpush.msra.mxu0 0.0
        %2248 = vmatpush.msra.mxu0 0.0
        %2249 = vmatpush.msra.mxu0 %v2229
        %2250 = vmatpush.msra.mxu0 %v2228
        %2251 = vmatpush.msra.mxu0 %v2227
        %2252 = vmatpush.msra.mxu0 %v2226
        %2253 = vmatpush.msra.mxu0 %v2225
        %2254 = vmatpush.msra.mxu0 %v2224
        %2255 = vmatpush.msra.mxu0 %v2223
        %2256 = vmatpush.msra.mxu0 %v2222
        %2257 = vmatmul.f32.gmra.mxu0 %v2236
        %v2258 = vpop.f32.mrf.mxu0
        %v2259 = vadd.f32 %v2232, %v2258
        %2260 = vmatmul.f32.gmra.mxu0 %v2239
        %v2261 = vpop.f32.mrf.mxu0
        %v2262 = vadd.f32 %v2232, %v2261
        %2263 = vdwg.mxu0
        %v2264 = vadd.f32 %v2165, %v2259
        %v2265 = vadd.f32 %v2166, %v2262
        %v2266 = vld [vmem:[%s1153] sm:$0x1]
        %v2267 = vld [vmem:[%s1156] sm:$0x1]
        %v2268 = vsel %vm1239, %v2264, 0.0
        %2269 = vadd.xlane.f32.xlu0 %v2268
        %v2270 = vpop.xlane.xlu0 %2269
        %v2271 = vsel %vm1239, %v2265, 0.0
        %2272 = vadd.xlane.f32.xlu0 %v2271
        %v2273 = vpop.xlane.xlu0 %2272
        %v2274 = vmul.f32 %v2270, %v2118
        %v2275 = vmul.f32 %v2273, %v2118
        %v2276 = vsub.f32 %v2264, %v2274
        %v2277 = vsub.f32 %v2265, %v2275
        %v2278 = vmul.f32 %v2276, %v2276
        %v2279 = vmul.f32 %v2277, %v2277
        %v2280 = vsel %vm1239, %v2278, 0.0
        %2281 = vadd.xlane.f32.xlu0 %v2280
        %v2282 = vpop.xlane.xlu0 %2281
        %v2283 = vsel %vm1239, %v2279, 0.0
        %2284 = vadd.xlane.f32.xlu0 %v2283
        %v2285 = vpop.xlane.xlu0 %2284
        %v2286 = vmul.f32 %v2282, %v2118
        %v2287 = vmul.f32 %v2285, %v2118
        %v2288 = vadd.f32 %v2286, 1e-12
        %v2289 = vadd.f32 %v2287, 1e-12
        %v2290 = vrsqrt.pop %v2288
        %v2291 = vmul.f32 %v2290, %v2288
        %v2292 = vmul.f32 %v2291, %v2290
        %v2293 = vmul.f32 0.5, %v2292
        %v2294 = vsub.f32 1.5, %v2293
        %v2295 = vmul.f32 %v2290, %v2294
        %vm2296 = vweird.f32 %v2288
        %vm2297 = vweird.f32 %v2290
        %vm2298 = vmor %vm2296, %vm2297
        %v2299 = vsel %vm2298, %v2290, %v2295
        %v2300 = vrsqrt.pop %v2289
        %v2301 = vmul.f32 %v2300, %v2289
        %v2302 = vmul.f32 %v2301, %v2300
        %v2303 = vmul.f32 0.5, %v2302
        %v2304 = vsub.f32 1.5, %v2303
        %v2305 = vmul.f32 %v2300, %v2304
        %vm2306 = vweird.f32 %v2289
        %vm2307 = vweird.f32 %v2300
        %vm2308 = vmor %vm2306, %vm2307
        %v2309 = vsel %vm2308, %v2300, %v2305
        %v2310 = vmul.f32 %v2276, %v2299
        %v2311 = vmul.f32 %v2277, %v2309
        %v2313 = vperm.slane %v2266, 0
        %v2315 = vmul.f32 %v2310, %v2313
        %v2316 = vmul.f32 %v2311, %v2313
        %v2318 = vperm.slane %v2267, 0
        %v2320 = vadd.f32 %v2315, %v2318
        %v2321 = vadd.f32 %v2316, %v2318
        %2322 = vst.msk [vmem:[#allocation2] sm:$0xff] %vm1239, %v2320
        %2323 = vst.msk [vmem:[#allocation2 + $0x8] sm:$0xff] %vm1239, %v2321
        %p2324 = scmp.eq.s32.totalorder %s73, 1
        // Predicated region
        $region145: #{tpu_custom_call.1} parent=139 // pred_check
          %p2325 = pneg %p2324
        $region146: #{tpu_custom_call.1} parent=139 // pred_check_branch
          %2327 = sbr.rel (%p2325) target = $region148
        $region147: #{tpu_custom_call.1} parent=139 // pred_region
          %v2328 = vlaneseq
          %v2329 = vshrl.u32 %v2328, 7
          %v2330 = vadd.s32 %v2329, 8
          %v2331 = vlaneseq
          %v2332 = vand.u32 %v2331, 127
          %v2333 = vadd.s32 %v2329, 1
          %v2334 = vadd.s32 %v2330, 1
          %vm2335 = vcmp.eq.s32.totalorder %v2332, %v2333
          %vm2336 = vcmp.eq.s32.totalorder %v2332, %v2334
          %vm2337 = vcmp.lt.s32.totalorder %v2329, 0
          %v2338 = vsub.s32 0, %v2329
          %v2339 = vsel %vm2337, %v2338, %v2329
          %v2340 = vshrl.u32 %v2339, 3
          %v2341 = vand.u32 %v2339, 7
          %v2342 = vsub.s32 0, %v2341
          %v2343 = vsel %vm2337, %v2342, %v2341
          %vm2344 = vcmp.lt.s32.totalorder %v2330, 0
          %v2345 = vsub.s32 0, %v2330
          %v2346 = vsel %vm2344, %v2345, %v2330
          %v2347 = vshrl.u32 %v2346, 3
          %v2348 = vand.u32 %v2346, 7
          %v2349 = vsub.s32 0, %v2348
          %v2350 = vsel %vm2344, %v2349, %v2348
          %vm2351 = vcmp.ne.s32.totalorder %v2343, 0
          %vm2352 = vcmp.ne.s32.totalorder %v2350, 0
          %vm2353 = vcmp.lt.s32.totalorder %v2343, 0
          %vm2354 = vcmp.lt.s32.totalorder %v2350, 0
          %vm2355 = vmand %vm2353, %vm2351
          %vm2356 = vmand %vm2354, %vm2352
          %v2357 = vadd.s32 %v2343, 8
          %v2358 = vadd.s32 %v2350, 8
          %v2359 = vsel %vm2355, %v2357, %v2343
          %v2360 = vsel %vm2356, %v2358, %v2350
          %vm2361 = vcmp.lt.s32.totalorder %v2359, 7
          %vm2362 = vcmp.lt.s32.totalorder %v2360, 7
          %vm2363 = vmand %vm2335, %vm2361
          %vm2364 = vmand %vm2336, %vm2362
          %v2365 = vsel %vm2363, 1.0, 0.0
          %v2366 = vsel %vm2364, 1.0, 0.0
          %vm2367 = vcmask 130048
          %v2369 = vsel %vm2367, %v2365, 0
          %v2372 = vsel %vm2367, %v2366, 0
          %2374 = vmatpush.msra.mxu0 0.0
          %2375 = vmatpush.msra.mxu0 0.0
          %2376 = vmatpush.msra.mxu0 0.0
          %2377 = vmatpush.msra.mxu0 0.0
          %2378 = vmatpush.msra.mxu0 0.0
          %2379 = vmatpush.msra.mxu0 0.0
          %2380 = vmatpush.msra.mxu0 0.0
          %2381 = vmatpush.msra.mxu0 0.0
          %2382 = vmatpush.msra.mxu0 0.0
          %2383 = vmatpush.msra.mxu0 0.0
          %2384 = vmatpush.msra.mxu0 0.0
          %2385 = vmatpush.msra.mxu0 0.0
          %2386 = vmatpush.msra.mxu0 0.0
          %2387 = vmatpush.msra.mxu0 0.0
          %2388 = vmatpush.msra.mxu0 %v2321
          %2389 = vmatpush.msra.mxu0 %v2320
          %2390 = vmatmul.f32.gmra.mxu0 %v2369
          %v2391 = vpop.f32.mrf.mxu0
          %v2392 = vadd.f32 0.0, %v2391
          %2393 = vmatmul.f32.gmra.mxu0 %v2372
          %v2394 = vpop.f32.mrf.mxu0
          %v2395 = vadd.f32 0.0, %v2394
          %2396 = vdwg.mxu0
          %v2397 = vadd.s32 %v2329, 2
          %v2398 = vadd.s32 %v2330, 2
          %vm2399 = vcmp.eq.s32.totalorder %v2332, %v2397
          %vm2400 = vcmp.eq.s32.totalorder %v2332, %v2398
          %vm2401 = vcmp.lt.s32.totalorder %v2359, 6
          %vm2402 = vcmp.lt.s32.totalorder %v2360, 6
          %vm2403 = vmand %vm2399, %vm2401
          %vm2404 = vmand %vm2400, %vm2402
          %v2405 = vsel %vm2403, 1.0, 0.0
          %v2406 = vsel %vm2404, 1.0, 0.0
          %v2408 = vsel %vm2367, %v2405, 0
          %v2411 = vsel %vm2367, %v2406, 0
          %2413 = vmatpush.msra.mxu0 0.0
          %2414 = vmatpush.msra.mxu0 0.0
          %2415 = vmatpush.msra.mxu0 0.0
          %2416 = vmatpush.msra.mxu0 0.0
          %2417 = vmatpush.msra.mxu0 0.0
          %2418 = vmatpush.msra.mxu0 0.0
          %2419 = vmatpush.msra.mxu0 0.0
          %2420 = vmatpush.msra.mxu0 0.0
          %2421 = vmatpush.msra.mxu0 0.0
          %2422 = vmatpush.msra.mxu0 0.0
          %2423 = vmatpush.msra.mxu0 0.0
          %2424 = vmatpush.msra.mxu0 0.0
          %2425 = vmatpush.msra.mxu0 0.0
          %2426 = vmatpush.msra.mxu0 0.0
          %2427 = vmatpush.msra.mxu0 %v2321
          %2428 = vmatpush.msra.mxu0 %v2320
          %2429 = vmatmul.f32.gmra.mxu0 %v2408
          %v2430 = vpop.f32.mrf.mxu0
          %v2431 = vadd.f32 0.0, %v2430
          %2432 = vmatmul.f32.gmra.mxu0 %v2411
          %v2433 = vpop.f32.mrf.mxu0
          %v2434 = vadd.f32 0.0, %v2433
          %2435 = vdwg.mxu0
          %v2436 = vadd.s32 %v2329, 3
          %v2437 = vadd.s32 %v2330, 3
          %vm2438 = vcmp.eq.s32.totalorder %v2332, %v2436
          %vm2439 = vcmp.eq.s32.totalorder %v2332, %v2437
          %vm2440 = vcmp.lt.s32.totalorder %v2359, 5
          %vm2441 = vcmp.lt.s32.totalorder %v2360, 5
          %vm2442 = vmand %vm2438, %vm2440
          %vm2443 = vmand %vm2439, %vm2441
          %v2444 = vsel %vm2442, 1.0, 0.0
          %v2445 = vsel %vm2443, 1.0, 0.0
          %v2447 = vsel %vm2367, %v2444, 0
          %v2450 = vsel %vm2367, %v2445, 0
          %2452 = vmatpush.msra.mxu0 0.0
          %2453 = vmatpush.msra.mxu0 0.0
          %2454 = vmatpush.msra.mxu0 0.0
          %2455 = vmatpush.msra.mxu0 0.0
          %2456 = vmatpush.msra.mxu0 0.0
          %2457 = vmatpush.msra.mxu0 0.0
          %2458 = vmatpush.msra.mxu0 0.0
          %2459 = vmatpush.msra.mxu0 0.0
          %2460 = vmatpush.msra.mxu0 0.0
          %2461 = vmatpush.msra.mxu0 0.0
          %2462 = vmatpush.msra.mxu0 0.0
          %2463 = vmatpush.msra.mxu0 0.0
          %2464 = vmatpush.msra.mxu0 0.0
          %2465 = vmatpush.msra.mxu0 0.0
          %2466 = vmatpush.msra.mxu0 %v2321
          %2467 = vmatpush.msra.mxu0 %v2320
          %2468 = vmatmul.f32.gmra.mxu0 %v2447
          %v2469 = vpop.f32.mrf.mxu0
          %v2470 = vadd.f32 0.0, %v2469
          %2471 = vmatmul.f32.gmra.mxu0 %v2450
          %v2472 = vpop.f32.mrf.mxu0
          %v2473 = vadd.f32 0.0, %v2472
          %2474 = vdwg.mxu0
          %v2475 = vld [vmem:[%s41] sm:$0xff]
          %v2476 = vld [vmem:[%s41 + $0x8] sm:$0xff]
          %v2477 = vld [vmem:[%s41 + $0x10] sm:$0xff]
          %v2478 = vld [vmem:[%s41 + $0x18] sm:$0xff]
          %s2479 = scalar_lea.vmem %s41, 32
          %v2480 = vld [vmem:[%s2479] sm:$0xff]
          %v2481 = vld [vmem:[%s2479 + $0x8] sm:$0xff]
          %v2482 = vld [vmem:[%s2479 + $0x10] sm:$0xff]
          %v2483 = vld [vmem:[%s2479 + $0x18] sm:$0xff]
          %v2485 = vsel %vm1239, %v2392, 0
          %v2488 = vsel %vm1239, %v2395, 0
          %2490 = vmatpush.msra.mxu0 0.0
          %2491 = vmatpush.msra.mxu0 0.0
          %2492 = vmatpush.msra.mxu0 0.0
          %2493 = vmatpush.msra.mxu0 0.0
          %2494 = vmatpush.msra.mxu0 0.0
          %2495 = vmatpush.msra.mxu0 0.0
          %2496 = vmatpush.msra.mxu0 0.0
          %2497 = vmatpush.msra.mxu0 0.0
          %2498 = vmatpush.msra.mxu0 0.0
          %2499 = vmatpush.msra.mxu0 0.0
          %2500 = vmatpush.msra.mxu0 0.0
          %2501 = vmatpush.msra.mxu0 0.0
          %2502 = vmatpush.msra.mxu0 %v2483
          %2503 = vmatpush.msra.mxu0 %v2482
          %2504 = vmatpush.msra.mxu0 %v2481
          %2505 = vmatpush.msra.mxu0 %v2480
          %2506 = vmatmul.f32.gmra.mxu0 %v2485
          %v2507 = vpop.f32.mrf.mxu0
          %v2508 = vadd.f32 0.0, %v2507
          %2509 = vmatmul.f32.gmra.mxu0 %v2488
          %v2510 = vpop.f32.mrf.mxu0
          %v2511 = vadd.f32 0.0, %v2510
          %2512 = vdwg.mxu0
          %v2514 = vsel %vm1239, %v2320, 0
          %v2517 = vsel %vm1239, %v2321, 0
          %2519 = vmatpush.msra.mxu0 0.0
          %2520 = vmatpush.msra.mxu0 0.0
          %2521 = vmatpush.msra.mxu0 0.0
          %2522 = vmatpush.msra.mxu0 0.0
          %2523 = vmatpush.msra.mxu0 0.0
          %2524 = vmatpush.msra.mxu0 0.0
          %2525 = vmatpush.msra.mxu0 0.0
          %2526 = vmatpush.msra.mxu0 0.0
          %2527 = vmatpush.msra.mxu0 0.0
          %2528 = vmatpush.msra.mxu0 0.0
          %2529 = vmatpush.msra.mxu0 0.0
          %2530 = vmatpush.msra.mxu0 0.0
          %2531 = vmatpush.msra.mxu0 %v2478
          %2532 = vmatpush.msra.mxu0 %v2477
          %2533 = vmatpush.msra.mxu0 %v2476
          %2534 = vmatpush.msra.mxu0 %v2475
          %2535 = vmatmul.f32.gmra.mxu0 %v2514
          %v2536 = vpop.f32.mrf.mxu0
          %v2537 = vadd.f32 %v2508, %v2536
          %2538 = vmatmul.f32.gmra.mxu0 %v2517
          %v2539 = vpop.f32.mrf.mxu0
          %v2540 = vadd.f32 %v2511, %v2539
          %2541 = vdwg.mxu0
          %v2542 = vld [vmem:[%s43] sm:$0x1]
          %v2544 = vperm.slane %v2542, 0
          %v2546 = vadd.f32 %v2537, %v2544
          %v2547 = vadd.f32 %v2540, %v2544
          %v2548 = vmax.f32 %v2546, 0.0
          %v2549 = vmax.f32 %v2547, 0.0
          %vm2550 = vcmp.le.s32.totalorder %v2359, 6
          %vm2551 = vcmp.le.s32.totalorder %v2360, 6
          %v2552 = vsel %vm2550, %v2548, 0.0
          %v2553 = vsel %vm2551, %v2549, 0.0
          %v2554 = vsel %vm2367, %v2552, -inf
          %v2555 = vrot.slane %v2554, 4
          %v2556 = vmax.f32 %v2554, %v2555
          %v2557 = vrot.slane %v2556, 2
          %v2558 = vmax.f32 %v2556, %v2557
          %v2559 = vrot.slane %v2558, 1
          %v2560 = vmax.f32 %v2558, %v2559
          %v2561 = vsel %vm2367, %v2553, -inf
          %v2562 = vrot.slane %v2561, 4
          %v2563 = vmax.f32 %v2561, %v2562
          %v2564 = vrot.slane %v2563, 2
          %v2565 = vmax.f32 %v2563, %v2564
          %v2566 = vrot.slane %v2565, 1
          %v2567 = vmax.f32 %v2565, %v2566
          %v2568 = vld [vmem:[%s45] sm:$0xff]
          %v2569 = vld [vmem:[%s45 + $0x8] sm:$0xff]
          %v2570 = vld [vmem:[%s45 + $0x10] sm:$0xff]
          %v2571 = vld [vmem:[%s45 + $0x18] sm:$0xff]
          %s2572 = scalar_lea.vmem %s45, 32
          %v2573 = vld [vmem:[%s2572] sm:$0xff]
          %v2574 = vld [vmem:[%s2572 + $0x8] sm:$0xff]
          %v2575 = vld [vmem:[%s2572 + $0x10] sm:$0xff]
          %v2576 = vld [vmem:[%s2572 + $0x18] sm:$0xff]
          %2577 = vmatpush.msra.mxu0 0.0
          %2578 = vmatpush.msra.mxu0 0.0
          %2579 = vmatpush.msra.mxu0 0.0
          %2580 = vmatpush.msra.mxu0 0.0
          %2581 = vmatpush.msra.mxu0 0.0
          %2582 = vmatpush.msra.mxu0 0.0
          %2583 = vmatpush.msra.mxu0 0.0
          %2584 = vmatpush.msra.mxu0 0.0
          %2585 = vmatpush.msra.mxu0 0.0
          %2586 = vmatpush.msra.mxu0 0.0
          %2587 = vmatpush.msra.mxu0 0.0
          %2588 = vmatpush.msra.mxu0 0.0
          %2589 = vmatpush.msra.mxu0 %v2576
          %2590 = vmatpush.msra.mxu0 %v2575
          %2591 = vmatpush.msra.mxu0 %v2574
          %2592 = vmatpush.msra.mxu0 %v2573
          %2593 = vmatmul.f32.gmra.mxu0 %v2485
          %v2594 = vpop.f32.mrf.mxu0
          %v2595 = vadd.f32 0.0, %v2594
          %2596 = vmatmul.f32.gmra.mxu0 %v2488
          %v2597 = vpop.f32.mrf.mxu0
          %v2598 = vadd.f32 0.0, %v2597
          %2599 = vdwg.mxu0
          %2600 = vmatpush.msra.mxu0 0.0
          %2601 = vmatpush.msra.mxu0 0.0
          %2602 = vmatpush.msra.mxu0 0.0
          %2603 = vmatpush.msra.mxu0 0.0
          %2604 = vmatpush.msra.mxu0 0.0
          %2605 = vmatpush.msra.mxu0 0.0
          %2606 = vmatpush.msra.mxu0 0.0
          %2607 = vmatpush.msra.mxu0 0.0
          %2608 = vmatpush.msra.mxu0 0.0
          %2609 = vmatpush.msra.mxu0 0.0
          %2610 = vmatpush.msra.mxu0 0.0
          %2611 = vmatpush.msra.mxu0 0.0
          %2612 = vmatpush.msra.mxu0 %v2571
          %2613 = vmatpush.msra.mxu0 %v2570
          %2614 = vmatpush.msra.mxu0 %v2569
          %2615 = vmatpush.msra.mxu0 %v2568
          %2616 = vmatmul.f32.gmra.mxu0 %v2514
          %v2617 = vpop.f32.mrf.mxu0
          %v2618 = vadd.f32 %v2595, %v2617
          %2619 = vmatmul.f32.gmra.mxu0 %v2517
          %v2620 = vpop.f32.mrf.mxu0
          %v2621 = vadd.f32 %v2598, %v2620
          %2622 = vdwg.mxu0
          %s2623 = scalar_lea.vmem %s45, 64
          %v2624 = vld [vmem:[%s2623] sm:$0xff]
          %v2625 = vld [vmem:[%s2623 + $0x8] sm:$0xff]
          %v2626 = vld [vmem:[%s2623 + $0x10] sm:$0xff]
          %v2627 = vld [vmem:[%s2623 + $0x18] sm:$0xff]
          %v2629 = vsel %vm1239, %v2431, 0
          %v2632 = vsel %vm1239, %v2434, 0
          %2634 = vmatpush.msra.mxu0 0.0
          %2635 = vmatpush.msra.mxu0 0.0
          %2636 = vmatpush.msra.mxu0 0.0
          %2637 = vmatpush.msra.mxu0 0.0
          %2638 = vmatpush.msra.mxu0 0.0
          %2639 = vmatpush.msra.mxu0 0.0
          %2640 = vmatpush.msra.mxu0 0.0
          %2641 = vmatpush.msra.mxu0 0.0
          %2642 = vmatpush.msra.mxu0 0.0
          %2643 = vmatpush.msra.mxu0 0.0
          %2644 = vmatpush.msra.mxu0 0.0
          %2645 = vmatpush.msra.mxu0 0.0
          %2646 = vmatpush.msra.mxu0 %v2627
          %2647 = vmatpush.msra.mxu0 %v2626
          %2648 = vmatpush.msra.mxu0 %v2625
          %2649 = vmatpush.msra.mxu0 %v2624
          %2650 = vmatmul.f32.gmra.mxu0 %v2629
          %v2651 = vpop.f32.mrf.mxu0
          %v2652 = vadd.f32 0.0, %v2651
          %2653 = vmatmul.f32.gmra.mxu0 %v2632
          %v2654 = vpop.f32.mrf.mxu0
          %v2655 = vadd.f32 0.0, %v2654
          %2656 = vdwg.mxu0
          %v2657 = vadd.f32 %v2618, %v2652
          %v2658 = vadd.f32 %v2621, %v2655
          %v2659 = vld [vmem:[%s47] sm:$0x1]
          %v2661 = vperm.slane %v2659, 0
          %v2663 = vadd.f32 %v2657, %v2661
          %v2664 = vadd.f32 %v2658, %v2661
          %v2665 = vmax.f32 %v2663, 0.0
          %v2666 = vmax.f32 %v2664, 0.0
          %vm2667 = vcmp.le.s32.totalorder %v2359, 5
          %vm2668 = vcmp.le.s32.totalorder %v2360, 5
          %v2669 = vsel %vm2667, %v2665, 0.0
          %v2670 = vsel %vm2668, %v2666, 0.0
          %v2671 = vsel %vm2367, %v2669, -inf
          %v2672 = vrot.slane %v2671, 4
          %v2673 = vmax.f32 %v2671, %v2672
          %v2674 = vrot.slane %v2673, 2
          %v2675 = vmax.f32 %v2673, %v2674
          %v2676 = vrot.slane %v2675, 1
          %v2677 = vmax.f32 %v2675, %v2676
          %v2678 = vsel %vm2367, %v2670, -inf
          %v2679 = vrot.slane %v2678, 4
          %v2680 = vmax.f32 %v2678, %v2679
          %v2681 = vrot.slane %v2680, 2
          %v2682 = vmax.f32 %v2680, %v2681
          %v2683 = vrot.slane %v2682, 1
          %v2684 = vmax.f32 %v2682, %v2683
          %v2685 = vld [vmem:[%s49] sm:$0xff]
          %v2686 = vld [vmem:[%s49 + $0x8] sm:$0xff]
          %v2687 = vld [vmem:[%s49 + $0x10] sm:$0xff]
          %v2688 = vld [vmem:[%s49 + $0x18] sm:$0xff]
          %s2689 = scalar_lea.vmem %s49, 32
          %v2690 = vld [vmem:[%s2689] sm:$0xff]
          %v2691 = vld [vmem:[%s2689 + $0x8] sm:$0xff]
          %v2692 = vld [vmem:[%s2689 + $0x10] sm:$0xff]
          %v2693 = vld [vmem:[%s2689 + $0x18] sm:$0xff]
          %2694 = vmatpush.msra.mxu0 0.0
          %2695 = vmatpush.msra.mxu0 0.0
          %2696 = vmatpush.msra.mxu0 0.0
          %2697 = vmatpush.msra.mxu0 0.0
          %2698 = vmatpush.msra.mxu0 0.0
          %2699 = vmatpush.msra.mxu0 0.0
          %2700 = vmatpush.msra.mxu0 0.0
          %2701 = vmatpush.msra.mxu0 0.0
          %2702 = vmatpush.msra.mxu0 0.0
          %2703 = vmatpush.msra.mxu0 0.0
          %2704 = vmatpush.msra.mxu0 0.0
          %2705 = vmatpush.msra.mxu0 0.0
          %2706 = vmatpush.msra.mxu0 %v2693
          %2707 = vmatpush.msra.mxu0 %v2692
          %2708 = vmatpush.msra.mxu0 %v2691
          %2709 = vmatpush.msra.mxu0 %v2690
          %2710 = vmatmul.f32.gmra.mxu0 %v2485
          %v2711 = vpop.f32.mrf.mxu0
          %v2712 = vadd.f32 0.0, %v2711
          %2713 = vmatmul.f32.gmra.mxu0 %v2488
          %v2714 = vpop.f32.mrf.mxu0
          %v2715 = vadd.f32 0.0, %v2714
          %2716 = vdwg.mxu0
          %2717 = vmatpush.msra.mxu0 0.0
          %2718 = vmatpush.msra.mxu0 0.0
          %2719 = vmatpush.msra.mxu0 0.0
          %2720 = vmatpush.msra.mxu0 0.0
          %2721 = vmatpush.msra.mxu0 0.0
          %2722 = vmatpush.msra.mxu0 0.0
          %2723 = vmatpush.msra.mxu0 0.0
          %2724 = vmatpush.msra.mxu0 0.0
          %2725 = vmatpush.msra.mxu0 0.0
          %2726 = vmatpush.msra.mxu0 0.0
          %2727 = vmatpush.msra.mxu0 0.0
          %2728 = vmatpush.msra.mxu0 0.0
          %2729 = vmatpush.msra.mxu0 %v2688
          %2730 = vmatpush.msra.mxu0 %v2687
          %2731 = vmatpush.msra.mxu0 %v2686
          %2732 = vmatpush.msra.mxu0 %v2685
          %2733 = vmatmul.f32.gmra.mxu0 %v2514
          %v2734 = vpop.f32.mrf.mxu0
          %v2735 = vadd.f32 %v2712, %v2734
          %2736 = vmatmul.f32.gmra.mxu0 %v2517
          %v2737 = vpop.f32.mrf.mxu0
          %v2738 = vadd.f32 %v2715, %v2737
          %2739 = vdwg.mxu0
          %s2740 = scalar_lea.vmem %s49, 64
          %v2741 = vld [vmem:[%s2740] sm:$0xff]
          %v2742 = vld [vmem:[%s2740 + $0x8] sm:$0xff]
          %v2743 = vld [vmem:[%s2740 + $0x10] sm:$0xff]
          %v2744 = vld [vmem:[%s2740 + $0x18] sm:$0xff]
          %2745 = vmatpush.msra.mxu0 0.0
          %2746 = vmatpush.msra.mxu0 0.0
          %2747 = vmatpush.msra.mxu0 0.0
          %2748 = vmatpush.msra.mxu0 0.0
          %2749 = vmatpush.msra.mxu0 0.0
          %2750 = vmatpush.msra.mxu0 0.0
          %2751 = vmatpush.msra.mxu0 0.0
          %2752 = vmatpush.msra.mxu0 0.0
          %2753 = vmatpush.msra.mxu0 0.0
          %2754 = vmatpush.msra.mxu0 0.0
          %2755 = vmatpush.msra.mxu0 0.0
          %2756 = vmatpush.msra.mxu0 0.0
          %2757 = vmatpush.msra.mxu0 %v2744
          %2758 = vmatpush.msra.mxu0 %v2743
          %2759 = vmatpush.msra.mxu0 %v2742
          %2760 = vmatpush.msra.mxu0 %v2741
          %2761 = vmatmul.f32.gmra.mxu0 %v2629
          %v2762 = vpop.f32.mrf.mxu0
          %v2763 = vadd.f32 0.0, %v2762
          %2764 = vmatmul.f32.gmra.mxu0 %v2632
          %v2765 = vpop.f32.mrf.mxu0
          %v2766 = vadd.f32 0.0, %v2765
          %2767 = vdwg.mxu0
          %v2768 = vadd.f32 %v2735, %v2763
          %v2769 = vadd.f32 %v2738, %v2766
          %s2770 = scalar_lea.vmem %s49, 96
          %v2771 = vld [vmem:[%s2770] sm:$0xff]
          %v2772 = vld [vmem:[%s2770 + $0x8] sm:$0xff]
          %v2773 = vld [vmem:[%s2770 + $0x10] sm:$0xff]
          %v2774 = vld [vmem:[%s2770 + $0x18] sm:$0xff]
          %v2776 = vsel %vm1239, %v2470, 0
          %v2779 = vsel %vm1239, %v2473, 0
          %2781 = vmatpush.msra.mxu0 0.0
          %2782 = vmatpush.msra.mxu0 0.0
          %2783 = vmatpush.msra.mxu0 0.0
          %2784 = vmatpush.msra.mxu0 0.0
          %2785 = vmatpush.msra.mxu0 0.0
          %2786 = vmatpush.msra.mxu0 0.0
          %2787 = vmatpush.msra.mxu0 0.0
          %2788 = vmatpush.msra.mxu0 0.0
          %2789 = vmatpush.msra.mxu0 0.0
          %2790 = vmatpush.msra.mxu0 0.0
          %2791 = vmatpush.msra.mxu0 0.0
          %2792 = vmatpush.msra.mxu0 0.0
          %2793 = vmatpush.msra.mxu0 %v2774
          %2794 = vmatpush.msra.mxu0 %v2773
          %2795 = vmatpush.msra.mxu0 %v2772
          %2796 = vmatpush.msra.mxu0 %v2771
          %2797 = vmatmul.f32.gmra.mxu0 %v2776
          %v2798 = vpop.f32.mrf.mxu0
          %v2799 = vadd.f32 0.0, %v2798
          %2800 = vmatmul.f32.gmra.mxu0 %v2779
          %v2801 = vpop.f32.mrf.mxu0
          %v2802 = vadd.f32 0.0, %v2801
          %2803 = vdwg.mxu0
          %v2804 = vadd.f32 %v2768, %v2799
          %v2805 = vadd.f32 %v2769, %v2802
          %v2806 = vld [vmem:[%s51] sm:$0x1]
          %v2808 = vperm.slane %v2806, 0
          %v2810 = vadd.f32 %v2804, %v2808
          %v2811 = vadd.f32 %v2805, %v2808
          %v2812 = vmax.f32 %v2810, 0.0
          %v2813 = vmax.f32 %v2811, 0.0
          %vm2814 = vcmp.le.s32.totalorder %v2359, 4
          %vm2815 = vcmp.le.s32.totalorder %v2360, 4
          %v2816 = vsel %vm2814, %v2812, 0.0
          %v2817 = vsel %vm2815, %v2813, 0.0
          %v2818 = vsel %vm2367, %v2816, -inf
          %v2819 = vrot.slane %v2818, 4
          %v2820 = vmax.f32 %v2818, %v2819
          %v2821 = vrot.slane %v2820, 2
          %v2822 = vmax.f32 %v2820, %v2821
          %v2823 = vrot.slane %v2822, 1
          %v2824 = vmax.f32 %v2822, %v2823
          %v2825 = vsel %vm2367, %v2817, -inf
          %v2826 = vrot.slane %v2825, 4
          %v2827 = vmax.f32 %v2825, %v2826
          %v2828 = vrot.slane %v2827, 2
          %v2829 = vmax.f32 %v2827, %v2828
          %v2830 = vrot.slane %v2829, 1
          %v2831 = vmax.f32 %v2829, %v2830
          %v2832 = vld [vmem:[%s53] sm:$0xff]
          %v2833 = vld [vmem:[%s53 + $0x8] sm:$0xff]
          %v2834 = vld [vmem:[%s55] sm:$0xff]
          %v2835 = vld [vmem:[%s55 + $0x8] sm:$0xff]
          %vm2838 = vcmask 1041409
          %v2839 = vsel %vm2838, %v2684, %v2677
          %v2840 = vsel %vm2367, %v2839, 0
          %2842 = vmatpush.msra.mxu0 0.0
          %2843 = vmatpush.msra.mxu0 0.0
          %2844 = vmatpush.msra.mxu0 0.0
          %2845 = vmatpush.msra.mxu0 0.0
          %2846 = vmatpush.msra.mxu0 0.0
          %2847 = vmatpush.msra.mxu0 0.0
          %2848 = vmatpush.msra.mxu0 0.0
          %2849 = vmatpush.msra.mxu0 0.0
          %2850 = vmatpush.msra.mxu0 0.0
          %2851 = vmatpush.msra.mxu0 0.0
          %2852 = vmatpush.msra.mxu0 0.0
          %2853 = vmatpush.msra.mxu0 0.0
          %2854 = vmatpush.msra.mxu0 0.0
          %2855 = vmatpush.msra.mxu0 0.0
          %2856 = vmatpush.msra.mxu0 %v2835
          %2857 = vmatpush.msra.mxu0 %v2834
          %2858 = vmatmul.f32.gmra.mxu0 %v2840
          %v2859 = vpop.f32.mrf.mxu0
          %v2860 = vadd.f32 0.0, %v2859
          %2861 = vdwg.mxu0
          %v2864 = vsel %vm2838, %v2567, %v2560
          %v2865 = vsel %vm2367, %v2864, 0
          %2867 = vmatpush.msra.mxu0 0.0
          %2868 = vmatpush.msra.mxu0 0.0
          %2869 = vmatpush.msra.mxu0 0.0
          %2870 = vmatpush.msra.mxu0 0.0
          %2871 = vmatpush.msra.mxu0 0.0
          %2872 = vmatpush.msra.mxu0 0.0
          %2873 = vmatpush.msra.mxu0 0.0
          %2874 = vmatpush.msra.mxu0 0.0
          %2875 = vmatpush.msra.mxu0 0.0
          %2876 = vmatpush.msra.mxu0 0.0
          %2877 = vmatpush.msra.mxu0 0.0
          %2878 = vmatpush.msra.mxu0 0.0
          %2879 = vmatpush.msra.mxu0 0.0
          %2880 = vmatpush.msra.mxu0 0.0
          %2881 = vmatpush.msra.mxu0 %v2833
          %2882 = vmatpush.msra.mxu0 %v2832
          %2883 = vmatmul.f32.gmra.mxu0 %v2865
          %v2884 = vpop.f32.mrf.mxu0
          %v2885 = vadd.f32 %v2860, %v2884
          %2886 = vdwg.mxu0
          %v2887 = vld [vmem:[%s57] sm:$0xff]
          %v2888 = vld [vmem:[%s57 + $0x8] sm:$0xff]
          %v2891 = vsel %vm2838, %v2831, %v2824
          %v2892 = vsel %vm2367, %v2891, 0
          %2894 = vmatpush.msra.mxu0 0.0
          %2895 = vmatpush.msra.mxu0 0.0
          %2896 = vmatpush.msra.mxu0 0.0
          %2897 = vmatpush.msra.mxu0 0.0
          %2898 = vmatpush.msra.mxu0 0.0
          %2899 = vmatpush.msra.mxu0 0.0
          %2900 = vmatpush.msra.mxu0 0.0
          %2901 = vmatpush.msra.mxu0 0.0
          %2902 = vmatpush.msra.mxu0 0.0
          %2903 = vmatpush.msra.mxu0 0.0
          %2904 = vmatpush.msra.mxu0 0.0
          %2905 = vmatpush.msra.mxu0 0.0
          %2906 = vmatpush.msra.mxu0 0.0
          %2907 = vmatpush.msra.mxu0 0.0
          %2908 = vmatpush.msra.mxu0 %v2888
          %2909 = vmatpush.msra.mxu0 %v2887
          %2910 = vmatmul.f32.gmra.mxu0 %v2892
          %v2911 = vpop.f32.mrf.mxu0
          %v2912 = vadd.f32 0.0, %v2911
          %2913 = vdwg.mxu0
          %v2914 = vadd.f32 %v2885, %v2912
          %v2915 = vld [vmem:[%s59] sm:$0x1]
          %v2917 = vperm.slane %v2915, 0
          %v2919 = vadd.f32 %v2914, %v2917
          %2920 = vst [vmem:[#allocation3] sm:$0x3] %v2919
        $region148: #{tpu_custom_call.1} parent=139 // pred_fallthru
          _
        // Predicated region
        $region149: #{tpu_custom_call.1} parent=139 // pred_check
          %p2921 = pneg %p796
        $region150: #{tpu_custom_call.1} parent=139 // pred_check_branch
          %2923 = sbr.rel (%p2921) target = $region152
        $region151: #{tpu_custom_call.1} parent=139 // pred_region
          %2925 = vsyncadd [#allocation4], 0
          %s2927 = sshll.u32 [#allocation3], 4
          %s2928 = int_to_ptr.vmem [resolvable:$true] %s2927
          %s2929 = sshll.u32 %s61, 4
          %s2930 = int_to_ptr.hbm [resolvable:$true] %s2929
          %2932 = dma.vmem_to_hbm [thread:$0]  %s2928, 32, %s2930, [#allocation4]
        $region152: #{tpu_custom_call.1} parent=139 // pred_fallthru
          _
        // Predicated region
        $region153: #{tpu_custom_call.1} parent=139 // pred_check
          %p2933 = pneg %p796
        $region154: #{tpu_custom_call.1} parent=139 // pred_check_branch
          %2935 = sbr.rel (%p2933) target = $region156
        $region155: #{tpu_custom_call.1} parent=139 // pred_region
          %2937 = dma.done [#allocation4], 32
        $region156: #{tpu_custom_call.1} parent=139 // pred_fallthru
          _
      $region140: #{tpu_custom_call.1} parent=5 // pred_fallthru
        _
      %p2938 = scmp.le.s32.totalorder 2, %s68
      // Predicated region
      $region157: #{tpu_custom_call.1} parent=5 // pred_check
        %p2939 = pneg %p2938
      $region158: #{tpu_custom_call.1} parent=5 // pred_check_branch
        %2941 = sbr.rel (%p2939) target = $region160
      $region159: #{tpu_custom_call.1} parent=5 // pred_region
        %s2942 = ssub.s32 %s68, 2
      $region160: #{tpu_custom_call.1} parent=5 // pred_fallthru
        _
    $region6: #{tpu_custom_call.1} parent=1 // loop_footer
      %s72 = sadd.s32 1, %s68
    $region7: #{tpu_custom_call.1} parent=1 // loop_footer_branch
      %67 = sbr.rel target = $region3
    $region8: #{tpu_custom_call.1} parent=1 // loop_exit
      _
    %2943 = vsyncpa [#allocation4], 1
    %s2944 = scalar_lea.sflag [#allocation4], 1
    %2945 = vsyncpa %s2944, 1

</llo_original>
